<compile_context>
chip_gen: v7x
topology: tpu7x:2x2x1
jax: 0.10.0
libtpu: 0.0.40
codegen_flags: <defaults>
</compile_context>

<pallas_src>
from functools import partial

import jax
import jax.numpy as jnp
from jax import lax
from jax.experimental import pallas as pl
from jax.experimental.pallas import tpu as pltpu

EPS = 1e-5


def _resblock_kernel(x_ref, p_ref, w_ref, o_ref, padbuf, *, kw, dil, pad):
    """Whole ResBlock forward, resident in VMEM, native NCT layout.

    x_ref : (N, C, T)       f32  input activations (PyTorch Conv1d layout)
    p_ref : (C, 6)          f32  packed [g1, b1, cb1, g2, b2, cb2] columns
    w_ref : (2*KW, C, C)    f32  packed conv taps, w_ref[c*KW + k] = (Cout, Cin)
    o_ref : (N, C, T)       f32  output
    padbuf: (N, C, Tp)      f32  zero-halo padded time buffer (scratch,
                                 shared between the two convs)
    """
    N, C, T = x_ref.shape
    inv_count = 1.0 / float(N * T)

    # Zero only the halo lanes, once; both convs fully overwrite the interior.
    zero_halo = jnp.zeros((C, pad), jnp.float32)
    for n in range(N):
        padbuf[n, :, :pad] = zero_halo
        padbuf[n, :, pad + T:] = zero_halo

    # Packed per-channel params as (C, 1) columns (broadcast along lanes/time).
    p = p_ref[...]
    g1, b1, cb1 = p[:, 0:1], p[:, 1:2], p[:, 2:3]
    g2, b2, cb2 = p[:, 3:4], p[:, 4:5], p[:, 5:6]

    # Per-batch (C, T) activations; channels on sublanes, time on lanes.
    xs = [x_ref[n] for n in range(N)]

    def bn_relu(hs, g_col, b_col):
        # One-pass biased stats per channel over (N, T); fold gamma/rsqrt into
        # a single per-channel scale/shift (fewer VPU passes).
        s = hs[0].sum(axis=1, keepdims=True)
        s2 = (hs[0] * hs[0]).sum(axis=1, keepdims=True)
        for h in hs[1:]:
            s = s + h.sum(axis=1, keepdims=True)
            s2 = s2 + (h * h).sum(axis=1, keepdims=True)
        mean = s * inv_count
        var = jnp.maximum(s2 * inv_count - mean * mean, 0.0)
        scale = g_col * lax.rsqrt(var + EPS)            # (C, 1)
        shift = b_col - mean * scale                    # (C, 1)
        return [jnp.maximum(h * scale + shift, 0.0) for h in hs]

    def dilated_conv(hs, w_base, cb_col):
        # out[c_out, t] = sum_k W_k @ padded[:, t + k*dil]  + bias
        # Windows are static lane slices of the per-batch padded buffer; each
        # tap is one f32 MXU matmul, accumulated as a straight dot-sum.
        for n in range(N):
            padbuf[n, :, pad:pad + T] = hs[n]
        outs = []
        for n in range(N):
            acc = jnp.dot(w_ref[w_base], padbuf[n, :, 0:T],
                          preferred_element_type=jnp.float32)
            for k in range(1, kw):
                off = k * dil
                acc = acc + jnp.dot(w_ref[w_base + k],
                                    padbuf[n, :, off:off + T],
                                    preferred_element_type=jnp.float32)
            outs.append(acc + cb_col)
        return outs

    hs = bn_relu(xs, g1, b1)
    hs = dilated_conv(hs, 0, cb1)
    hs = bn_relu(hs, g2, b2)
    hs = dilated_conv(hs, kw, cb2)

    for n in range(N):
        o_ref[n] = (hs[n] + xs[n]).astype(o_ref.dtype)   # residual, native NCT


def resblock_forward(x_nct, params, *, kw, dil):
    """x_nct: (N, C, T) float32, PyTorch Conv1d layout (kept end to end)."""
    N, C, T = x_nct.shape
    pad = dil * (kw - 1) // 2       # == int(1/2*(1 - L + AR*(W-1) - 1 + L))
    Tp = T + 2 * pad

    # Pack the 8 small parameter tensors into 2 operands (fewer input DMAs).
    pvec = jnp.stack([params["g1"], params["b1"], params["cb1"],
                      params["g2"], params["b2"], params["cb2"]],
                     axis=1).astype(jnp.float32)                       # (C, 6)
    wpack = jnp.concatenate(
        [jnp.transpose(params["w1"], (2, 0, 1)),                       # (KW,Co,Ci)
         jnp.transpose(params["w2"], (2, 0, 1))], axis=0
    ).astype(jnp.float32)                                              # (2KW,C,C)

    kernel = partial(_resblock_kernel, kw=kw, dil=dil, pad=pad)
    return pl.pallas_call(
        kernel,
        out_shape=jax.ShapeDtypeStruct((N, C, T), jnp.float32),
        scratch_shapes=[
            pltpu.VMEM((N, C, Tp), jnp.float32),   # shared padded time buffer
        ],
    )(x_nct.astype(jnp.float32), pvec, wpack)


def resblock_reference(x_nct, params, *, kw, dil):
    """Pure-JAX f32 reference (matches the PyTorch module in training-mode BN)."""
    pad = dil * (kw - 1) // 2

    def bn_relu(h, g, b):                                  # h: (N, C, T)
        mean = h.mean(axis=(0, 2), keepdims=True)
        var = ((h - mean) ** 2).mean(axis=(0, 2), keepdims=True)
        h = (h - mean) * lax.rsqrt(var + EPS)
        h = h * g.reshape(1, -1, 1) + b.reshape(1, -1, 1)
        return jnp.maximum(h, 0.0)

    def conv(h, w_oik, cb):                                # w: (Cout, Cin, KW)
        y = lax.conv_general_dilated(
            h, w_oik, window_strides=(1,), padding=[(pad, pad)],
            rhs_dilation=(dil,), dimension_numbers=("NCH", "OIH", "NCH"),
            precision=lax.Precision.HIGHEST)
        return y + cb.reshape(1, -1, 1)

    out = bn_relu(x_nct, params["g1"], params["b1"])
    out = conv(out, params["w1"], params["cb1"])
    out = bn_relu(out, params["g2"], params["b2"])
    out = conv(out, params["w2"], params["cb2"])
    return out + x_nct


def make_params(key, L, kw):
    ks = jax.random.split(key, 8)
    return {
        # BatchNorm affine params and conv biases: (L,)
        "g1":  1.0 + 0.1 * jax.random.normal(ks[0], (L,), jnp.float32),
        "b1":  0.1 * jax.random.normal(ks[1], (L,), jnp.float32),
        "cb1": 0.1 * jax.random.normal(ks[3], (L,), jnp.float32),
        "g2":  1.0 + 0.1 * jax.random.normal(ks[4], (L,), jnp.float32),
        "b2":  0.1 * jax.random.normal(ks[5], (L,), jnp.float32),
        "cb2": 0.1 * jax.random.normal(ks[7], (L,), jnp.float32),
        # Conv weights in PyTorch layout (C_out, C_in, KW)
        "w1":  0.05 * jax.random.normal(ks[2], (L, L, kw), jnp.float32),
        "w2":  0.05 * jax.random.normal(ks[6], (L, L, kw), jnp.float32),
    }


if __name__ == "__main__":
    # Module config: L=32 channels, kernel width W=11, dilation AR=4.
    L, KW, AR = 32, 11, 4
    N, T = 2, 64

    key = jax.random.PRNGKey(0)
    kx, kp = jax.random.split(key)
    x = jax.random.normal(kx, (N, L, T), jnp.float32)      # PyTorch NCT
    params = make_params(kp, L, KW)

    fwd = jax.jit(partial(resblock_forward, kw=KW, dil=AR))
    out = jax.block_until_ready(fwd(x, params))
    assert out.shape == x.shape and out.dtype == jnp.float32

    ref = jax.block_until_ready(resblock_reference(x, params, kw=KW, dil=AR))
    err = float(jnp.max(jnp.abs(out - ref)))
    # f32 MXU operands with f32 accumulation vs f32/HIGHEST reference.
    assert jnp.allclose(out, ref, rtol=1e-2, atol=1e-2), err

    print("KERNEL_OK")
</pallas_src>

<mosaic_0001>
module attributes {stable_mosaic.version = 11 : i64} {
  func.func @_resblock_kernel(%arg0: memref<2x32x64xf32, #tpu.memory_space<vmem>>, %arg1: memref<32x6xf32, #tpu.memory_space<vmem>>, %arg2: memref<22x32x32xf32, #tpu.memory_space<vmem>>, %arg3: memref<2x32x64xf32, #tpu.memory_space<vmem>>, %arg4: memref<2x32x104xf32, #tpu.memory_space<vmem>>) attributes {dimension_semantics = [], scalar_prefetch = 0 : i64, scratch_operands = 1 : i64, tpu.core_type = #tpu.core_type<tc>} {
    %cst = arith.constant 0.000000e+00 : f32
    %0 = vector.broadcast %cst : f32 to vector<32x20xf32>
    %c0 = arith.constant 0 : index
    %c0_0 = arith.constant 0 : index
    %c0_1 = arith.constant 0 : index
    %1 = vector.load %arg4[%c0, %c0_0, %c0_1] : memref<2x32x104xf32, #tpu.memory_space<vmem>>, vector<1x32x20xf32>
    %2 = vector.shape_cast %1 : vector<1x32x20xf32> to vector<32x20xf32>
    %3 = vector.shape_cast %0 : vector<32x20xf32> to vector<1x32x20xf32>
    tpu.vector_store %arg4[%c0, %c0_0, %c0_1], %3 {strides = array<i32>} : memref<2x32x104xf32, #tpu.memory_space<vmem>>, vector<1x32x20xf32>,
    %c0_2 = arith.constant 0 : index
    %c0_3 = arith.constant 0 : index
    %c84 = arith.constant 84 : index
    %4 = vector.load %arg4[%c0_2, %c0_3, %c84] : memref<2x32x104xf32, #tpu.memory_space<vmem>>, vector<1x32x20xf32>
    %5 = vector.shape_cast %4 : vector<1x32x20xf32> to vector<32x20xf32>
    %6 = vector.shape_cast %0 : vector<32x20xf32> to vector<1x32x20xf32>
    tpu.vector_store %arg4[%c0_2, %c0_3, %c84], %6 {strides = array<i32>} : memref<2x32x104xf32, #tpu.memory_space<vmem>>, vector<1x32x20xf32>,
    %c1 = arith.constant 1 : index
    %c0_4 = arith.constant 0 : index
    %c0_5 = arith.constant 0 : index
    %7 = vector.load %arg4[%c1, %c0_4, %c0_5] : memref<2x32x104xf32, #tpu.memory_space<vmem>>, vector<1x32x20xf32>
    %8 = vector.shape_cast %7 : vector<1x32x20xf32> to vector<32x20xf32>
    %9 = vector.shape_cast %0 : vector<32x20xf32> to vector<1x32x20xf32>
    tpu.vector_store %arg4[%c1, %c0_4, %c0_5], %9 {strides = array<i32>} : memref<2x32x104xf32, #tpu.memory_space<vmem>>, vector<1x32x20xf32>,
    %c1_6 = arith.constant 1 : index
    %c0_7 = arith.constant 0 : index
    %c84_8 = arith.constant 84 : index
    %10 = vector.load %arg4[%c1_6, %c0_7, %c84_8] : memref<2x32x104xf32, #tpu.memory_space<vmem>>, vector<1x32x20xf32>
    %11 = vector.shape_cast %10 : vector<1x32x20xf32> to vector<32x20xf32>
    %12 = vector.shape_cast %0 : vector<32x20xf32> to vector<1x32x20xf32>
    tpu.vector_store %arg4[%c1_6, %c0_7, %c84_8], %12 {strides = array<i32>} : memref<2x32x104xf32, #tpu.memory_space<vmem>>, vector<1x32x20xf32>,
    %c0_9 = arith.constant 0 : index
    %c0_10 = arith.constant 0 : index
    %13 = vector.load %arg1[%c0_9, %c0_10] : memref<32x6xf32, #tpu.memory_space<vmem>>, vector<32x6xf32>
    %14 = vector.extract_strided_slice %13 {offsets = [0, 0], sizes = [32, 1], strides = [1, 1]} : vector<32x6xf32> to vector<32x1xf32>
    %15 = vector.extract_strided_slice %13 {offsets = [0, 1], sizes = [32, 1], strides = [1, 1]} : vector<32x6xf32> to vector<32x1xf32>
    %16 = vector.extract_strided_slice %13 {offsets = [0, 2], sizes = [32, 1], strides = [1, 1]} : vector<32x6xf32> to vector<32x1xf32>
    %17 = vector.extract_strided_slice %13 {offsets = [0, 3], sizes = [32, 1], strides = [1, 1]} : vector<32x6xf32> to vector<32x1xf32>
    %18 = vector.extract_strided_slice %13 {offsets = [0, 4], sizes = [32, 1], strides = [1, 1]} : vector<32x6xf32> to vector<32x1xf32>
    %19 = vector.extract_strided_slice %13 {offsets = [0, 5], sizes = [32, 1], strides = [1, 1]} : vector<32x6xf32> to vector<32x1xf32>
    %c0_11 = arith.constant 0 : index
    %c0_12 = arith.constant 0 : index
    %c0_13 = arith.constant 0 : index
    %20 = vector.load %arg0[%c0_11, %c0_12, %c0_13] : memref<2x32x64xf32, #tpu.memory_space<vmem>>, vector<1x32x64xf32>
    %21 = vector.shape_cast %20 : vector<1x32x64xf32> to vector<32x64xf32>
    %c1_14 = arith.constant 1 : index
    %c0_15 = arith.constant 0 : index
    %c0_16 = arith.constant 0 : index
    %22 = vector.load %arg0[%c1_14, %c0_15, %c0_16] : memref<2x32x64xf32, #tpu.memory_space<vmem>>, vector<1x32x64xf32>
    %23 = vector.shape_cast %22 : vector<1x32x64xf32> to vector<32x64xf32>
    %cst_17 = arith.constant dense<0.000000e+00> : vector<32xf32>
    %24 = vector.multi_reduction <add>, %21, %cst_17 [1] : vector<32x64xf32> to vector<32xf32>
    %25 = vector.shape_cast %24 : vector<32xf32> to vector<32x1xf32>
    %26 = arith.mulf %21, %21 : vector<32x64xf32>
    %cst_18 = arith.constant dense<0.000000e+00> : vector<32xf32>
    %27 = vector.multi_reduction <add>, %26, %cst_18 [1] : vector<32x64xf32> to vector<32xf32>
    %28 = vector.shape_cast %27 : vector<32xf32> to vector<32x1xf32>
    %cst_19 = arith.constant dense<0.000000e+00> : vector<32xf32>
    %29 = vector.multi_reduction <add>, %23, %cst_19 [1] : vector<32x64xf32> to vector<32xf32>
    %30 = vector.shape_cast %29 : vector<32xf32> to vector<32x1xf32>
    %31 = arith.addf %25, %30 : vector<32x1xf32>
    %32 = arith.mulf %23, %23 : vector<32x64xf32>
    %cst_20 = arith.constant dense<0.000000e+00> : vector<32xf32>
    %33 = vector.multi_reduction <add>, %32, %cst_20 [1] : vector<32x64xf32> to vector<32xf32>
    %34 = vector.shape_cast %33 : vector<32xf32> to vector<32x1xf32>
    %35 = arith.addf %28, %34 : vector<32x1xf32>
    %cst_21 = arith.constant 7.812500e-03 : f32
    %36 = vector.broadcast %cst_21 : f32 to vector<32x1xf32>
    %37 = arith.mulf %31, %36 : vector<32x1xf32>
    %cst_22 = arith.constant 7.812500e-03 : f32
    %38 = vector.broadcast %cst_22 : f32 to vector<32x1xf32>
    %39 = arith.mulf %35, %38 : vector<32x1xf32>
    %40 = arith.mulf %37, %37 : vector<32x1xf32>
    %41 = arith.subf %39, %40 : vector<32x1xf32>
    %cst_23 = arith.constant 0.000000e+00 : f32
    %42 = vector.broadcast %cst_23 : f32 to vector<32x1xf32>
    %43 = arith.maximumf %41, %42 : vector<32x1xf32>
    %cst_24 = arith.constant 9.99999974E-6 : f32
    %44 = vector.broadcast %cst_24 : f32 to vector<32x1xf32>
    %45 = arith.addf %43, %44 : vector<32x1xf32>
    %46 = math.rsqrt %45 : vector<32x1xf32>
    %47 = arith.mulf %14, %46 : vector<32x1xf32>
    %48 = arith.mulf %37, %47 : vector<32x1xf32>
    %49 = arith.subf %15, %48 : vector<32x1xf32>
    %50 = vector.broadcast %47 : vector<32x1xf32> to vector<32x64xf32>
    %51 = arith.mulf %21, %50 : vector<32x64xf32>
    %52 = vector.broadcast %49 : vector<32x1xf32> to vector<32x64xf32>
    %53 = arith.addf %51, %52 : vector<32x64xf32>
    %cst_25 = arith.constant 0.000000e+00 : f32
    %54 = vector.broadcast %cst_25 : f32 to vector<32x64xf32>
    %55 = arith.maximumf %53, %54 : vector<32x64xf32>
    %56 = vector.broadcast %47 : vector<32x1xf32> to vector<32x64xf32>
    %57 = arith.mulf %23, %56 : vector<32x64xf32>
    %58 = vector.broadcast %49 : vector<32x1xf32> to vector<32x64xf32>
    %59 = arith.addf %57, %58 : vector<32x64xf32>
    %cst_26 = arith.constant 0.000000e+00 : f32
    %60 = vector.broadcast %cst_26 : f32 to vector<32x64xf32>
    %61 = arith.maximumf %59, %60 : vector<32x64xf32>
    %c0_27 = arith.constant 0 : index
    %c0_28 = arith.constant 0 : index
    %c20 = arith.constant 20 : index
    %62 = vector.load %arg4[%c0_27, %c0_28, %c20] : memref<2x32x104xf32, #tpu.memory_space<vmem>>, vector<1x32x64xf32>
    %63 = vector.shape_cast %62 : vector<1x32x64xf32> to vector<32x64xf32>
    %64 = vector.shape_cast %55 : vector<32x64xf32> to vector<1x32x64xf32>
    tpu.vector_store %arg4[%c0_27, %c0_28, %c20], %64 {strides = array<i32>} : memref<2x32x104xf32, #tpu.memory_space<vmem>>, vector<1x32x64xf32>,
    %c1_29 = arith.constant 1 : index
    %c0_30 = arith.constant 0 : index
    %c20_31 = arith.constant 20 : index
    %65 = vector.load %arg4[%c1_29, %c0_30, %c20_31] : memref<2x32x104xf32, #tpu.memory_space<vmem>>, vector<1x32x64xf32>
    %66 = vector.shape_cast %65 : vector<1x32x64xf32> to vector<32x64xf32>
    %67 = vector.shape_cast %61 : vector<32x64xf32> to vector<1x32x64xf32>
    tpu.vector_store %arg4[%c1_29, %c0_30, %c20_31], %67 {strides = array<i32>} : memref<2x32x104xf32, #tpu.memory_space<vmem>>, vector<1x32x64xf32>,
    %c0_32 = arith.constant 0 : index
    %c0_33 = arith.constant 0 : index
    %c0_34 = arith.constant 0 : index
    %68 = vector.load %arg2[%c0_32, %c0_33, %c0_34] : memref<22x32x32xf32, #tpu.memory_space<vmem>>, vector<1x32x32xf32>
    %69 = vector.shape_cast %68 : vector<1x32x32xf32> to vector<32x32xf32>
    %c0_35 = arith.constant 0 : index
    %c0_36 = arith.constant 0 : index
    %c0_37 = arith.constant 0 : index
    %70 = vector.load %arg4[%c0_35, %c0_36, %c0_37] : memref<2x32x104xf32, #tpu.memory_space<vmem>>, vector<1x32x64xf32>
    %71 = vector.shape_cast %70 : vector<1x32x64xf32> to vector<32x64xf32>
    %cst_38 = arith.constant dense<0.000000e+00> : vector<32x64xf32>
    %72 = tpu.matmul %69, %71, %cst_38 {dimension_numbers = #tpu.dot_dimension_numbers<[1], [0], [0], [1], [0, 0, 1, 1], [], []>} : vector<32x32xf32>, vector<32x64xf32>, vector<32x64xf32> -> vector<32x64xf32>
    %c1_39 = arith.constant 1 : index
    %c0_40 = arith.constant 0 : index
    %c0_41 = arith.constant 0 : index
    %73 = vector.load %arg2[%c1_39, %c0_40, %c0_41] : memref<22x32x32xf32, #tpu.memory_space<vmem>>, vector<1x32x32xf32>
    %74 = vector.shape_cast %73 : vector<1x32x32xf32> to vector<32x32xf32>
    %c0_42 = arith.constant 0 : index
    %c0_43 = arith.constant 0 : index
    %c4 = arith.constant 4 : index
    %75 = vector.load %arg4[%c0_42, %c0_43, %c4] : memref<2x32x104xf32, #tpu.memory_space<vmem>>, vector<1x32x64xf32>
    %76 = vector.shape_cast %75 : vector<1x32x64xf32> to vector<32x64xf32>
    %cst_44 = arith.constant dense<0.000000e+00> : vector<32x64xf32>
    %77 = tpu.matmul %74, %76, %cst_44 {dimension_numbers = #tpu.dot_dimension_numbers<[1], [0], [0], [1], [0, 0, 1, 1], [], []>} : vector<32x32xf32>, vector<32x64xf32>, vector<32x64xf32> -> vector<32x64xf32>
    %78 = arith.addf %72, %77 : vector<32x64xf32>
    %c2 = arith.constant 2 : index
    %c0_45 = arith.constant 0 : index
    %c0_46 = arith.constant 0 : index
    %79 = vector.load %arg2[%c2, %c0_45, %c0_46] : memref<22x32x32xf32, #tpu.memory_space<vmem>>, vector<1x32x32xf32>
    %80 = vector.shape_cast %79 : vector<1x32x32xf32> to vector<32x32xf32>
    %c0_47 = arith.constant 0 : index
    %c0_48 = arith.constant 0 : index
    %c8 = arith.constant 8 : index
    %81 = vector.load %arg4[%c0_47, %c0_48, %c8] : memref<2x32x104xf32, #tpu.memory_space<vmem>>, vector<1x32x64xf32>
    %82 = vector.shape_cast %81 : vector<1x32x64xf32> to vector<32x64xf32>
    %cst_49 = arith.constant dense<0.000000e+00> : vector<32x64xf32>
    %83 = tpu.matmul %80, %82, %cst_49 {dimension_numbers = #tpu.dot_dimension_numbers<[1], [0], [0], [1], [0, 0, 1, 1], [], []>} : vector<32x32xf32>, vector<32x64xf32>, vector<32x64xf32> -> vector<32x64xf32>
    %84 = arith.addf %78, %83 : vector<32x64xf32>
    %c3 = arith.constant 3 : index
    %c0_50 = arith.constant 0 : index
    %c0_51 = arith.constant 0 : index
    %85 = vector.load %arg2[%c3, %c0_50, %c0_51] : memref<22x32x32xf32, #tpu.memory_space<vmem>>, vector<1x32x32xf32>
    %86 = vector.shape_cast %85 : vector<1x32x32xf32> to vector<32x32xf32>
    %c0_52 = arith.constant 0 : index
    %c0_53 = arith.constant 0 : index
    %c12 = arith.constant 12 : index
    %87 = vector.load %arg4[%c0_52, %c0_53, %c12] : memref<2x32x104xf32, #tpu.memory_space<vmem>>, vector<1x32x64xf32>
    %88 = vector.shape_cast %87 : vector<1x32x64xf32> to vector<32x64xf32>
    %cst_54 = arith.constant dense<0.000000e+00> : vector<32x64xf32>
    %89 = tpu.matmul %86, %88, %cst_54 {dimension_numbers = #tpu.dot_dimension_numbers<[1], [0], [0], [1], [0, 0, 1, 1], [], []>} : vector<32x32xf32>, vector<32x64xf32>, vector<32x64xf32> -> vector<32x64xf32>
    %90 = arith.addf %84, %89 : vector<32x64xf32>
    %c4_55 = arith.constant 4 : index
    %c0_56 = arith.constant 0 : index
    %c0_57 = arith.constant 0 : index
    %91 = vector.load %arg2[%c4_55, %c0_56, %c0_57] : memref<22x32x32xf32, #tpu.memory_space<vmem>>, vector<1x32x32xf32>
    %92 = vector.shape_cast %91 : vector<1x32x32xf32> to vector<32x32xf32>
    %c0_58 = arith.constant 0 : index
    %c0_59 = arith.constant 0 : index
    %c16 = arith.constant 16 : index
    %93 = vector.load %arg4[%c0_58, %c0_59, %c16] : memref<2x32x104xf32, #tpu.memory_space<vmem>>, vector<1x32x64xf32>
    %94 = vector.shape_cast %93 : vector<1x32x64xf32> to vector<32x64xf32>
    %cst_60 = arith.constant dense<0.000000e+00> : vector<32x64xf32>
    %95 = tpu.matmul %92, %94, %cst_60 {dimension_numbers = #tpu.dot_dimension_numbers<[1], [0], [0], [1], [0, 0, 1, 1], [], []>} : vector<32x32xf32>, vector<32x64xf32>, vector<32x64xf32> -> vector<32x64xf32>
    %96 = arith.addf %90, %95 : vector<32x64xf32>
    %c5 = arith.constant 5 : index
    %c0_61 = arith.constant 0 : index
    %c0_62 = arith.constant 0 : index
    %97 = vector.load %arg2[%c5, %c0_61, %c0_62] : memref<22x32x32xf32, #tpu.memory_space<vmem>>, vector<1x32x32xf32>
    %98 = vector.shape_cast %97 : vector<1x32x32xf32> to vector<32x32xf32>
    %c0_63 = arith.constant 0 : index
    %c0_64 = arith.constant 0 : index
    %c20_65 = arith.constant 20 : index
    %99 = vector.load %arg4[%c0_63, %c0_64, %c20_65] : memref<2x32x104xf32, #tpu.memory_space<vmem>>, vector<1x32x64xf32>
    %100 = vector.shape_cast %99 : vector<1x32x64xf32> to vector<32x64xf32>
    %cst_66 = arith.constant dense<0.000000e+00> : vector<32x64xf32>
    %101 = tpu.matmul %98, %100, %cst_66 {dimension_numbers = #tpu.dot_dimension_numbers<[1], [0], [0], [1], [0, 0, 1, 1], [], []>} : vector<32x32xf32>, vector<32x64xf32>, vector<32x64xf32> -> vector<32x64xf32>
    %102 = arith.addf %96, %101 : vector<32x64xf32>
    %c6 = arith.constant 6 : index
    %c0_67 = arith.constant 0 : index
    %c0_68 = arith.constant 0 : index
    %103 = vector.load %arg2[%c6, %c0_67, %c0_68] : memref<22x32x32xf32, #tpu.memory_space<vmem>>, vector<1x32x32xf32>
    %104 = vector.shape_cast %103 : vector<1x32x32xf32> to vector<32x32xf32>
    %c0_69 = arith.constant 0 : index
    %c0_70 = arith.constant 0 : index
    %c24 = arith.constant 24 : index
    %105 = vector.load %arg4[%c0_69, %c0_70, %c24] : memref<2x32x104xf32, #tpu.memory_space<vmem>>, vector<1x32x64xf32>
    %106 = vector.shape_cast %105 : vector<1x32x64xf32> to vector<32x64xf32>
    %cst_71 = arith.constant dense<0.000000e+00> : vector<32x64xf32>
    %107 = tpu.matmul %104, %106, %cst_71 {dimension_numbers = #tpu.dot_dimension_numbers<[1], [0], [0], [1], [0, 0, 1, 1], [], []>} : vector<32x32xf32>, vector<32x64xf32>, vector<32x64xf32> -> vector<32x64xf32>
    %108 = arith.addf %102, %107 : vector<32x64xf32>
    %c7 = arith.constant 7 : index
    %c0_72 = arith.constant 0 : index
    %c0_73 = arith.constant 0 : index
    %109 = vector.load %arg2[%c7, %c0_72, %c0_73] : memref<22x32x32xf32, #tpu.memory_space<vmem>>, vector<1x32x32xf32>
    %110 = vector.shape_cast %109 : vector<1x32x32xf32> to vector<32x32xf32>
    %c0_74 = arith.constant 0 : index
    %c0_75 = arith.constant 0 : index
    %c28 = arith.constant 28 : index
    %111 = vector.load %arg4[%c0_74, %c0_75, %c28] : memref<2x32x104xf32, #tpu.memory_space<vmem>>, vector<1x32x64xf32>
    %112 = vector.shape_cast %111 : vector<1x32x64xf32> to vector<32x64xf32>
    %cst_76 = arith.constant dense<0.000000e+00> : vector<32x64xf32>
    %113 = tpu.matmul %110, %112, %cst_76 {dimension_numbers = #tpu.dot_dimension_numbers<[1], [0], [0], [1], [0, 0, 1, 1], [], []>} : vector<32x32xf32>, vector<32x64xf32>, vector<32x64xf32> -> vector<32x64xf32>
    %114 = arith.addf %108, %113 : vector<32x64xf32>
    %c8_77 = arith.constant 8 : index
    %c0_78 = arith.constant 0 : index
    %c0_79 = arith.constant 0 : index
    %115 = vector.load %arg2[%c8_77, %c0_78, %c0_79] : memref<22x32x32xf32, #tpu.memory_space<vmem>>, vector<1x32x32xf32>
    %116 = vector.shape_cast %115 : vector<1x32x32xf32> to vector<32x32xf32>
    %c0_80 = arith.constant 0 : index
    %c0_81 = arith.constant 0 : index
    %c32 = arith.constant 32 : index
    %117 = vector.load %arg4[%c0_80, %c0_81, %c32] : memref<2x32x104xf32, #tpu.memory_space<vmem>>, vector<1x32x64xf32>
    %118 = vector.shape_cast %117 : vector<1x32x64xf32> to vector<32x64xf32>
    %cst_82 = arith.constant dense<0.000000e+00> : vector<32x64xf32>
    %119 = tpu.matmul %116, %118, %cst_82 {dimension_numbers = #tpu.dot_dimension_numbers<[1], [0], [0], [1], [0, 0, 1, 1], [], []>} : vector<32x32xf32>, vector<32x64xf32>, vector<32x64xf32> -> vector<32x64xf32>
    %120 = arith.addf %114, %119 : vector<32x64xf32>
    %c9 = arith.constant 9 : index
    %c0_83 = arith.constant 0 : index
    %c0_84 = arith.constant 0 : index
    %121 = vector.load %arg2[%c9, %c0_83, %c0_84] : memref<22x32x32xf32, #tpu.memory_space<vmem>>, vector<1x32x32xf32>
    %122 = vector.shape_cast %121 : vector<1x32x32xf32> to vector<32x32xf32>
    %c0_85 = arith.constant 0 : index
    %c0_86 = arith.constant 0 : index
    %c36 = arith.constant 36 : index
    %123 = vector.load %arg4[%c0_85, %c0_86, %c36] : memref<2x32x104xf32, #tpu.memory_space<vmem>>, vector<1x32x64xf32>
    %124 = vector.shape_cast %123 : vector<1x32x64xf32> to vector<32x64xf32>
    %cst_87 = arith.constant dense<0.000000e+00> : vector<32x64xf32>
    %125 = tpu.matmul %122, %124, %cst_87 {dimension_numbers = #tpu.dot_dimension_numbers<[1], [0], [0], [1], [0, 0, 1, 1], [], []>} : vector<32x32xf32>, vector<32x64xf32>, vector<32x64xf32> -> vector<32x64xf32>
    %126 = arith.addf %120, %125 : vector<32x64xf32>
    %c10 = arith.constant 10 : index
    %c0_88 = arith.constant 0 : index
    %c0_89 = arith.constant 0 : index
    %127 = vector.load %arg2[%c10, %c0_88, %c0_89] : memref<22x32x32xf32, #tpu.memory_space<vmem>>, vector<1x32x32xf32>
    %128 = vector.shape_cast %127 : vector<1x32x32xf32> to vector<32x32xf32>
    %c0_90 = arith.constant 0 : index
    %c0_91 = arith.constant 0 : index
    %c40 = arith.constant 40 : index
    %129 = vector.load %arg4[%c0_90, %c0_91, %c40] : memref<2x32x104xf32, #tpu.memory_space<vmem>>, vector<1x32x64xf32>
    %130 = vector.shape_cast %129 : vector<1x32x64xf32> to vector<32x64xf32>
    %cst_92 = arith.constant dense<0.000000e+00> : vector<32x64xf32>
    %131 = tpu.matmul %128, %130, %cst_92 {dimension_numbers = #tpu.dot_dimension_numbers<[1], [0], [0], [1], [0, 0, 1, 1], [], []>} : vector<32x32xf32>, vector<32x64xf32>, vector<32x64xf32> -> vector<32x64xf32>
    %132 = arith.addf %126, %131 : vector<32x64xf32>
    %133 = vector.broadcast %16 : vector<32x1xf32> to vector<32x64xf32>
    %134 = arith.addf %132, %133 : vector<32x64xf32>
    %c0_93 = arith.constant 0 : index
    %c0_94 = arith.constant 0 : index
    %c0_95 = arith.constant 0 : index
    %135 = vector.load %arg2[%c0_93, %c0_94, %c0_95] : memref<22x32x32xf32, #tpu.memory_space<vmem>>, vector<1x32x32xf32>
    %136 = vector.shape_cast %135 : vector<1x32x32xf32> to vector<32x32xf32>
    %c1_96 = arith.constant 1 : index
    %c0_97 = arith.constant 0 : index
    %c0_98 = arith.constant 0 : index
    %137 = vector.load %arg4[%c1_96, %c0_97, %c0_98] : memref<2x32x104xf32, #tpu.memory_space<vmem>>, vector<1x32x64xf32>
    %138 = vector.shape_cast %137 : vector<1x32x64xf32> to vector<32x64xf32>
    %cst_99 = arith.constant dense<0.000000e+00> : vector<32x64xf32>
    %139 = tpu.matmul %136, %138, %cst_99 {dimension_numbers = #tpu.dot_dimension_numbers<[1], [0], [0], [1], [0, 0, 1, 1], [], []>} : vector<32x32xf32>, vector<32x64xf32>, vector<32x64xf32> -> vector<32x64xf32>
    %c1_100 = arith.constant 1 : index
    %c0_101 = arith.constant 0 : index
    %c0_102 = arith.constant 0 : index
    %140 = vector.load %arg2[%c1_100, %c0_101, %c0_102] : memref<22x32x32xf32, #tpu.memory_space<vmem>>, vector<1x32x32xf32>
    %141 = vector.shape_cast %140 : vector<1x32x32xf32> to vector<32x32xf32>
    %c1_103 = arith.constant 1 : index
    %c0_104 = arith.constant 0 : index
    %c4_105 = arith.constant 4 : index
    %142 = vector.load %arg4[%c1_103, %c0_104, %c4_105] : memref<2x32x104xf32, #tpu.memory_space<vmem>>, vector<1x32x64xf32>
    %143 = vector.shape_cast %142 : vector<1x32x64xf32> to vector<32x64xf32>
    %cst_106 = arith.constant dense<0.000000e+00> : vector<32x64xf32>
    %144 = tpu.matmul %141, %143, %cst_106 {dimension_numbers = #tpu.dot_dimension_numbers<[1], [0], [0], [1], [0, 0, 1, 1], [], []>} : vector<32x32xf32>, vector<32x64xf32>, vector<32x64xf32> -> vector<32x64xf32>
    %145 = arith.addf %139, %144 : vector<32x64xf32>
    %c2_107 = arith.constant 2 : index
    %c0_108 = arith.constant 0 : index
    %c0_109 = arith.constant 0 : index
    %146 = vector.load %arg2[%c2_107, %c0_108, %c0_109] : memref<22x32x32xf32, #tpu.memory_space<vmem>>, vector<1x32x32xf32>
    %147 = vector.shape_cast %146 : vector<1x32x32xf32> to vector<32x32xf32>
    %c1_110 = arith.constant 1 : index
    %c0_111 = arith.constant 0 : index
    %c8_112 = arith.constant 8 : index
    %148 = vector.load %arg4[%c1_110, %c0_111, %c8_112] : memref<2x32x104xf32, #tpu.memory_space<vmem>>, vector<1x32x64xf32>
    %149 = vector.shape_cast %148 : vector<1x32x64xf32> to vector<32x64xf32>
    %cst_113 = arith.constant dense<0.000000e+00> : vector<32x64xf32>
    %150 = tpu.matmul %147, %149, %cst_113 {dimension_numbers = #tpu.dot_dimension_numbers<[1], [0], [0], [1], [0, 0, 1, 1], [], []>} : vector<32x32xf32>, vector<32x64xf32>, vector<32x64xf32> -> vector<32x64xf32>
    %151 = arith.addf %145, %150 : vector<32x64xf32>
    %c3_114 = arith.constant 3 : index
    %c0_115 = arith.constant 0 : index
    %c0_116 = arith.constant 0 : index
    %152 = vector.load %arg2[%c3_114, %c0_115, %c0_116] : memref<22x32x32xf32, #tpu.memory_space<vmem>>, vector<1x32x32xf32>
    %153 = vector.shape_cast %152 : vector<1x32x32xf32> to vector<32x32xf32>
    %c1_117 = arith.constant 1 : index
    %c0_118 = arith.constant 0 : index
    %c12_119 = arith.constant 12 : index
    %154 = vector.load %arg4[%c1_117, %c0_118, %c12_119] : memref<2x32x104xf32, #tpu.memory_space<vmem>>, vector<1x32x64xf32>
    %155 = vector.shape_cast %154 : vector<1x32x64xf32> to vector<32x64xf32>
    %cst_120 = arith.constant dense<0.000000e+00> : vector<32x64xf32>
    %156 = tpu.matmul %153, %155, %cst_120 {dimension_numbers = #tpu.dot_dimension_numbers<[1], [0], [0], [1], [0, 0, 1, 1], [], []>} : vector<32x32xf32>, vector<32x64xf32>, vector<32x64xf32> -> vector<32x64xf32>
    %157 = arith.addf %151, %156 : vector<32x64xf32>
    %c4_121 = arith.constant 4 : index
    %c0_122 = arith.constant 0 : index
    %c0_123 = arith.constant 0 : index
    %158 = vector.load %arg2[%c4_121, %c0_122, %c0_123] : memref<22x32x32xf32, #tpu.memory_space<vmem>>, vector<1x32x32xf32>
    %159 = vector.shape_cast %158 : vector<1x32x32xf32> to vector<32x32xf32>
    %c1_124 = arith.constant 1 : index
    %c0_125 = arith.constant 0 : index
    %c16_126 = arith.constant 16 : index
    %160 = vector.load %arg4[%c1_124, %c0_125, %c16_126] : memref<2x32x104xf32, #tpu.memory_space<vmem>>, vector<1x32x64xf32>
    %161 = vector.shape_cast %160 : vector<1x32x64xf32> to vector<32x64xf32>
    %cst_127 = arith.constant dense<0.000000e+00> : vector<32x64xf32>
    %162 = tpu.matmul %159, %161, %cst_127 {dimension_numbers = #tpu.dot_dimension_numbers<[1], [0], [0], [1], [0, 0, 1, 1], [], []>} : vector<32x32xf32>, vector<32x64xf32>, vector<32x64xf32> -> vector<32x64xf32>
    %163 = arith.addf %157, %162 : vector<32x64xf32>
    %c5_128 = arith.constant 5 : index
    %c0_129 = arith.constant 0 : index
    %c0_130 = arith.constant 0 : index
    %164 = vector.load %arg2[%c5_128, %c0_129, %c0_130] : memref<22x32x32xf32, #tpu.memory_space<vmem>>, vector<1x32x32xf32>
    %165 = vector.shape_cast %164 : vector<1x32x32xf32> to vector<32x32xf32>
    %c1_131 = arith.constant 1 : index
    %c0_132 = arith.constant 0 : index
    %c20_133 = arith.constant 20 : index
    %166 = vector.load %arg4[%c1_131, %c0_132, %c20_133] : memref<2x32x104xf32, #tpu.memory_space<vmem>>, vector<1x32x64xf32>
    %167 = vector.shape_cast %166 : vector<1x32x64xf32> to vector<32x64xf32>
    %cst_134 = arith.constant dense<0.000000e+00> : vector<32x64xf32>
    %168 = tpu.matmul %165, %167, %cst_134 {dimension_numbers = #tpu.dot_dimension_numbers<[1], [0], [0], [1], [0, 0, 1, 1], [], []>} : vector<32x32xf32>, vector<32x64xf32>, vector<32x64xf32> -> vector<32x64xf32>
    %169 = arith.addf %163, %168 : vector<32x64xf32>
    %c6_135 = arith.constant 6 : index
    %c0_136 = arith.constant 0 : index
    %c0_137 = arith.constant 0 : index
    %170 = vector.load %arg2[%c6_135, %c0_136, %c0_137] : memref<22x32x32xf32, #tpu.memory_space<vmem>>, vector<1x32x32xf32>
    %171 = vector.shape_cast %170 : vector<1x32x32xf32> to vector<32x32xf32>
    %c1_138 = arith.constant 1 : index
    %c0_139 = arith.constant 0 : index
    %c24_140 = arith.constant 24 : index
    %172 = vector.load %arg4[%c1_138, %c0_139, %c24_140] : memref<2x32x104xf32, #tpu.memory_space<vmem>>, vector<1x32x64xf32>
    %173 = vector.shape_cast %172 : vector<1x32x64xf32> to vector<32x64xf32>
    %cst_141 = arith.constant dense<0.000000e+00> : vector<32x64xf32>
    %174 = tpu.matmul %171, %173, %cst_141 {dimension_numbers = #tpu.dot_dimension_numbers<[1], [0], [0], [1], [0, 0, 1, 1], [], []>} : vector<32x32xf32>, vector<32x64xf32>, vector<32x64xf32> -> vector<32x64xf32>
    %175 = arith.addf %169, %174 : vector<32x64xf32>
    %c7_142 = arith.constant 7 : index
    %c0_143 = arith.constant 0 : index
    %c0_144 = arith.constant 0 : index
    %176 = vector.load %arg2[%c7_142, %c0_143, %c0_144] : memref<22x32x32xf32, #tpu.memory_space<vmem>>, vector<1x32x32xf32>
    %177 = vector.shape_cast %176 : vector<1x32x32xf32> to vector<32x32xf32>
    %c1_145 = arith.constant 1 : index
    %c0_146 = arith.constant 0 : index
    %c28_147 = arith.constant 28 : index
    %178 = vector.load %arg4[%c1_145, %c0_146, %c28_147] : memref<2x32x104xf32, #tpu.memory_space<vmem>>, vector<1x32x64xf32>
    %179 = vector.shape_cast %178 : vector<1x32x64xf32> to vector<32x64xf32>
    %cst_148 = arith.constant dense<0.000000e+00> : vector<32x64xf32>
    %180 = tpu.matmul %177, %179, %cst_148 {dimension_numbers = #tpu.dot_dimension_numbers<[1], [0], [0], [1], [0, 0, 1, 1], [], []>} : vector<32x32xf32>, vector<32x64xf32>, vector<32x64xf32> -> vector<32x64xf32>
    %181 = arith.addf %175, %180 : vector<32x64xf32>
    %c8_149 = arith.constant 8 : index
    %c0_150 = arith.constant 0 : index
    %c0_151 = arith.constant 0 : index
    %182 = vector.load %arg2[%c8_149, %c0_150, %c0_151] : memref<22x32x32xf32, #tpu.memory_space<vmem>>, vector<1x32x32xf32>
    %183 = vector.shape_cast %182 : vector<1x32x32xf32> to vector<32x32xf32>
    %c1_152 = arith.constant 1 : index
    %c0_153 = arith.constant 0 : index
    %c32_154 = arith.constant 32 : index
    %184 = vector.load %arg4[%c1_152, %c0_153, %c32_154] : memref<2x32x104xf32, #tpu.memory_space<vmem>>, vector<1x32x64xf32>
    %185 = vector.shape_cast %184 : vector<1x32x64xf32> to vector<32x64xf32>
    %cst_155 = arith.constant dense<0.000000e+00> : vector<32x64xf32>
    %186 = tpu.matmul %183, %185, %cst_155 {dimension_numbers = #tpu.dot_dimension_numbers<[1], [0], [0], [1], [0, 0, 1, 1], [], []>} : vector<32x32xf32>, vector<32x64xf32>, vector<32x64xf32> -> vector<32x64xf32>
    %187 = arith.addf %181, %186 : vector<32x64xf32>
    %c9_156 = arith.constant 9 : index
    %c0_157 = arith.constant 0 : index
    %c0_158 = arith.constant 0 : index
    %188 = vector.load %arg2[%c9_156, %c0_157, %c0_158] : memref<22x32x32xf32, #tpu.memory_space<vmem>>, vector<1x32x32xf32>
    %189 = vector.shape_cast %188 : vector<1x32x32xf32> to vector<32x32xf32>
    %c1_159 = arith.constant 1 : index
    %c0_160 = arith.constant 0 : index
    %c36_161 = arith.constant 36 : index
    %190 = vector.load %arg4[%c1_159, %c0_160, %c36_161] : memref<2x32x104xf32, #tpu.memory_space<vmem>>, vector<1x32x64xf32>
    %191 = vector.shape_cast %190 : vector<1x32x64xf32> to vector<32x64xf32>
    %cst_162 = arith.constant dense<0.000000e+00> : vector<32x64xf32>
    %192 = tpu.matmul %189, %191, %cst_162 {dimension_numbers = #tpu.dot_dimension_numbers<[1], [0], [0], [1], [0, 0, 1, 1], [], []>} : vector<32x32xf32>, vector<32x64xf32>, vector<32x64xf32> -> vector<32x64xf32>
    %193 = arith.addf %187, %192 : vector<32x64xf32>
    %c10_163 = arith.constant 10 : index
    %c0_164 = arith.constant 0 : index
    %c0_165 = arith.constant 0 : index
    %194 = vector.load %arg2[%c10_163, %c0_164, %c0_165] : memref<22x32x32xf32, #tpu.memory_space<vmem>>, vector<1x32x32xf32>
    %195 = vector.shape_cast %194 : vector<1x32x32xf32> to vector<32x32xf32>
    %c1_166 = arith.constant 1 : index
    %c0_167 = arith.constant 0 : index
    %c40_168 = arith.constant 40 : index
    %196 = vector.load %arg4[%c1_166, %c0_167, %c40_168] : memref<2x32x104xf32, #tpu.memory_space<vmem>>, vector<1x32x64xf32>
    %197 = vector.shape_cast %196 : vector<1x32x64xf32> to vector<32x64xf32>
    %cst_169 = arith.constant dense<0.000000e+00> : vector<32x64xf32>
    %198 = tpu.matmul %195, %197, %cst_169 {dimension_numbers = #tpu.dot_dimension_numbers<[1], [0], [0], [1], [0, 0, 1, 1], [], []>} : vector<32x32xf32>, vector<32x64xf32>, vector<32x64xf32> -> vector<32x64xf32>
    %199 = arith.addf %193, %198 : vector<32x64xf32>
    %200 = vector.broadcast %16 : vector<32x1xf32> to vector<32x64xf32>
    %201 = arith.addf %199, %200 : vector<32x64xf32>
    %cst_170 = arith.constant dense<0.000000e+00> : vector<32xf32>
    %202 = vector.multi_reduction <add>, %134, %cst_170 [1] : vector<32x64xf32> to vector<32xf32>
    %203 = vector.shape_cast %202 : vector<32xf32> to vector<32x1xf32>
    %204 = arith.mulf %134, %134 : vector<32x64xf32>
    %cst_171 = arith.constant dense<0.000000e+00> : vector<32xf32>
    %205 = vector.multi_reduction <add>, %204, %cst_171 [1] : vector<32x64xf32> to vector<32xf32>
    %206 = vector.shape_cast %205 : vector<32xf32> to vector<32x1xf32>
    %cst_172 = arith.constant dense<0.000000e+00> : vector<32xf32>
    %207 = vector.multi_reduction <add>, %201, %cst_172 [1] : vector<32x64xf32> to vector<32xf32>
    %208 = vector.shape_cast %207 : vector<32xf32> to vector<32x1xf32>
    %209 = arith.addf %203, %208 : vector<32x1xf32>
    %210 = arith.mulf %201, %201 : vector<32x64xf32>
    %cst_173 = arith.constant dense<0.000000e+00> : vector<32xf32>
    %211 = vector.multi_reduction <add>, %210, %cst_173 [1] : vector<32x64xf32> to vector<32xf32>
    %212 = vector.shape_cast %211 : vector<32xf32> to vector<32x1xf32>
    %213 = arith.addf %206, %212 : vector<32x1xf32>
    %cst_174 = arith.constant 7.812500e-03 : f32
    %214 = vector.broadcast %cst_174 : f32 to vector<32x1xf32>
    %215 = arith.mulf %209, %214 : vector<32x1xf32>
    %cst_175 = arith.constant 7.812500e-03 : f32
    %216 = vector.broadcast %cst_175 : f32 to vector<32x1xf32>
    %217 = arith.mulf %213, %216 : vector<32x1xf32>
    %218 = arith.mulf %215, %215 : vector<32x1xf32>
    %219 = arith.subf %217, %218 : vector<32x1xf32>
    %cst_176 = arith.constant 0.000000e+00 : f32
    %220 = vector.broadcast %cst_176 : f32 to vector<32x1xf32>
    %221 = arith.maximumf %219, %220 : vector<32x1xf32>
    %cst_177 = arith.constant 9.99999974E-6 : f32
    %222 = vector.broadcast %cst_177 : f32 to vector<32x1xf32>
    %223 = arith.addf %221, %222 : vector<32x1xf32>
    %224 = math.rsqrt %223 : vector<32x1xf32>
    %225 = arith.mulf %17, %224 : vector<32x1xf32>
    %226 = arith.mulf %215, %225 : vector<32x1xf32>
    %227 = arith.subf %18, %226 : vector<32x1xf32>
    %228 = vector.broadcast %225 : vector<32x1xf32> to vector<32x64xf32>
    %229 = arith.mulf %134, %228 : vector<32x64xf32>
    %230 = vector.broadcast %227 : vector<32x1xf32> to vector<32x64xf32>
    %231 = arith.addf %229, %230 : vector<32x64xf32>
    %cst_178 = arith.constant 0.000000e+00 : f32
    %232 = vector.broadcast %cst_178 : f32 to vector<32x64xf32>
    %233 = arith.maximumf %231, %232 : vector<32x64xf32>
    %234 = vector.broadcast %225 : vector<32x1xf32> to vector<32x64xf32>
    %235 = arith.mulf %201, %234 : vector<32x64xf32>
    %236 = vector.broadcast %227 : vector<32x1xf32> to vector<32x64xf32>
    %237 = arith.addf %235, %236 : vector<32x64xf32>
    %cst_179 = arith.constant 0.000000e+00 : f32
    %238 = vector.broadcast %cst_179 : f32 to vector<32x64xf32>
    %239 = arith.maximumf %237, %238 : vector<32x64xf32>
    %c0_180 = arith.constant 0 : index
    %c0_181 = arith.constant 0 : index
    %c20_182 = arith.constant 20 : index
    %240 = vector.load %arg4[%c0_180, %c0_181, %c20_182] : memref<2x32x104xf32, #tpu.memory_space<vmem>>, vector<1x32x64xf32>
    %241 = vector.shape_cast %240 : vector<1x32x64xf32> to vector<32x64xf32>
    %242 = vector.shape_cast %233 : vector<32x64xf32> to vector<1x32x64xf32>
    tpu.vector_store %arg4[%c0_180, %c0_181, %c20_182], %242 {strides = array<i32>} : memref<2x32x104xf32, #tpu.memory_space<vmem>>, vector<1x32x64xf32>,
    %c1_183 = arith.constant 1 : index
    %c0_184 = arith.constant 0 : index
    %c20_185 = arith.constant 20 : index
    %243 = vector.load %arg4[%c1_183, %c0_184, %c20_185] : memref<2x32x104xf32, #tpu.memory_space<vmem>>, vector<1x32x64xf32>
    %244 = vector.shape_cast %243 : vector<1x32x64xf32> to vector<32x64xf32>
    %245 = vector.shape_cast %239 : vector<32x64xf32> to vector<1x32x64xf32>
    tpu.vector_store %arg4[%c1_183, %c0_184, %c20_185], %245 {strides = array<i32>} : memref<2x32x104xf32, #tpu.memory_space<vmem>>, vector<1x32x64xf32>,
    %c11 = arith.constant 11 : index
    %c0_186 = arith.constant 0 : index
    %c0_187 = arith.constant 0 : index
    %246 = vector.load %arg2[%c11, %c0_186, %c0_187] : memref<22x32x32xf32, #tpu.memory_space<vmem>>, vector<1x32x32xf32>
    %247 = vector.shape_cast %246 : vector<1x32x32xf32> to vector<32x32xf32>
    %c0_188 = arith.constant 0 : index
    %c0_189 = arith.constant 0 : index
    %c0_190 = arith.constant 0 : index
    %248 = vector.load %arg4[%c0_188, %c0_189, %c0_190] : memref<2x32x104xf32, #tpu.memory_space<vmem>>, vector<1x32x64xf32>
    %249 = vector.shape_cast %248 : vector<1x32x64xf32> to vector<32x64xf32>
    %cst_191 = arith.constant dense<0.000000e+00> : vector<32x64xf32>
    %250 = tpu.matmul %247, %249, %cst_191 {dimension_numbers = #tpu.dot_dimension_numbers<[1], [0], [0], [1], [0, 0, 1, 1], [], []>} : vector<32x32xf32>, vector<32x64xf32>, vector<32x64xf32> -> vector<32x64xf32>
    %c12_192 = arith.constant 12 : index
    %c0_193 = arith.constant 0 : index
    %c0_194 = arith.constant 0 : index
    %251 = vector.load %arg2[%c12_192, %c0_193, %c0_194] : memref<22x32x32xf32, #tpu.memory_space<vmem>>, vector<1x32x32xf32>
    %252 = vector.shape_cast %251 : vector<1x32x32xf32> to vector<32x32xf32>
    %c0_195 = arith.constant 0 : index
    %c0_196 = arith.constant 0 : index
    %c4_197 = arith.constant 4 : index
    %253 = vector.load %arg4[%c0_195, %c0_196, %c4_197] : memref<2x32x104xf32, #tpu.memory_space<vmem>>, vector<1x32x64xf32>
    %254 = vector.shape_cast %253 : vector<1x32x64xf32> to vector<32x64xf32>
    %cst_198 = arith.constant dense<0.000000e+00> : vector<32x64xf32>
    %255 = tpu.matmul %252, %254, %cst_198 {dimension_numbers = #tpu.dot_dimension_numbers<[1], [0], [0], [1], [0, 0, 1, 1], [], []>} : vector<32x32xf32>, vector<32x64xf32>, vector<32x64xf32> -> vector<32x64xf32>
    %256 = arith.addf %250, %255 : vector<32x64xf32>
    %c13 = arith.constant 13 : index
    %c0_199 = arith.constant 0 : index
    %c0_200 = arith.constant 0 : index
    %257 = vector.load %arg2[%c13, %c0_199, %c0_200] : memref<22x32x32xf32, #tpu.memory_space<vmem>>, vector<1x32x32xf32>
    %258 = vector.shape_cast %257 : vector<1x32x32xf32> to vector<32x32xf32>
    %c0_201 = arith.constant 0 : index
    %c0_202 = arith.constant 0 : index
    %c8_203 = arith.constant 8 : index
    %259 = vector.load %arg4[%c0_201, %c0_202, %c8_203] : memref<2x32x104xf32, #tpu.memory_space<vmem>>, vector<1x32x64xf32>
    %260 = vector.shape_cast %259 : vector<1x32x64xf32> to vector<32x64xf32>
    %cst_204 = arith.constant dense<0.000000e+00> : vector<32x64xf32>
    %261 = tpu.matmul %258, %260, %cst_204 {dimension_numbers = #tpu.dot_dimension_numbers<[1], [0], [0], [1], [0, 0, 1, 1], [], []>} : vector<32x32xf32>, vector<32x64xf32>, vector<32x64xf32> -> vector<32x64xf32>
    %262 = arith.addf %256, %261 : vector<32x64xf32>
    %c14 = arith.constant 14 : index
    %c0_205 = arith.constant 0 : index
    %c0_206 = arith.constant 0 : index
    %263 = vector.load %arg2[%c14, %c0_205, %c0_206] : memref<22x32x32xf32, #tpu.memory_space<vmem>>, vector<1x32x32xf32>
    %264 = vector.shape_cast %263 : vector<1x32x32xf32> to vector<32x32xf32>
    %c0_207 = arith.constant 0 : index
    %c0_208 = arith.constant 0 : index
    %c12_209 = arith.constant 12 : index
    %265 = vector.load %arg4[%c0_207, %c0_208, %c12_209] : memref<2x32x104xf32, #tpu.memory_space<vmem>>, vector<1x32x64xf32>
    %266 = vector.shape_cast %265 : vector<1x32x64xf32> to vector<32x64xf32>
    %cst_210 = arith.constant dense<0.000000e+00> : vector<32x64xf32>
    %267 = tpu.matmul %264, %266, %cst_210 {dimension_numbers = #tpu.dot_dimension_numbers<[1], [0], [0], [1], [0, 0, 1, 1], [], []>} : vector<32x32xf32>, vector<32x64xf32>, vector<32x64xf32> -> vector<32x64xf32>
    %268 = arith.addf %262, %267 : vector<32x64xf32>
    %c15 = arith.constant 15 : index
    %c0_211 = arith.constant 0 : index
    %c0_212 = arith.constant 0 : index
    %269 = vector.load %arg2[%c15, %c0_211, %c0_212] : memref<22x32x32xf32, #tpu.memory_space<vmem>>, vector<1x32x32xf32>
    %270 = vector.shape_cast %269 : vector<1x32x32xf32> to vector<32x32xf32>
    %c0_213 = arith.constant 0 : index
    %c0_214 = arith.constant 0 : index
    %c16_215 = arith.constant 16 : index
    %271 = vector.load %arg4[%c0_213, %c0_214, %c16_215] : memref<2x32x104xf32, #tpu.memory_space<vmem>>, vector<1x32x64xf32>
    %272 = vector.shape_cast %271 : vector<1x32x64xf32> to vector<32x64xf32>
    %cst_216 = arith.constant dense<0.000000e+00> : vector<32x64xf32>
    %273 = tpu.matmul %270, %272, %cst_216 {dimension_numbers = #tpu.dot_dimension_numbers<[1], [0], [0], [1], [0, 0, 1, 1], [], []>} : vector<32x32xf32>, vector<32x64xf32>, vector<32x64xf32> -> vector<32x64xf32>
    %274 = arith.addf %268, %273 : vector<32x64xf32>
    %c16_217 = arith.constant 16 : index
    %c0_218 = arith.constant 0 : index
    %c0_219 = arith.constant 0 : index
    %275 = vector.load %arg2[%c16_217, %c0_218, %c0_219] : memref<22x32x32xf32, #tpu.memory_space<vmem>>, vector<1x32x32xf32>
    %276 = vector.shape_cast %275 : vector<1x32x32xf32> to vector<32x32xf32>
    %c0_220 = arith.constant 0 : index
    %c0_221 = arith.constant 0 : index
    %c20_222 = arith.constant 20 : index
    %277 = vector.load %arg4[%c0_220, %c0_221, %c20_222] : memref<2x32x104xf32, #tpu.memory_space<vmem>>, vector<1x32x64xf32>
    %278 = vector.shape_cast %277 : vector<1x32x64xf32> to vector<32x64xf32>
    %cst_223 = arith.constant dense<0.000000e+00> : vector<32x64xf32>
    %279 = tpu.matmul %276, %278, %cst_223 {dimension_numbers = #tpu.dot_dimension_numbers<[1], [0], [0], [1], [0, 0, 1, 1], [], []>} : vector<32x32xf32>, vector<32x64xf32>, vector<32x64xf32> -> vector<32x64xf32>
    %280 = arith.addf %274, %279 : vector<32x64xf32>
    %c17 = arith.constant 17 : index
    %c0_224 = arith.constant 0 : index
    %c0_225 = arith.constant 0 : index
    %281 = vector.load %arg2[%c17, %c0_224, %c0_225] : memref<22x32x32xf32, #tpu.memory_space<vmem>>, vector<1x32x32xf32>
    %282 = vector.shape_cast %281 : vector<1x32x32xf32> to vector<32x32xf32>
    %c0_226 = arith.constant 0 : index
    %c0_227 = arith.constant 0 : index
    %c24_228 = arith.constant 24 : index
    %283 = vector.load %arg4[%c0_226, %c0_227, %c24_228] : memref<2x32x104xf32, #tpu.memory_space<vmem>>, vector<1x32x64xf32>
    %284 = vector.shape_cast %283 : vector<1x32x64xf32> to vector<32x64xf32>
    %cst_229 = arith.constant dense<0.000000e+00> : vector<32x64xf32>
    %285 = tpu.matmul %282, %284, %cst_229 {dimension_numbers = #tpu.dot_dimension_numbers<[1], [0], [0], [1], [0, 0, 1, 1], [], []>} : vector<32x32xf32>, vector<32x64xf32>, vector<32x64xf32> -> vector<32x64xf32>
    %286 = arith.addf %280, %285 : vector<32x64xf32>
    %c18 = arith.constant 18 : index
    %c0_230 = arith.constant 0 : index
    %c0_231 = arith.constant 0 : index
    %287 = vector.load %arg2[%c18, %c0_230, %c0_231] : memref<22x32x32xf32, #tpu.memory_space<vmem>>, vector<1x32x32xf32>
    %288 = vector.shape_cast %287 : vector<1x32x32xf32> to vector<32x32xf32>
    %c0_232 = arith.constant 0 : index
    %c0_233 = arith.constant 0 : index
    %c28_234 = arith.constant 28 : index
    %289 = vector.load %arg4[%c0_232, %c0_233, %c28_234] : memref<2x32x104xf32, #tpu.memory_space<vmem>>, vector<1x32x64xf32>
    %290 = vector.shape_cast %289 : vector<1x32x64xf32> to vector<32x64xf32>
    %cst_235 = arith.constant dense<0.000000e+00> : vector<32x64xf32>
    %291 = tpu.matmul %288, %290, %cst_235 {dimension_numbers = #tpu.dot_dimension_numbers<[1], [0], [0], [1], [0, 0, 1, 1], [], []>} : vector<32x32xf32>, vector<32x64xf32>, vector<32x64xf32> -> vector<32x64xf32>
    %292 = arith.addf %286, %291 : vector<32x64xf32>
    %c19 = arith.constant 19 : index
    %c0_236 = arith.constant 0 : index
    %c0_237 = arith.constant 0 : index
    %293 = vector.load %arg2[%c19, %c0_236, %c0_237] : memref<22x32x32xf32, #tpu.memory_space<vmem>>, vector<1x32x32xf32>
    %294 = vector.shape_cast %293 : vector<1x32x32xf32> to vector<32x32xf32>
    %c0_238 = arith.constant 0 : index
    %c0_239 = arith.constant 0 : index
    %c32_240 = arith.constant 32 : index
    %295 = vector.load %arg4[%c0_238, %c0_239, %c32_240] : memref<2x32x104xf32, #tpu.memory_space<vmem>>, vector<1x32x64xf32>
    %296 = vector.shape_cast %295 : vector<1x32x64xf32> to vector<32x64xf32>
    %cst_241 = arith.constant dense<0.000000e+00> : vector<32x64xf32>
    %297 = tpu.matmul %294, %296, %cst_241 {dimension_numbers = #tpu.dot_dimension_numbers<[1], [0], [0], [1], [0, 0, 1, 1], [], []>} : vector<32x32xf32>, vector<32x64xf32>, vector<32x64xf32> -> vector<32x64xf32>
    %298 = arith.addf %292, %297 : vector<32x64xf32>
    %c20_242 = arith.constant 20 : index
    %c0_243 = arith.constant 0 : index
    %c0_244 = arith.constant 0 : index
    %299 = vector.load %arg2[%c20_242, %c0_243, %c0_244] : memref<22x32x32xf32, #tpu.memory_space<vmem>>, vector<1x32x32xf32>
    %300 = vector.shape_cast %299 : vector<1x32x32xf32> to vector<32x32xf32>
    %c0_245 = arith.constant 0 : index
    %c0_246 = arith.constant 0 : index
    %c36_247 = arith.constant 36 : index
    %301 = vector.load %arg4[%c0_245, %c0_246, %c36_247] : memref<2x32x104xf32, #tpu.memory_space<vmem>>, vector<1x32x64xf32>
    %302 = vector.shape_cast %301 : vector<1x32x64xf32> to vector<32x64xf32>
    %cst_248 = arith.constant dense<0.000000e+00> : vector<32x64xf32>
    %303 = tpu.matmul %300, %302, %cst_248 {dimension_numbers = #tpu.dot_dimension_numbers<[1], [0], [0], [1], [0, 0, 1, 1], [], []>} : vector<32x32xf32>, vector<32x64xf32>, vector<32x64xf32> -> vector<32x64xf32>
    %304 = arith.addf %298, %303 : vector<32x64xf32>
    %c21 = arith.constant 21 : index
    %c0_249 = arith.constant 0 : index
    %c0_250 = arith.constant 0 : index
    %305 = vector.load %arg2[%c21, %c0_249, %c0_250] : memref<22x32x32xf32, #tpu.memory_space<vmem>>, vector<1x32x32xf32>
    %306 = vector.shape_cast %305 : vector<1x32x32xf32> to vector<32x32xf32>
    %c0_251 = arith.constant 0 : index
    %c0_252 = arith.constant 0 : index
    %c40_253 = arith.constant 40 : index
    %307 = vector.load %arg4[%c0_251, %c0_252, %c40_253] : memref<2x32x104xf32, #tpu.memory_space<vmem>>, vector<1x32x64xf32>
    %308 = vector.shape_cast %307 : vector<1x32x64xf32> to vector<32x64xf32>
    %cst_254 = arith.constant dense<0.000000e+00> : vector<32x64xf32>
    %309 = tpu.matmul %306, %308, %cst_254 {dimension_numbers = #tpu.dot_dimension_numbers<[1], [0], [0], [1], [0, 0, 1, 1], [], []>} : vector<32x32xf32>, vector<32x64xf32>, vector<32x64xf32> -> vector<32x64xf32>
    %310 = arith.addf %304, %309 : vector<32x64xf32>
    %311 = vector.broadcast %19 : vector<32x1xf32> to vector<32x64xf32>
    %312 = arith.addf %310, %311 : vector<32x64xf32>
    %c11_255 = arith.constant 11 : index
    %c0_256 = arith.constant 0 : index
    %c0_257 = arith.constant 0 : index
    %313 = vector.load %arg2[%c11_255, %c0_256, %c0_257] : memref<22x32x32xf32, #tpu.memory_space<vmem>>, vector<1x32x32xf32>
    %314 = vector.shape_cast %313 : vector<1x32x32xf32> to vector<32x32xf32>
    %c1_258 = arith.constant 1 : index
    %c0_259 = arith.constant 0 : index
    %c0_260 = arith.constant 0 : index
    %315 = vector.load %arg4[%c1_258, %c0_259, %c0_260] : memref<2x32x104xf32, #tpu.memory_space<vmem>>, vector<1x32x64xf32>
    %316 = vector.shape_cast %315 : vector<1x32x64xf32> to vector<32x64xf32>
    %cst_261 = arith.constant dense<0.000000e+00> : vector<32x64xf32>
    %317 = tpu.matmul %314, %316, %cst_261 {dimension_numbers = #tpu.dot_dimension_numbers<[1], [0], [0], [1], [0, 0, 1, 1], [], []>} : vector<32x32xf32>, vector<32x64xf32>, vector<32x64xf32> -> vector<32x64xf32>
    %c12_262 = arith.constant 12 : index
    %c0_263 = arith.constant 0 : index
    %c0_264 = arith.constant 0 : index
    %318 = vector.load %arg2[%c12_262, %c0_263, %c0_264] : memref<22x32x32xf32, #tpu.memory_space<vmem>>, vector<1x32x32xf32>
    %319 = vector.shape_cast %318 : vector<1x32x32xf32> to vector<32x32xf32>
    %c1_265 = arith.constant 1 : index
    %c0_266 = arith.constant 0 : index
    %c4_267 = arith.constant 4 : index
    %320 = vector.load %arg4[%c1_265, %c0_266, %c4_267] : memref<2x32x104xf32, #tpu.memory_space<vmem>>, vector<1x32x64xf32>
    %321 = vector.shape_cast %320 : vector<1x32x64xf32> to vector<32x64xf32>
    %cst_268 = arith.constant dense<0.000000e+00> : vector<32x64xf32>
    %322 = tpu.matmul %319, %321, %cst_268 {dimension_numbers = #tpu.dot_dimension_numbers<[1], [0], [0], [1], [0, 0, 1, 1], [], []>} : vector<32x32xf32>, vector<32x64xf32>, vector<32x64xf32> -> vector<32x64xf32>
    %323 = arith.addf %317, %322 : vector<32x64xf32>
    %c13_269 = arith.constant 13 : index
    %c0_270 = arith.constant 0 : index
    %c0_271 = arith.constant 0 : index
    %324 = vector.load %arg2[%c13_269, %c0_270, %c0_271] : memref<22x32x32xf32, #tpu.memory_space<vmem>>, vector<1x32x32xf32>
    %325 = vector.shape_cast %324 : vector<1x32x32xf32> to vector<32x32xf32>
    %c1_272 = arith.constant 1 : index
    %c0_273 = arith.constant 0 : index
    %c8_274 = arith.constant 8 : index
    %326 = vector.load %arg4[%c1_272, %c0_273, %c8_274] : memref<2x32x104xf32, #tpu.memory_space<vmem>>, vector<1x32x64xf32>
    %327 = vector.shape_cast %326 : vector<1x32x64xf32> to vector<32x64xf32>
    %cst_275 = arith.constant dense<0.000000e+00> : vector<32x64xf32>
    %328 = tpu.matmul %325, %327, %cst_275 {dimension_numbers = #tpu.dot_dimension_numbers<[1], [0], [0], [1], [0, 0, 1, 1], [], []>} : vector<32x32xf32>, vector<32x64xf32>, vector<32x64xf32> -> vector<32x64xf32>
    %329 = arith.addf %323, %328 : vector<32x64xf32>
    %c14_276 = arith.constant 14 : index
    %c0_277 = arith.constant 0 : index
    %c0_278 = arith.constant 0 : index
    %330 = vector.load %arg2[%c14_276, %c0_277, %c0_278] : memref<22x32x32xf32, #tpu.memory_space<vmem>>, vector<1x32x32xf32>
    %331 = vector.shape_cast %330 : vector<1x32x32xf32> to vector<32x32xf32>
    %c1_279 = arith.constant 1 : index
    %c0_280 = arith.constant 0 : index
    %c12_281 = arith.constant 12 : index
    %332 = vector.load %arg4[%c1_279, %c0_280, %c12_281] : memref<2x32x104xf32, #tpu.memory_space<vmem>>, vector<1x32x64xf32>
    %333 = vector.shape_cast %332 : vector<1x32x64xf32> to vector<32x64xf32>
    %cst_282 = arith.constant dense<0.000000e+00> : vector<32x64xf32>
    %334 = tpu.matmul %331, %333, %cst_282 {dimension_numbers = #tpu.dot_dimension_numbers<[1], [0], [0], [1], [0, 0, 1, 1], [], []>} : vector<32x32xf32>, vector<32x64xf32>, vector<32x64xf32> -> vector<32x64xf32>
    %335 = arith.addf %329, %334 : vector<32x64xf32>
    %c15_283 = arith.constant 15 : index
    %c0_284 = arith.constant 0 : index
    %c0_285 = arith.constant 0 : index
    %336 = vector.load %arg2[%c15_283, %c0_284, %c0_285] : memref<22x32x32xf32, #tpu.memory_space<vmem>>, vector<1x32x32xf32>
    %337 = vector.shape_cast %336 : vector<1x32x32xf32> to vector<32x32xf32>
    %c1_286 = arith.constant 1 : index
    %c0_287 = arith.constant 0 : index
    %c16_288 = arith.constant 16 : index
    %338 = vector.load %arg4[%c1_286, %c0_287, %c16_288] : memref<2x32x104xf32, #tpu.memory_space<vmem>>, vector<1x32x64xf32>
    %339 = vector.shape_cast %338 : vector<1x32x64xf32> to vector<32x64xf32>
    %cst_289 = arith.constant dense<0.000000e+00> : vector<32x64xf32>
    %340 = tpu.matmul %337, %339, %cst_289 {dimension_numbers = #tpu.dot_dimension_numbers<[1], [0], [0], [1], [0, 0, 1, 1], [], []>} : vector<32x32xf32>, vector<32x64xf32>, vector<32x64xf32> -> vector<32x64xf32>
    %341 = arith.addf %335, %340 : vector<32x64xf32>
    %c16_290 = arith.constant 16 : index
    %c0_291 = arith.constant 0 : index
    %c0_292 = arith.constant 0 : index
    %342 = vector.load %arg2[%c16_290, %c0_291, %c0_292] : memref<22x32x32xf32, #tpu.memory_space<vmem>>, vector<1x32x32xf32>
    %343 = vector.shape_cast %342 : vector<1x32x32xf32> to vector<32x32xf32>
    %c1_293 = arith.constant 1 : index
    %c0_294 = arith.constant 0 : index
    %c20_295 = arith.constant 20 : index
    %344 = vector.load %arg4[%c1_293, %c0_294, %c20_295] : memref<2x32x104xf32, #tpu.memory_space<vmem>>, vector<1x32x64xf32>
    %345 = vector.shape_cast %344 : vector<1x32x64xf32> to vector<32x64xf32>
    %cst_296 = arith.constant dense<0.000000e+00> : vector<32x64xf32>
    %346 = tpu.matmul %343, %345, %cst_296 {dimension_numbers = #tpu.dot_dimension_numbers<[1], [0], [0], [1], [0, 0, 1, 1], [], []>} : vector<32x32xf32>, vector<32x64xf32>, vector<32x64xf32> -> vector<32x64xf32>
    %347 = arith.addf %341, %346 : vector<32x64xf32>
    %c17_297 = arith.constant 17 : index
    %c0_298 = arith.constant 0 : index
    %c0_299 = arith.constant 0 : index
    %348 = vector.load %arg2[%c17_297, %c0_298, %c0_299] : memref<22x32x32xf32, #tpu.memory_space<vmem>>, vector<1x32x32xf32>
    %349 = vector.shape_cast %348 : vector<1x32x32xf32> to vector<32x32xf32>
    %c1_300 = arith.constant 1 : index
    %c0_301 = arith.constant 0 : index
    %c24_302 = arith.constant 24 : index
    %350 = vector.load %arg4[%c1_300, %c0_301, %c24_302] : memref<2x32x104xf32, #tpu.memory_space<vmem>>, vector<1x32x64xf32>
    %351 = vector.shape_cast %350 : vector<1x32x64xf32> to vector<32x64xf32>
    %cst_303 = arith.constant dense<0.000000e+00> : vector<32x64xf32>
    %352 = tpu.matmul %349, %351, %cst_303 {dimension_numbers = #tpu.dot_dimension_numbers<[1], [0], [0], [1], [0, 0, 1, 1], [], []>} : vector<32x32xf32>, vector<32x64xf32>, vector<32x64xf32> -> vector<32x64xf32>
    %353 = arith.addf %347, %352 : vector<32x64xf32>
    %c18_304 = arith.constant 18 : index
    %c0_305 = arith.constant 0 : index
    %c0_306 = arith.constant 0 : index
    %354 = vector.load %arg2[%c18_304, %c0_305, %c0_306] : memref<22x32x32xf32, #tpu.memory_space<vmem>>, vector<1x32x32xf32>
    %355 = vector.shape_cast %354 : vector<1x32x32xf32> to vector<32x32xf32>
    %c1_307 = arith.constant 1 : index
    %c0_308 = arith.constant 0 : index
    %c28_309 = arith.constant 28 : index
    %356 = vector.load %arg4[%c1_307, %c0_308, %c28_309] : memref<2x32x104xf32, #tpu.memory_space<vmem>>, vector<1x32x64xf32>
    %357 = vector.shape_cast %356 : vector<1x32x64xf32> to vector<32x64xf32>
    %cst_310 = arith.constant dense<0.000000e+00> : vector<32x64xf32>
    %358 = tpu.matmul %355, %357, %cst_310 {dimension_numbers = #tpu.dot_dimension_numbers<[1], [0], [0], [1], [0, 0, 1, 1], [], []>} : vector<32x32xf32>, vector<32x64xf32>, vector<32x64xf32> -> vector<32x64xf32>
    %359 = arith.addf %353, %358 : vector<32x64xf32>
    %c19_311 = arith.constant 19 : index
    %c0_312 = arith.constant 0 : index
    %c0_313 = arith.constant 0 : index
    %360 = vector.load %arg2[%c19_311, %c0_312, %c0_313] : memref<22x32x32xf32, #tpu.memory_space<vmem>>, vector<1x32x32xf32>
    %361 = vector.shape_cast %360 : vector<1x32x32xf32> to vector<32x32xf32>
    %c1_314 = arith.constant 1 : index
    %c0_315 = arith.constant 0 : index
    %c32_316 = arith.constant 32 : index
    %362 = vector.load %arg4[%c1_314, %c0_315, %c32_316] : memref<2x32x104xf32, #tpu.memory_space<vmem>>, vector<1x32x64xf32>
    %363 = vector.shape_cast %362 : vector<1x32x64xf32> to vector<32x64xf32>
    %cst_317 = arith.constant dense<0.000000e+00> : vector<32x64xf32>
    %364 = tpu.matmul %361, %363, %cst_317 {dimension_numbers = #tpu.dot_dimension_numbers<[1], [0], [0], [1], [0, 0, 1, 1], [], []>} : vector<32x32xf32>, vector<32x64xf32>, vector<32x64xf32> -> vector<32x64xf32>
    %365 = arith.addf %359, %364 : vector<32x64xf32>
    %c20_318 = arith.constant 20 : index
    %c0_319 = arith.constant 0 : index
    %c0_320 = arith.constant 0 : index
    %366 = vector.load %arg2[%c20_318, %c0_319, %c0_320] : memref<22x32x32xf32, #tpu.memory_space<vmem>>, vector<1x32x32xf32>
    %367 = vector.shape_cast %366 : vector<1x32x32xf32> to vector<32x32xf32>
    %c1_321 = arith.constant 1 : index
    %c0_322 = arith.constant 0 : index
    %c36_323 = arith.constant 36 : index
    %368 = vector.load %arg4[%c1_321, %c0_322, %c36_323] : memref<2x32x104xf32, #tpu.memory_space<vmem>>, vector<1x32x64xf32>
    %369 = vector.shape_cast %368 : vector<1x32x64xf32> to vector<32x64xf32>
    %cst_324 = arith.constant dense<0.000000e+00> : vector<32x64xf32>
    %370 = tpu.matmul %367, %369, %cst_324 {dimension_numbers = #tpu.dot_dimension_numbers<[1], [0], [0], [1], [0, 0, 1, 1], [], []>} : vector<32x32xf32>, vector<32x64xf32>, vector<32x64xf32> -> vector<32x64xf32>
    %371 = arith.addf %365, %370 : vector<32x64xf32>
    %c21_325 = arith.constant 21 : index
    %c0_326 = arith.constant 0 : index
    %c0_327 = arith.constant 0 : index
    %372 = vector.load %arg2[%c21_325, %c0_326, %c0_327] : memref<22x32x32xf32, #tpu.memory_space<vmem>>, vector<1x32x32xf32>
    %373 = vector.shape_cast %372 : vector<1x32x32xf32> to vector<32x32xf32>
    %c1_328 = arith.constant 1 : index
    %c0_329 = arith.constant 0 : index
    %c40_330 = arith.constant 40 : index
    %374 = vector.load %arg4[%c1_328, %c0_329, %c40_330] : memref<2x32x104xf32, #tpu.memory_space<vmem>>, vector<1x32x64xf32>
    %375 = vector.shape_cast %374 : vector<1x32x64xf32> to vector<32x64xf32>
    %cst_331 = arith.constant dense<0.000000e+00> : vector<32x64xf32>
    %376 = tpu.matmul %373, %375, %cst_331 {dimension_numbers = #tpu.dot_dimension_numbers<[1], [0], [0], [1], [0, 0, 1, 1], [], []>} : vector<32x32xf32>, vector<32x64xf32>, vector<32x64xf32> -> vector<32x64xf32>
    %377 = arith.addf %371, %376 : vector<32x64xf32>
    %378 = vector.broadcast %19 : vector<32x1xf32> to vector<32x64xf32>
    %379 = arith.addf %377, %378 : vector<32x64xf32>
    %380 = arith.addf %312, %21 : vector<32x64xf32>
    %c0_332 = arith.constant 0 : index
    %c0_333 = arith.constant 0 : index
    %c0_334 = arith.constant 0 : index
    %381 = vector.load %arg3[%c0_332, %c0_333, %c0_334] : memref<2x32x64xf32, #tpu.memory_space<vmem>>, vector<1x32x64xf32>
    %382 = vector.shape_cast %381 : vector<1x32x64xf32> to vector<32x64xf32>
    %383 = vector.shape_cast %380 : vector<32x64xf32> to vector<1x32x64xf32>
    tpu.vector_store %arg3[%c0_332, %c0_333, %c0_334], %383 {strides = array<i32>} : memref<2x32x64xf32, #tpu.memory_space<vmem>>, vector<1x32x64xf32>,
    %384 = arith.addf %379, %23 : vector<32x64xf32>
    %c1_335 = arith.constant 1 : index
    %c0_336 = arith.constant 0 : index
    %c0_337 = arith.constant 0 : index
    %385 = vector.load %arg3[%c1_335, %c0_336, %c0_337] : memref<2x32x64xf32, #tpu.memory_space<vmem>>, vector<1x32x64xf32>
    %386 = vector.shape_cast %385 : vector<1x32x64xf32> to vector<32x64xf32>
    %387 = vector.shape_cast %384 : vector<32x64xf32> to vector<1x32x64xf32>
    tpu.vector_store %arg3[%c1_335, %c0_336, %c0_337], %387 {strides = array<i32>} : memref<2x32x64xf32, #tpu.memory_space<vmem>>, vector<1x32x64xf32>,
    return
  }
}

</mosaic_0001>

<llo_original>
// kernel: resblock_forward.1
$region0: #{resblock_forward.1}
  #allocation0 [shape = 'u32[]', space=smem, size = 0x4, offset = 0x4, fixed_abs, tag = 'smem constant byte address 0x4 - core index']
  #allocation1 [shape = 'u32[144,128]{1,0:T(1,128)}', space=vmem, size = 0x12000, scoped, tag = 'internal scratch']
  #allocation2 [shape = 'f32[2,32,104]{2,1,0:T(8,128)}', space=vmem, size = 0x8000, scoped, tag = 'scratch operand']
  %s0 = inlined_call_operand.vmem [shape: f32[2,32,64], index: 0, kind: input, shape index: {}]
  %s1 = inlined_call_operand.vmem [shape: f32[32,6], index: 1, kind: input, shape index: {}]
  %s2 = inlined_call_operand.vmem [shape: f32[22,32,32], index: 2, kind: input, shape index: {}]
  %s3 = inlined_call_operand.hbm [shape: f32[2,32,64], index: 3, kind: output, shape index: {}]
  %s4 = sld [smem:[#allocation0]]
  $region22: #{resblock_forward.1} parent=0
    _
  %s6 = ssub.s32 1, %s4
  %s7 = scalar_select 0, %s6, %s4
  $region1: #{resblock_forward.1} parent=0
    #allocation3 [shape = 'u8[32768]{0}', space=vmem, size = 0x8000, scoped, tag = 'output window, operand 0, single buffered']
    #allocation4 [shape = 's32[1]{0}', space=sflag, size = 0x4, scoped, tag = 'scoped memory for resblock_forward.1']
    %8 = vsyncpa [#allocation4], 0
    // Predicated region
    $region2: #{resblock_forward.1} parent=1 // pred_check
      _
    $region3: #{resblock_forward.1} parent=1 // pred_check_branch
      %10 = sbr.rel (0) target = $region5
    $region4: #{resblock_forward.1} parent=1 // pred_region
      _
    $region5: #{resblock_forward.1} parent=1 // pred_fallthru
      _
    // Predicated region
    $region6: #{resblock_forward.1} parent=1 // pred_check
      _
    $region7: #{resblock_forward.1} parent=1 // pred_check_branch
      %12 = sbr.rel (0) target = $region9
    $region8: #{resblock_forward.1} parent=1 // pred_region
      _
    $region9: #{resblock_forward.1} parent=1 // pred_fallthru
      _
    // Predicated region
    $region10: #{resblock_forward.1} parent=1 // pred_check
      _
    $region11: #{resblock_forward.1} parent=1 // pred_check_branch
      %14 = sbr.rel (0) target = $region13
    $region12: #{resblock_forward.1} parent=1 // pred_region
      _
    $region13: #{resblock_forward.1} parent=1 // pred_fallthru
      _
    %vm15 = vcmask 162816
    %16 = vst.msk [vmem:[#allocation2] sm:$0xff] %vm15, 0.0
    %17 = vst.msk [vmem:[#allocation2 + $0x8] sm:$0xff] %vm15, 0.0
    %18 = vst.msk [vmem:[#allocation2 + $0x10] sm:$0xff] %vm15, 0.0
    %19 = vst.msk [vmem:[#allocation2 + $0x18] sm:$0xff] %vm15, 0.0
    %vm20 = vcmask 851616
    %21 = vst.msk [vmem:[#allocation2] sm:$0xff] %vm20, 0.0
    %22 = vst.msk [vmem:[#allocation2 + $0x8] sm:$0xff] %vm20, 0.0
    %23 = vst.msk [vmem:[#allocation2 + $0x10] sm:$0xff] %vm20, 0.0
    %24 = vst.msk [vmem:[#allocation2 + $0x18] sm:$0xff] %vm20, 0.0
    %s25 = scalar_lea.vmem [#allocation2], 32
    %26 = vst.msk [vmem:[%s25] sm:$0xff] %vm15, 0.0
    %27 = vst.msk [vmem:[%s25 + $0x8] sm:$0xff] %vm15, 0.0
    %28 = vst.msk [vmem:[%s25 + $0x10] sm:$0xff] %vm15, 0.0
    %29 = vst.msk [vmem:[%s25 + $0x18] sm:$0xff] %vm15, 0.0
    %30 = vst.msk [vmem:[%s25] sm:$0xff] %vm20, 0.0
    %31 = vst.msk [vmem:[%s25 + $0x8] sm:$0xff] %vm20, 0.0
    %32 = vst.msk [vmem:[%s25 + $0x10] sm:$0xff] %vm20, 0.0
    %33 = vst.msk [vmem:[%s25 + $0x18] sm:$0xff] %vm20, 0.0
    %v34 = vld [vmem:[%s1] sm:$0xff]
    %v35 = vld [vmem:[%s1 + $0x8] sm:$0xff]
    %v36 = vld [vmem:[%s1 + $0x10] sm:$0xff]
    %v37 = vld [vmem:[%s1 + $0x18] sm:$0xff]
    %v38 = vld [vmem:[%s0] sm:$0xff]
    %v39 = vld [vmem:[%s0 + $0x8] sm:$0xff]
    %v40 = vld [vmem:[%s0 + $0x10] sm:$0xff]
    %v41 = vld [vmem:[%s0 + $0x18] sm:$0xff]
    %s42 = scalar_lea.vmem %s0, 32
    %v43 = vld [vmem:[%s42] sm:$0xff]
    %v44 = vld [vmem:[%s42 + $0x8] sm:$0xff]
    %v45 = vld [vmem:[%s42 + $0x10] sm:$0xff]
    %v46 = vld [vmem:[%s42 + $0x18] sm:$0xff]
    %vm47 = vcmask 523264
    %v48 = vsel %vm47, %v38, 0.0
    %49 = vadd.xlane.f32.xlu0 %v48
    %v50 = vpop.xlane.xlu0 %49
    %v51 = vsel %vm47, %v39, 0.0
    %52 = vadd.xlane.f32.xlu0 %v51
    %v53 = vpop.xlane.xlu0 %52
    %v54 = vsel %vm47, %v40, 0.0
    %55 = vadd.xlane.f32.xlu0 %v54
    %v56 = vpop.xlane.xlu0 %55
    %v57 = vsel %vm47, %v41, 0.0
    %58 = vadd.xlane.f32.xlu0 %v57
    %v59 = vpop.xlane.xlu0 %58
    %v60 = vmul.f32 %v38, %v38
    %v61 = vmul.f32 %v39, %v39
    %v62 = vmul.f32 %v40, %v40
    %v63 = vmul.f32 %v41, %v41
    %v64 = vsel %vm47, %v60, 0.0
    %65 = vadd.xlane.f32.xlu0 %v64
    %v66 = vpop.xlane.xlu0 %65
    %v67 = vsel %vm47, %v61, 0.0
    %68 = vadd.xlane.f32.xlu0 %v67
    %v69 = vpop.xlane.xlu0 %68
    %v70 = vsel %vm47, %v62, 0.0
    %71 = vadd.xlane.f32.xlu0 %v70
    %v72 = vpop.xlane.xlu0 %71
    %v73 = vsel %vm47, %v63, 0.0
    %74 = vadd.xlane.f32.xlu0 %v73
    %v75 = vpop.xlane.xlu0 %74
    %v76 = vsel %vm47, %v43, 0.0
    %77 = vadd.xlane.f32.xlu0 %v76
    %v78 = vpop.xlane.xlu0 %77
    %v79 = vsel %vm47, %v44, 0.0
    %80 = vadd.xlane.f32.xlu0 %v79
    %v81 = vpop.xlane.xlu0 %80
    %v82 = vsel %vm47, %v45, 0.0
    %83 = vadd.xlane.f32.xlu0 %v82
    %v84 = vpop.xlane.xlu0 %83
    %v85 = vsel %vm47, %v46, 0.0
    %86 = vadd.xlane.f32.xlu0 %v85
    %v87 = vpop.xlane.xlu0 %86
    %v88 = vadd.f32 %v50, %v78
    %v89 = vadd.f32 %v53, %v81
    %v90 = vadd.f32 %v56, %v84
    %v91 = vadd.f32 %v59, %v87
    %v92 = vmul.f32 %v43, %v43
    %v93 = vmul.f32 %v44, %v44
    %v94 = vmul.f32 %v45, %v45
    %v95 = vmul.f32 %v46, %v46
    %v96 = vsel %vm47, %v92, 0.0
    %97 = vadd.xlane.f32.xlu0 %v96
    %v98 = vpop.xlane.xlu0 %97
    %v99 = vsel %vm47, %v93, 0.0
    %100 = vadd.xlane.f32.xlu0 %v99
    %v101 = vpop.xlane.xlu0 %100
    %v102 = vsel %vm47, %v94, 0.0
    %103 = vadd.xlane.f32.xlu0 %v102
    %v104 = vpop.xlane.xlu0 %103
    %v105 = vsel %vm47, %v95, 0.0
    %106 = vadd.xlane.f32.xlu0 %v105
    %v107 = vpop.xlane.xlu0 %106
    %v108 = vadd.f32 %v66, %v98
    %v109 = vadd.f32 %v69, %v101
    %v110 = vadd.f32 %v72, %v104
    %v111 = vadd.f32 %v75, %v107
    %v112 = vmul.f32 %v88, 0.0078125
    %v113 = vmul.f32 %v89, 0.0078125
    %v114 = vmul.f32 %v90, 0.0078125
    %v115 = vmul.f32 %v91, 0.0078125
    %v116 = vmul.f32 %v108, 0.0078125
    %v117 = vmul.f32 %v109, 0.0078125
    %v118 = vmul.f32 %v110, 0.0078125
    %v119 = vmul.f32 %v111, 0.0078125
    %v120 = vmul.f32 %v112, %v112
    %v121 = vmul.f32 %v113, %v113
    %v122 = vmul.f32 %v114, %v114
    %v123 = vmul.f32 %v115, %v115
    %v124 = vsub.f32 %v116, %v120
    %v125 = vsub.f32 %v117, %v121
    %v126 = vsub.f32 %v118, %v122
    %v127 = vsub.f32 %v119, %v123
    %v128 = vmax.f32 %v124, 0.0
    %v129 = vmax.f32 %v125, 0.0
    %v130 = vmax.f32 %v126, 0.0
    %v131 = vmax.f32 %v127, 0.0
    %v132 = vadd.f32 %v128, 1e-05
    %v133 = vadd.f32 %v129, 1e-05
    %v134 = vadd.f32 %v130, 1e-05
    %v135 = vadd.f32 %v131, 1e-05
    %v136 = vrsqrt.pop %v132
    %v137 = vrsqrt.pop %v133
    %v138 = vrsqrt.pop %v134
    %v139 = vrsqrt.pop %v135
    %v140 = vmul.f32 %v34, %v136
    %v141 = vmul.f32 %v35, %v137
    %v142 = vmul.f32 %v36, %v138
    %v143 = vmul.f32 %v37, %v139
    %v144 = vmul.f32 %v112, %v140
    %v145 = vmul.f32 %v113, %v141
    %v146 = vmul.f32 %v114, %v142
    %v147 = vmul.f32 %v115, %v143
    %152 = vrot.lane.b32.xlu0 %v144, 1
    %v153 = vpop.permute.xlu0 %152
    %154 = vrot.lane.b32.xlu0 %v145, 1
    %v155 = vpop.permute.xlu0 %154
    %156 = vrot.lane.b32.xlu0 %v146, 1
    %v157 = vpop.permute.xlu0 %156
    %158 = vrot.lane.b32.xlu0 %v147, 1
    %v159 = vpop.permute.xlu0 %158
    %v164 = vsub.f32 %v34, %v153
    %v165 = vsub.f32 %v35, %v155
    %v166 = vsub.f32 %v36, %v157
    %v167 = vsub.f32 %v37, %v159
    %169 = vset.pattern.permute.xlu0 0
    %170 = vperm.xlu0 %169, %v140
    %v171 = vpop.permute.xlu0 %170
    %174 = vset.pattern.permute.xlu0 0
    %175 = vperm.xlu0 %174, %v141
    %v176 = vpop.permute.xlu0 %175
    %179 = vset.pattern.permute.xlu0 0
    %180 = vperm.xlu0 %179, %v142
    %v181 = vpop.permute.xlu0 %180
    %184 = vset.pattern.permute.xlu0 0
    %185 = vperm.xlu0 %184, %v143
    %v186 = vpop.permute.xlu0 %185
    %v188 = vmul.f32 %v38, %v171
    %v189 = vmul.f32 %v39, %v176
    %v190 = vmul.f32 %v40, %v181
    %v191 = vmul.f32 %v41, %v186
    %193 = vset.pattern.permute.xlu0 1
    %194 = vperm.xlu0 %193, %v164
    %v195 = vpop.permute.xlu0 %194
    %198 = vset.pattern.permute.xlu0 1
    %199 = vperm.xlu0 %198, %v165
    %v200 = vpop.permute.xlu0 %199
    %203 = vset.pattern.permute.xlu0 1
    %204 = vperm.xlu0 %203, %v166
    %v205 = vpop.permute.xlu0 %204
    %208 = vset.pattern.permute.xlu0 1
    %209 = vperm.xlu0 %208, %v167
    %v210 = vpop.permute.xlu0 %209
    %v212 = vadd.f32 %v188, %v195
    %v213 = vadd.f32 %v189, %v200
    %v214 = vadd.f32 %v190, %v205
    %v215 = vadd.f32 %v191, %v210
    %v216 = vmax.f32 %v212, 0.0
    %v217 = vmax.f32 %v213, 0.0
    %v218 = vmax.f32 %v214, 0.0
    %v219 = vmax.f32 %v215, 0.0
    %v220 = vmul.f32 %v43, %v171
    %v221 = vmul.f32 %v44, %v176
    %v222 = vmul.f32 %v45, %v181
    %v223 = vmul.f32 %v46, %v186
    %v224 = vadd.f32 %v220, %v195
    %v225 = vadd.f32 %v221, %v200
    %v226 = vadd.f32 %v222, %v205
    %v227 = vadd.f32 %v223, %v210
    %v228 = vmax.f32 %v224, 0.0
    %v229 = vmax.f32 %v225, 0.0
    %v230 = vmax.f32 %v226, 0.0
    %v231 = vmax.f32 %v227, 0.0
    %236 = vrot.lane.b32.xlu0 %v216, 20
    %v237 = vpop.permute.xlu0 %236
    %238 = vrot.lane.b32.xlu0 %v217, 20
    %v239 = vpop.permute.xlu0 %238
    %240 = vrot.lane.b32.xlu0 %v218, 20
    %v241 = vpop.permute.xlu0 %240
    %242 = vrot.lane.b32.xlu0 %v219, 20
    %v243 = vpop.permute.xlu0 %242
    %vm248 = vcmask 687264
    %249 = vst.msk [vmem:[#allocation2] sm:$0xff] %vm248, %v237
    %250 = vst.msk [vmem:[#allocation2 + $0x8] sm:$0xff] %vm248, %v239
    %251 = vst.msk [vmem:[#allocation2 + $0x10] sm:$0xff] %vm248, %v241
    %252 = vst.msk [vmem:[#allocation2 + $0x18] sm:$0xff] %vm248, %v243
    %257 = vrot.lane.b32.xlu0 %v228, 20
    %v258 = vpop.permute.xlu0 %257
    %259 = vrot.lane.b32.xlu0 %v229, 20
    %v260 = vpop.permute.xlu0 %259
    %261 = vrot.lane.b32.xlu0 %v230, 20
    %v262 = vpop.permute.xlu0 %261
    %263 = vrot.lane.b32.xlu0 %v231, 20
    %v264 = vpop.permute.xlu0 %263
    %269 = vst.msk [vmem:[%s25] sm:$0xff] %vm248, %v258
    %270 = vst.msk [vmem:[%s25 + $0x8] sm:$0xff] %vm248, %v260
    %271 = vst.msk [vmem:[%s25 + $0x10] sm:$0xff] %vm248, %v262
    %272 = vst.msk [vmem:[%s25 + $0x18] sm:$0xff] %vm248, %v264
    %v273 = vld [vmem:[%s2] sm:$0xff]
    %v274 = vld [vmem:[%s2 + $0x8] sm:$0xff]
    %v275 = vld [vmem:[%s2 + $0x10] sm:$0xff]
    %v276 = vld [vmem:[%s2 + $0x18] sm:$0xff]
    %v277 = vld [vmem:[#allocation2] sm:$0xff]
    %v278 = vld [vmem:[#allocation2 + $0x8] sm:$0xff]
    %v279 = vld [vmem:[#allocation2 + $0x10] sm:$0xff]
    %v280 = vld [vmem:[#allocation2 + $0x18] sm:$0xff]
    %s281 = scalar_lea.vmem %s2, 32
    %v282 = vld [vmem:[%s281] sm:$0xff]
    %v283 = vld [vmem:[%s281 + $0x8] sm:$0xff]
    %v284 = vld [vmem:[%s281 + $0x10] sm:$0xff]
    %v285 = vld [vmem:[%s281 + $0x18] sm:$0xff]
    %290 = vrot.lane.b32.xlu0 %v277, 124
    %v291 = vpop.permute.xlu0 %290
    %292 = vrot.lane.b32.xlu0 %v278, 124
    %v293 = vpop.permute.xlu0 %292
    %294 = vrot.lane.b32.xlu0 %v279, 124
    %v295 = vpop.permute.xlu0 %294
    %296 = vrot.lane.b32.xlu0 %v280, 124
    %v297 = vpop.permute.xlu0 %296
    %vm302 = vcmask 261120
    %v304 = vsel %vm302, %v282, 0
    %v307 = vsel %vm302, %v283, 0
    %v310 = vsel %vm302, %v284, 0
    %v313 = vsel %vm302, %v285, 0
    %315 = vmatprep.subr.mxu0 0.0
    %316 = vmatpush1.msra.mxu0 %v291
    %317 = vmatprep.subr.mxu0 0.0
    %318 = vmatpush1.msra.mxu0 %v293
    %319 = vmatprep.subr.mxu0 0.0
    %320 = vmatpush1.msra.mxu0 %v295
    %321 = vmatprep.subr.mxu0 0.0
    %322 = vmatpush1.msra.mxu0 %v297
    %323 = vmatprep.subr.mxu0 0.0
    %324 = vmatpush1.msra.mxu0 0.0
    %325 = vmatprep.subr.mxu0 0.0
    %326 = vmatpush1.msra.mxu0 0.0
    %327 = vmatprep.subr.mxu0 0.0
    %328 = vmatpush1.msra.mxu0 0.0
    %329 = vmatprep.subr.mxu0 0.0
    %330 = vmatpush1.msra.mxu0 0.0
    %331 = vmatprep.subr.mxu0 0.0
    %332 = vmatpush1.msra.mxu0 0.0
    %333 = vmatprep.subr.mxu0 0.0
    %334 = vmatpush1.msra.mxu0 0.0
    %335 = vmatprep.subr.mxu0 0.0
    %336 = vmatpush1.msra.mxu0 0.0
    %337 = vmatprep.subr.mxu0 0.0
    %338 = vmatpush1.msra.mxu0 0.0
    %339 = vmatprep.subr.mxu0 0.0
    %340 = vmatpush1.msra.mxu0 0.0
    %341 = vmatprep.subr.mxu0 0.0
    %342 = vmatpush1.msra.mxu0 0.0
    %343 = vmatprep.subr.mxu0 0.0
    %344 = vmatpush1.msra.mxu0 0.0
    %345 = vmatprep.subr.mxu0 0.0
    %346 = vmatpush1.msra.mxu0 0.0
    %347 = vmatprep.subr.mxu0 0.0
    %348 = vmatpush1.msra.mxu0 0.0
    %349 = vmatprep.subr.mxu0 0.0
    %350 = vmatpush1.msra.mxu0 0.0
    %351 = vmatprep.subr.mxu0 0.0
    %352 = vmatpush1.msra.mxu0 0.0
    %353 = vmatprep.subr.mxu0 0.0
    %354 = vmatpush1.msra.mxu0 0.0
    %355 = vmatprep.subr.mxu0 0.0
    %356 = vmatpush1.msra.mxu0 0.0
    %357 = vmatprep.subr.mxu0 0.0
    %358 = vmatpush1.msra.mxu0 0.0
    %359 = vmatprep.subr.mxu0 0.0
    %360 = vmatpush1.msra.mxu0 0.0
    %361 = vmatprep.subr.mxu0 0.0
    %362 = vmatpush1.msra.mxu0 0.0
    %363 = vmatprep.subr.mxu0 0.0
    %364 = vmatpush1.msra.mxu0 0.0
    %365 = vmatprep.subr.mxu0 0.0
    %366 = vmatpush1.msra.mxu0 0.0
    %367 = vmatprep.subr.mxu0 0.0
    %368 = vmatpush1.msra.mxu0 0.0
    %369 = vmatprep.subr.mxu0 0.0
    %370 = vmatpush1.msra.mxu0 0.0
    %371 = vmatprep.subr.mxu0 0.0
    %372 = vmatpush1.msra.mxu0 0.0
    %373 = vmatprep.subr.mxu0 0.0
    %374 = vmatpush1.msra.mxu0 0.0
    %375 = vmatprep.subr.mxu0 0.0
    %376 = vmatpush1.msra.mxu0 0.0
    %377 = vmatprep.subr.mxu0 0.0
    %378 = vmatpush1.msra.mxu0 0.0
    %379 = vmatprep.mubr.f32.mxu0 0.0
    %380 = vmatmul.mubr.f32.gmra.mrb[0].mxu0 %v304
    %v381 = vpop.f32.mrb[0].mxu0
    %v382 = vadd.f32 0.0, %v381
    %v383 = vpop.f32.mrb[0].mxu0
    %384 = vmatprep.mubr.f32.mxu0 0.0
    %385 = vmatmul.mubr.f32.gmra.mrb[0].mxu0 %v307
    %v386 = vpop.f32.mrb[0].mxu0
    %v387 = vadd.f32 0.0, %v386
    %v388 = vpop.f32.mrb[0].mxu0
    %389 = vmatprep.mubr.f32.mxu0 0.0
    %390 = vmatmul.mubr.f32.gmra.mrb[0].mxu0 %v310
    %v391 = vpop.f32.mrb[0].mxu0
    %v392 = vadd.f32 0.0, %v391
    %v393 = vpop.f32.mrb[0].mxu0
    %394 = vmatprep.mubr.f32.mxu0 0.0
    %395 = vmatmul.mubr.f32.gmra.mrb[0].mxu0 %v313
    %v396 = vpop.f32.mrb[0].mxu0
    %v397 = vadd.f32 0.0, %v396
    %v398 = vpop.f32.mrb[0].mxu0
    %399 = vdwg.mxu0
    %v401 = vsel %vm302, %v273, 0
    %v404 = vsel %vm302, %v274, 0
    %v407 = vsel %vm302, %v275, 0
    %v410 = vsel %vm302, %v276, 0
    %412 = vmatprep.subr.mxu0 0.0
    %413 = vmatpush1.msra.mxu0 %v277
    %414 = vmatprep.subr.mxu0 0.0
    %415 = vmatpush1.msra.mxu0 %v278
    %416 = vmatprep.subr.mxu0 0.0
    %417 = vmatpush1.msra.mxu0 %v279
    %418 = vmatprep.subr.mxu0 0.0
    %419 = vmatpush1.msra.mxu0 %v280
    %420 = vmatprep.subr.mxu0 0.0
    %421 = vmatpush1.msra.mxu0 0.0
    %422 = vmatprep.subr.mxu0 0.0
    %423 = vmatpush1.msra.mxu0 0.0
    %424 = vmatprep.subr.mxu0 0.0
    %425 = vmatpush1.msra.mxu0 0.0
    %426 = vmatprep.subr.mxu0 0.0
    %427 = vmatpush1.msra.mxu0 0.0
    %428 = vmatprep.subr.mxu0 0.0
    %429 = vmatpush1.msra.mxu0 0.0
    %430 = vmatprep.subr.mxu0 0.0
    %431 = vmatpush1.msra.mxu0 0.0
    %432 = vmatprep.subr.mxu0 0.0
    %433 = vmatpush1.msra.mxu0 0.0
    %434 = vmatprep.subr.mxu0 0.0
    %435 = vmatpush1.msra.mxu0 0.0
    %436 = vmatprep.subr.mxu0 0.0
    %437 = vmatpush1.msra.mxu0 0.0
    %438 = vmatprep.subr.mxu0 0.0
    %439 = vmatpush1.msra.mxu0 0.0
    %440 = vmatprep.subr.mxu0 0.0
    %441 = vmatpush1.msra.mxu0 0.0
    %442 = vmatprep.subr.mxu0 0.0
    %443 = vmatpush1.msra.mxu0 0.0
    %444 = vmatprep.subr.mxu0 0.0
    %445 = vmatpush1.msra.mxu0 0.0
    %446 = vmatprep.subr.mxu0 0.0
    %447 = vmatpush1.msra.mxu0 0.0
    %448 = vmatprep.subr.mxu0 0.0
    %449 = vmatpush1.msra.mxu0 0.0
    %450 = vmatprep.subr.mxu0 0.0
    %451 = vmatpush1.msra.mxu0 0.0
    %452 = vmatprep.subr.mxu0 0.0
    %453 = vmatpush1.msra.mxu0 0.0
    %454 = vmatprep.subr.mxu0 0.0
    %455 = vmatpush1.msra.mxu0 0.0
    %456 = vmatprep.subr.mxu0 0.0
    %457 = vmatpush1.msra.mxu0 0.0
    %458 = vmatprep.subr.mxu0 0.0
    %459 = vmatpush1.msra.mxu0 0.0
    %460 = vmatprep.subr.mxu0 0.0
    %461 = vmatpush1.msra.mxu0 0.0
    %462 = vmatprep.subr.mxu0 0.0
    %463 = vmatpush1.msra.mxu0 0.0
    %464 = vmatprep.subr.mxu0 0.0
    %465 = vmatpush1.msra.mxu0 0.0
    %466 = vmatprep.subr.mxu0 0.0
    %467 = vmatpush1.msra.mxu0 0.0
    %468 = vmatprep.subr.mxu0 0.0
    %469 = vmatpush1.msra.mxu0 0.0
    %470 = vmatprep.subr.mxu0 0.0
    %471 = vmatpush1.msra.mxu0 0.0
    %472 = vmatprep.subr.mxu0 0.0
    %473 = vmatpush1.msra.mxu0 0.0
    %474 = vmatprep.subr.mxu0 0.0
    %475 = vmatpush1.msra.mxu0 0.0
    %476 = vmatprep.mubr.f32.mxu0 0.0
    %477 = vmatmul.mubr.f32.gmra.mrb[0].mxu0 %v401
    %v478 = vpop.f32.mrb[0].mxu0
    %v479 = vadd.f32 %v382, %v478
    %v480 = vpop.f32.mrb[0].mxu0
    %481 = vmatprep.mubr.f32.mxu0 0.0
    %482 = vmatmul.mubr.f32.gmra.mrb[0].mxu0 %v404
    %v483 = vpop.f32.mrb[0].mxu0
    %v484 = vadd.f32 %v387, %v483
    %v485 = vpop.f32.mrb[0].mxu0
    %486 = vmatprep.mubr.f32.mxu0 0.0
    %487 = vmatmul.mubr.f32.gmra.mrb[0].mxu0 %v407
    %v488 = vpop.f32.mrb[0].mxu0
    %v489 = vadd.f32 %v392, %v488
    %v490 = vpop.f32.mrb[0].mxu0
    %491 = vmatprep.mubr.f32.mxu0 0.0
    %492 = vmatmul.mubr.f32.gmra.mrb[0].mxu0 %v410
    %v493 = vpop.f32.mrb[0].mxu0
    %v494 = vadd.f32 %v397, %v493
    %v495 = vpop.f32.mrb[0].mxu0
    %496 = vdwg.mxu0
    %s497 = scalar_lea.vmem %s2, 64
    %v498 = vld [vmem:[%s497] sm:$0xff]
    %v499 = vld [vmem:[%s497 + $0x8] sm:$0xff]
    %v500 = vld [vmem:[%s497 + $0x10] sm:$0xff]
    %v501 = vld [vmem:[%s497 + $0x18] sm:$0xff]
    %502 = vrot.lane.b32.xlu0 %v277, 120
    %v503 = vpop.permute.xlu0 %502
    %504 = vrot.lane.b32.xlu0 %v278, 120
    %v505 = vpop.permute.xlu0 %504
    %506 = vrot.lane.b32.xlu0 %v279, 120
    %v507 = vpop.permute.xlu0 %506
    %508 = vrot.lane.b32.xlu0 %v280, 120
    %v509 = vpop.permute.xlu0 %508
    %v515 = vsel %vm302, %v498, 0
    %v518 = vsel %vm302, %v499, 0
    %v521 = vsel %vm302, %v500, 0
    %v524 = vsel %vm302, %v501, 0
    %526 = vmatprep.subr.mxu0 0.0
    %527 = vmatpush1.msra.mxu0 %v503
    %528 = vmatprep.subr.mxu0 0.0
    %529 = vmatpush1.msra.mxu0 %v505
    %530 = vmatprep.subr.mxu0 0.0
    %531 = vmatpush1.msra.mxu0 %v507
    %532 = vmatprep.subr.mxu0 0.0
    %533 = vmatpush1.msra.mxu0 %v509
    %534 = vmatprep.subr.mxu0 0.0
    %535 = vmatpush1.msra.mxu0 0.0
    %536 = vmatprep.subr.mxu0 0.0
    %537 = vmatpush1.msra.mxu0 0.0
    %538 = vmatprep.subr.mxu0 0.0
    %539 = vmatpush1.msra.mxu0 0.0
    %540 = vmatprep.subr.mxu0 0.0
    %541 = vmatpush1.msra.mxu0 0.0
    %542 = vmatprep.subr.mxu0 0.0
    %543 = vmatpush1.msra.mxu0 0.0
    %544 = vmatprep.subr.mxu0 0.0
    %545 = vmatpush1.msra.mxu0 0.0
    %546 = vmatprep.subr.mxu0 0.0
    %547 = vmatpush1.msra.mxu0 0.0
    %548 = vmatprep.subr.mxu0 0.0
    %549 = vmatpush1.msra.mxu0 0.0
    %550 = vmatprep.subr.mxu0 0.0
    %551 = vmatpush1.msra.mxu0 0.0
    %552 = vmatprep.subr.mxu0 0.0
    %553 = vmatpush1.msra.mxu0 0.0
    %554 = vmatprep.subr.mxu0 0.0
    %555 = vmatpush1.msra.mxu0 0.0
    %556 = vmatprep.subr.mxu0 0.0
    %557 = vmatpush1.msra.mxu0 0.0
    %558 = vmatprep.subr.mxu0 0.0
    %559 = vmatpush1.msra.mxu0 0.0
    %560 = vmatprep.subr.mxu0 0.0
    %561 = vmatpush1.msra.mxu0 0.0
    %562 = vmatprep.subr.mxu0 0.0
    %563 = vmatpush1.msra.mxu0 0.0
    %564 = vmatprep.subr.mxu0 0.0
    %565 = vmatpush1.msra.mxu0 0.0
    %566 = vmatprep.subr.mxu0 0.0
    %567 = vmatpush1.msra.mxu0 0.0
    %568 = vmatprep.subr.mxu0 0.0
    %569 = vmatpush1.msra.mxu0 0.0
    %570 = vmatprep.subr.mxu0 0.0
    %571 = vmatpush1.msra.mxu0 0.0
    %572 = vmatprep.subr.mxu0 0.0
    %573 = vmatpush1.msra.mxu0 0.0
    %574 = vmatprep.subr.mxu0 0.0
    %575 = vmatpush1.msra.mxu0 0.0
    %576 = vmatprep.subr.mxu0 0.0
    %577 = vmatpush1.msra.mxu0 0.0
    %578 = vmatprep.subr.mxu0 0.0
    %579 = vmatpush1.msra.mxu0 0.0
    %580 = vmatprep.subr.mxu0 0.0
    %581 = vmatpush1.msra.mxu0 0.0
    %582 = vmatprep.subr.mxu0 0.0
    %583 = vmatpush1.msra.mxu0 0.0
    %584 = vmatprep.subr.mxu0 0.0
    %585 = vmatpush1.msra.mxu0 0.0
    %586 = vmatprep.subr.mxu0 0.0
    %587 = vmatpush1.msra.mxu0 0.0
    %588 = vmatprep.subr.mxu0 0.0
    %589 = vmatpush1.msra.mxu0 0.0
    %590 = vmatprep.mubr.f32.mxu0 0.0
    %591 = vmatmul.mubr.f32.gmra.mrb[0].mxu0 %v515
    %v592 = vpop.f32.mrb[0].mxu0
    %v593 = vadd.f32 0.0, %v592
    %v594 = vpop.f32.mrb[0].mxu0
    %595 = vmatprep.mubr.f32.mxu0 0.0
    %596 = vmatmul.mubr.f32.gmra.mrb[0].mxu0 %v518
    %v597 = vpop.f32.mrb[0].mxu0
    %v598 = vadd.f32 0.0, %v597
    %v599 = vpop.f32.mrb[0].mxu0
    %600 = vmatprep.mubr.f32.mxu0 0.0
    %601 = vmatmul.mubr.f32.gmra.mrb[0].mxu0 %v521
    %v602 = vpop.f32.mrb[0].mxu0
    %v603 = vadd.f32 0.0, %v602
    %v604 = vpop.f32.mrb[0].mxu0
    %605 = vmatprep.mubr.f32.mxu0 0.0
    %606 = vmatmul.mubr.f32.gmra.mrb[0].mxu0 %v524
    %v607 = vpop.f32.mrb[0].mxu0
    %v608 = vadd.f32 0.0, %v607
    %v609 = vpop.f32.mrb[0].mxu0
    %610 = vdwg.mxu0
    %v611 = vadd.f32 %v479, %v593
    %v612 = vadd.f32 %v484, %v598
    %v613 = vadd.f32 %v489, %v603
    %v614 = vadd.f32 %v494, %v608
    %s615 = scalar_lea.vmem %s2, 96
    %v616 = vld [vmem:[%s615] sm:$0xff]
    %v617 = vld [vmem:[%s615 + $0x8] sm:$0xff]
    %v618 = vld [vmem:[%s615 + $0x10] sm:$0xff]
    %v619 = vld [vmem:[%s615 + $0x18] sm:$0xff]
    %620 = vrot.lane.b32.xlu0 %v277, 116
    %v621 = vpop.permute.xlu0 %620
    %622 = vrot.lane.b32.xlu0 %v278, 116
    %v623 = vpop.permute.xlu0 %622
    %624 = vrot.lane.b32.xlu0 %v279, 116
    %v625 = vpop.permute.xlu0 %624
    %626 = vrot.lane.b32.xlu0 %v280, 116
    %v627 = vpop.permute.xlu0 %626
    %v633 = vsel %vm302, %v616, 0
    %v636 = vsel %vm302, %v617, 0
    %v639 = vsel %vm302, %v618, 0
    %v642 = vsel %vm302, %v619, 0
    %644 = vmatprep.subr.mxu0 0.0
    %645 = vmatpush1.msra.mxu0 %v621
    %646 = vmatprep.subr.mxu0 0.0
    %647 = vmatpush1.msra.mxu0 %v623
    %648 = vmatprep.subr.mxu0 0.0
    %649 = vmatpush1.msra.mxu0 %v625
    %650 = vmatprep.subr.mxu0 0.0
    %651 = vmatpush1.msra.mxu0 %v627
    %652 = vmatprep.subr.mxu0 0.0
    %653 = vmatpush1.msra.mxu0 0.0
    %654 = vmatprep.subr.mxu0 0.0
    %655 = vmatpush1.msra.mxu0 0.0
    %656 = vmatprep.subr.mxu0 0.0
    %657 = vmatpush1.msra.mxu0 0.0
    %658 = vmatprep.subr.mxu0 0.0
    %659 = vmatpush1.msra.mxu0 0.0
    %660 = vmatprep.subr.mxu0 0.0
    %661 = vmatpush1.msra.mxu0 0.0
    %662 = vmatprep.subr.mxu0 0.0
    %663 = vmatpush1.msra.mxu0 0.0
    %664 = vmatprep.subr.mxu0 0.0
    %665 = vmatpush1.msra.mxu0 0.0
    %666 = vmatprep.subr.mxu0 0.0
    %667 = vmatpush1.msra.mxu0 0.0
    %668 = vmatprep.subr.mxu0 0.0
    %669 = vmatpush1.msra.mxu0 0.0
    %670 = vmatprep.subr.mxu0 0.0
    %671 = vmatpush1.msra.mxu0 0.0
    %672 = vmatprep.subr.mxu0 0.0
    %673 = vmatpush1.msra.mxu0 0.0
    %674 = vmatprep.subr.mxu0 0.0
    %675 = vmatpush1.msra.mxu0 0.0
    %676 = vmatprep.subr.mxu0 0.0
    %677 = vmatpush1.msra.mxu0 0.0
    %678 = vmatprep.subr.mxu0 0.0
    %679 = vmatpush1.msra.mxu0 0.0
    %680 = vmatprep.subr.mxu0 0.0
    %681 = vmatpush1.msra.mxu0 0.0
    %682 = vmatprep.subr.mxu0 0.0
    %683 = vmatpush1.msra.mxu0 0.0
    %684 = vmatprep.subr.mxu0 0.0
    %685 = vmatpush1.msra.mxu0 0.0
    %686 = vmatprep.subr.mxu0 0.0
    %687 = vmatpush1.msra.mxu0 0.0
    %688 = vmatprep.subr.mxu0 0.0
    %689 = vmatpush1.msra.mxu0 0.0
    %690 = vmatprep.subr.mxu0 0.0
    %691 = vmatpush1.msra.mxu0 0.0
    %692 = vmatprep.subr.mxu0 0.0
    %693 = vmatpush1.msra.mxu0 0.0
    %694 = vmatprep.subr.mxu0 0.0
    %695 = vmatpush1.msra.mxu0 0.0
    %696 = vmatprep.subr.mxu0 0.0
    %697 = vmatpush1.msra.mxu0 0.0
    %698 = vmatprep.subr.mxu0 0.0
    %699 = vmatpush1.msra.mxu0 0.0
    %700 = vmatprep.subr.mxu0 0.0
    %701 = vmatpush1.msra.mxu0 0.0
    %702 = vmatprep.subr.mxu0 0.0
    %703 = vmatpush1.msra.mxu0 0.0
    %704 = vmatprep.subr.mxu0 0.0
    %705 = vmatpush1.msra.mxu0 0.0
    %706 = vmatprep.subr.mxu0 0.0
    %707 = vmatpush1.msra.mxu0 0.0
    %708 = vmatprep.mubr.f32.mxu0 0.0
    %709 = vmatmul.mubr.f32.gmra.mrb[0].mxu0 %v633
    %v710 = vpop.f32.mrb[0].mxu0
    %v711 = vadd.f32 0.0, %v710
    %v712 = vpop.f32.mrb[0].mxu0
    %713 = vmatprep.mubr.f32.mxu0 0.0
    %714 = vmatmul.mubr.f32.gmra.mrb[0].mxu0 %v636
    %v715 = vpop.f32.mrb[0].mxu0
    %v716 = vadd.f32 0.0, %v715
    %v717 = vpop.f32.mrb[0].mxu0
    %718 = vmatprep.mubr.f32.mxu0 0.0
    %719 = vmatmul.mubr.f32.gmra.mrb[0].mxu0 %v639
    %v720 = vpop.f32.mrb[0].mxu0
    %v721 = vadd.f32 0.0, %v720
    %v722 = vpop.f32.mrb[0].mxu0
    %723 = vmatprep.mubr.f32.mxu0 0.0
    %724 = vmatmul.mubr.f32.gmra.mrb[0].mxu0 %v642
    %v725 = vpop.f32.mrb[0].mxu0
    %v726 = vadd.f32 0.0, %v725
    %v727 = vpop.f32.mrb[0].mxu0
    %728 = vdwg.mxu0
    %v729 = vadd.f32 %v611, %v711
    %v730 = vadd.f32 %v612, %v716
    %v731 = vadd.f32 %v613, %v721
    %v732 = vadd.f32 %v614, %v726
    %s733 = scalar_lea.vmem %s2, 128
    %v734 = vld [vmem:[%s733] sm:$0xff]
    %v735 = vld [vmem:[%s733 + $0x8] sm:$0xff]
    %v736 = vld [vmem:[%s733 + $0x10] sm:$0xff]
    %v737 = vld [vmem:[%s733 + $0x18] sm:$0xff]
    %738 = vrot.lane.b32.xlu0 %v277, 112
    %v739 = vpop.permute.xlu0 %738
    %740 = vrot.lane.b32.xlu0 %v278, 112
    %v741 = vpop.permute.xlu0 %740
    %742 = vrot.lane.b32.xlu0 %v279, 112
    %v743 = vpop.permute.xlu0 %742
    %744 = vrot.lane.b32.xlu0 %v280, 112
    %v745 = vpop.permute.xlu0 %744
    %v751 = vsel %vm302, %v734, 0
    %v754 = vsel %vm302, %v735, 0
    %v757 = vsel %vm302, %v736, 0
    %v760 = vsel %vm302, %v737, 0
    %762 = vmatprep.subr.mxu0 0.0
    %763 = vmatpush1.msra.mxu0 %v739
    %764 = vmatprep.subr.mxu0 0.0
    %765 = vmatpush1.msra.mxu0 %v741
    %766 = vmatprep.subr.mxu0 0.0
    %767 = vmatpush1.msra.mxu0 %v743
    %768 = vmatprep.subr.mxu0 0.0
    %769 = vmatpush1.msra.mxu0 %v745
    %770 = vmatprep.subr.mxu0 0.0
    %771 = vmatpush1.msra.mxu0 0.0
    %772 = vmatprep.subr.mxu0 0.0
    %773 = vmatpush1.msra.mxu0 0.0
    %774 = vmatprep.subr.mxu0 0.0
    %775 = vmatpush1.msra.mxu0 0.0
    %776 = vmatprep.subr.mxu0 0.0
    %777 = vmatpush1.msra.mxu0 0.0
    %778 = vmatprep.subr.mxu0 0.0
    %779 = vmatpush1.msra.mxu0 0.0
    %780 = vmatprep.subr.mxu0 0.0
    %781 = vmatpush1.msra.mxu0 0.0
    %782 = vmatprep.subr.mxu0 0.0
    %783 = vmatpush1.msra.mxu0 0.0
    %784 = vmatprep.subr.mxu0 0.0
    %785 = vmatpush1.msra.mxu0 0.0
    %786 = vmatprep.subr.mxu0 0.0
    %787 = vmatpush1.msra.mxu0 0.0
    %788 = vmatprep.subr.mxu0 0.0
    %789 = vmatpush1.msra.mxu0 0.0
    %790 = vmatprep.subr.mxu0 0.0
    %791 = vmatpush1.msra.mxu0 0.0
    %792 = vmatprep.subr.mxu0 0.0
    %793 = vmatpush1.msra.mxu0 0.0
    %794 = vmatprep.subr.mxu0 0.0
    %795 = vmatpush1.msra.mxu0 0.0
    %796 = vmatprep.subr.mxu0 0.0
    %797 = vmatpush1.msra.mxu0 0.0
    %798 = vmatprep.subr.mxu0 0.0
    %799 = vmatpush1.msra.mxu0 0.0
    %800 = vmatprep.subr.mxu0 0.0
    %801 = vmatpush1.msra.mxu0 0.0
    %802 = vmatprep.subr.mxu0 0.0
    %803 = vmatpush1.msra.mxu0 0.0
    %804 = vmatprep.subr.mxu0 0.0
    %805 = vmatpush1.msra.mxu0 0.0
    %806 = vmatprep.subr.mxu0 0.0
    %807 = vmatpush1.msra.mxu0 0.0
    %808 = vmatprep.subr.mxu0 0.0
    %809 = vmatpush1.msra.mxu0 0.0
    %810 = vmatprep.subr.mxu0 0.0
    %811 = vmatpush1.msra.mxu0 0.0
    %812 = vmatprep.subr.mxu0 0.0
    %813 = vmatpush1.msra.mxu0 0.0
    %814 = vmatprep.subr.mxu0 0.0
    %815 = vmatpush1.msra.mxu0 0.0
    %816 = vmatprep.subr.mxu0 0.0
    %817 = vmatpush1.msra.mxu0 0.0
    %818 = vmatprep.subr.mxu0 0.0
    %819 = vmatpush1.msra.mxu0 0.0
    %820 = vmatprep.subr.mxu0 0.0
    %821 = vmatpush1.msra.mxu0 0.0
    %822 = vmatprep.subr.mxu0 0.0
    %823 = vmatpush1.msra.mxu0 0.0
    %824 = vmatprep.subr.mxu0 0.0
    %825 = vmatpush1.msra.mxu0 0.0
    %826 = vmatprep.mubr.f32.mxu0 0.0
    %827 = vmatmul.mubr.f32.gmra.mrb[0].mxu0 %v751
    %v828 = vpop.f32.mrb[0].mxu0
    %v829 = vadd.f32 0.0, %v828
    %v830 = vpop.f32.mrb[0].mxu0
    %831 = vmatprep.mubr.f32.mxu0 0.0
    %832 = vmatmul.mubr.f32.gmra.mrb[0].mxu0 %v754
    %v833 = vpop.f32.mrb[0].mxu0
    %v834 = vadd.f32 0.0, %v833
    %v835 = vpop.f32.mrb[0].mxu0
    %836 = vmatprep.mubr.f32.mxu0 0.0
    %837 = vmatmul.mubr.f32.gmra.mrb[0].mxu0 %v757
    %v838 = vpop.f32.mrb[0].mxu0
    %v839 = vadd.f32 0.0, %v838
    %v840 = vpop.f32.mrb[0].mxu0
    %841 = vmatprep.mubr.f32.mxu0 0.0
    %842 = vmatmul.mubr.f32.gmra.mrb[0].mxu0 %v760
    %v843 = vpop.f32.mrb[0].mxu0
    %v844 = vadd.f32 0.0, %v843
    %v845 = vpop.f32.mrb[0].mxu0
    %846 = vdwg.mxu0
    %v847 = vadd.f32 %v729, %v829
    %v848 = vadd.f32 %v730, %v834
    %v849 = vadd.f32 %v731, %v839
    %v850 = vadd.f32 %v732, %v844
    %s851 = scalar_lea.vmem %s2, 160
    %v852 = vld [vmem:[%s851] sm:$0xff]
    %v853 = vld [vmem:[%s851 + $0x8] sm:$0xff]
    %v854 = vld [vmem:[%s851 + $0x10] sm:$0xff]
    %v855 = vld [vmem:[%s851 + $0x18] sm:$0xff]
    %856 = vrot.lane.b32.xlu0 %v277, 108
    %v857 = vpop.permute.xlu0 %856
    %858 = vrot.lane.b32.xlu0 %v278, 108
    %v859 = vpop.permute.xlu0 %858
    %860 = vrot.lane.b32.xlu0 %v279, 108
    %v861 = vpop.permute.xlu0 %860
    %862 = vrot.lane.b32.xlu0 %v280, 108
    %v863 = vpop.permute.xlu0 %862
    %v869 = vsel %vm302, %v852, 0
    %v872 = vsel %vm302, %v853, 0
    %v875 = vsel %vm302, %v854, 0
    %v878 = vsel %vm302, %v855, 0
    %880 = vmatprep.subr.mxu0 0.0
    %881 = vmatpush1.msra.mxu0 %v857
    %882 = vmatprep.subr.mxu0 0.0
    %883 = vmatpush1.msra.mxu0 %v859
    %884 = vmatprep.subr.mxu0 0.0
    %885 = vmatpush1.msra.mxu0 %v861
    %886 = vmatprep.subr.mxu0 0.0
    %887 = vmatpush1.msra.mxu0 %v863
    %888 = vmatprep.subr.mxu0 0.0
    %889 = vmatpush1.msra.mxu0 0.0
    %890 = vmatprep.subr.mxu0 0.0
    %891 = vmatpush1.msra.mxu0 0.0
    %892 = vmatprep.subr.mxu0 0.0
    %893 = vmatpush1.msra.mxu0 0.0
    %894 = vmatprep.subr.mxu0 0.0
    %895 = vmatpush1.msra.mxu0 0.0
    %896 = vmatprep.subr.mxu0 0.0
    %897 = vmatpush1.msra.mxu0 0.0
    %898 = vmatprep.subr.mxu0 0.0
    %899 = vmatpush1.msra.mxu0 0.0
    %900 = vmatprep.subr.mxu0 0.0
    %901 = vmatpush1.msra.mxu0 0.0
    %902 = vmatprep.subr.mxu0 0.0
    %903 = vmatpush1.msra.mxu0 0.0
    %904 = vmatprep.subr.mxu0 0.0
    %905 = vmatpush1.msra.mxu0 0.0
    %906 = vmatprep.subr.mxu0 0.0
    %907 = vmatpush1.msra.mxu0 0.0
    %908 = vmatprep.subr.mxu0 0.0
    %909 = vmatpush1.msra.mxu0 0.0
    %910 = vmatprep.subr.mxu0 0.0
    %911 = vmatpush1.msra.mxu0 0.0
    %912 = vmatprep.subr.mxu0 0.0
    %913 = vmatpush1.msra.mxu0 0.0
    %914 = vmatprep.subr.mxu0 0.0
    %915 = vmatpush1.msra.mxu0 0.0
    %916 = vmatprep.subr.mxu0 0.0
    %917 = vmatpush1.msra.mxu0 0.0
    %918 = vmatprep.subr.mxu0 0.0
    %919 = vmatpush1.msra.mxu0 0.0
    %920 = vmatprep.subr.mxu0 0.0
    %921 = vmatpush1.msra.mxu0 0.0
    %922 = vmatprep.subr.mxu0 0.0
    %923 = vmatpush1.msra.mxu0 0.0
    %924 = vmatprep.subr.mxu0 0.0
    %925 = vmatpush1.msra.mxu0 0.0
    %926 = vmatprep.subr.mxu0 0.0
    %927 = vmatpush1.msra.mxu0 0.0
    %928 = vmatprep.subr.mxu0 0.0
    %929 = vmatpush1.msra.mxu0 0.0
    %930 = vmatprep.subr.mxu0 0.0
    %931 = vmatpush1.msra.mxu0 0.0
    %932 = vmatprep.subr.mxu0 0.0
    %933 = vmatpush1.msra.mxu0 0.0
    %934 = vmatprep.subr.mxu0 0.0
    %935 = vmatpush1.msra.mxu0 0.0
    %936 = vmatprep.subr.mxu0 0.0
    %937 = vmatpush1.msra.mxu0 0.0
    %938 = vmatprep.subr.mxu0 0.0
    %939 = vmatpush1.msra.mxu0 0.0
    %940 = vmatprep.subr.mxu0 0.0
    %941 = vmatpush1.msra.mxu0 0.0
    %942 = vmatprep.subr.mxu0 0.0
    %943 = vmatpush1.msra.mxu0 0.0
    %944 = vmatprep.mubr.f32.mxu0 0.0
    %945 = vmatmul.mubr.f32.gmra.mrb[0].mxu0 %v869
    %v946 = vpop.f32.mrb[0].mxu0
    %v947 = vadd.f32 0.0, %v946
    %v948 = vpop.f32.mrb[0].mxu0
    %949 = vmatprep.mubr.f32.mxu0 0.0
    %950 = vmatmul.mubr.f32.gmra.mrb[0].mxu0 %v872
    %v951 = vpop.f32.mrb[0].mxu0
    %v952 = vadd.f32 0.0, %v951
    %v953 = vpop.f32.mrb[0].mxu0
    %954 = vmatprep.mubr.f32.mxu0 0.0
    %955 = vmatmul.mubr.f32.gmra.mrb[0].mxu0 %v875
    %v956 = vpop.f32.mrb[0].mxu0
    %v957 = vadd.f32 0.0, %v956
    %v958 = vpop.f32.mrb[0].mxu0
    %959 = vmatprep.mubr.f32.mxu0 0.0
    %960 = vmatmul.mubr.f32.gmra.mrb[0].mxu0 %v878
    %v961 = vpop.f32.mrb[0].mxu0
    %v962 = vadd.f32 0.0, %v961
    %v963 = vpop.f32.mrb[0].mxu0
    %964 = vdwg.mxu0
    %v965 = vadd.f32 %v847, %v947
    %v966 = vadd.f32 %v848, %v952
    %v967 = vadd.f32 %v849, %v957
    %v968 = vadd.f32 %v850, %v962
    %s969 = scalar_lea.vmem %s2, 192
    %v970 = vld [vmem:[%s969] sm:$0xff]
    %v971 = vld [vmem:[%s969 + $0x8] sm:$0xff]
    %v972 = vld [vmem:[%s969 + $0x10] sm:$0xff]
    %v973 = vld [vmem:[%s969 + $0x18] sm:$0xff]
    %974 = vrot.lane.b32.xlu0 %v277, 104
    %v975 = vpop.permute.xlu0 %974
    %976 = vrot.lane.b32.xlu0 %v278, 104
    %v977 = vpop.permute.xlu0 %976
    %978 = vrot.lane.b32.xlu0 %v279, 104
    %v979 = vpop.permute.xlu0 %978
    %980 = vrot.lane.b32.xlu0 %v280, 104
    %v981 = vpop.permute.xlu0 %980
    %v987 = vsel %vm302, %v970, 0
    %v990 = vsel %vm302, %v971, 0
    %v993 = vsel %vm302, %v972, 0
    %v996 = vsel %vm302, %v973, 0
    %998 = vmatprep.subr.mxu0 0.0
    %999 = vmatpush1.msra.mxu0 %v975
    %1000 = vmatprep.subr.mxu0 0.0
    %1001 = vmatpush1.msra.mxu0 %v977
    %1002 = vmatprep.subr.mxu0 0.0
    %1003 = vmatpush1.msra.mxu0 %v979
    %1004 = vmatprep.subr.mxu0 0.0
    %1005 = vmatpush1.msra.mxu0 %v981
    %1006 = vmatprep.subr.mxu0 0.0
    %1007 = vmatpush1.msra.mxu0 0.0
    %1008 = vmatprep.subr.mxu0 0.0
    %1009 = vmatpush1.msra.mxu0 0.0
    %1010 = vmatprep.subr.mxu0 0.0
    %1011 = vmatpush1.msra.mxu0 0.0
    %1012 = vmatprep.subr.mxu0 0.0
    %1013 = vmatpush1.msra.mxu0 0.0
    %1014 = vmatprep.subr.mxu0 0.0
    %1015 = vmatpush1.msra.mxu0 0.0
    %1016 = vmatprep.subr.mxu0 0.0
    %1017 = vmatpush1.msra.mxu0 0.0
    %1018 = vmatprep.subr.mxu0 0.0
    %1019 = vmatpush1.msra.mxu0 0.0
    %1020 = vmatprep.subr.mxu0 0.0
    %1021 = vmatpush1.msra.mxu0 0.0
    %1022 = vmatprep.subr.mxu0 0.0
    %1023 = vmatpush1.msra.mxu0 0.0
    %1024 = vmatprep.subr.mxu0 0.0
    %1025 = vmatpush1.msra.mxu0 0.0
    %1026 = vmatprep.subr.mxu0 0.0
    %1027 = vmatpush1.msra.mxu0 0.0
    %1028 = vmatprep.subr.mxu0 0.0
    %1029 = vmatpush1.msra.mxu0 0.0
    %1030 = vmatprep.subr.mxu0 0.0
    %1031 = vmatpush1.msra.mxu0 0.0
    %1032 = vmatprep.subr.mxu0 0.0
    %1033 = vmatpush1.msra.mxu0 0.0
    %1034 = vmatprep.subr.mxu0 0.0
    %1035 = vmatpush1.msra.mxu0 0.0
    %1036 = vmatprep.subr.mxu0 0.0
    %1037 = vmatpush1.msra.mxu0 0.0
    %1038 = vmatprep.subr.mxu0 0.0
    %1039 = vmatpush1.msra.mxu0 0.0
    %1040 = vmatprep.subr.mxu0 0.0
    %1041 = vmatpush1.msra.mxu0 0.0
    %1042 = vmatprep.subr.mxu0 0.0
    %1043 = vmatpush1.msra.mxu0 0.0
    %1044 = vmatprep.subr.mxu0 0.0
    %1045 = vmatpush1.msra.mxu0 0.0
    %1046 = vmatprep.subr.mxu0 0.0
    %1047 = vmatpush1.msra.mxu0 0.0
    %1048 = vmatprep.subr.mxu0 0.0
    %1049 = vmatpush1.msra.mxu0 0.0
    %1050 = vmatprep.subr.mxu0 0.0
    %1051 = vmatpush1.msra.mxu0 0.0
    %1052 = vmatprep.subr.mxu0 0.0
    %1053 = vmatpush1.msra.mxu0 0.0
    %1054 = vmatprep.subr.mxu0 0.0
    %1055 = vmatpush1.msra.mxu0 0.0
    %1056 = vmatprep.subr.mxu0 0.0
    %1057 = vmatpush1.msra.mxu0 0.0
    %1058 = vmatprep.subr.mxu0 0.0
    %1059 = vmatpush1.msra.mxu0 0.0
    %1060 = vmatprep.subr.mxu0 0.0
    %1061 = vmatpush1.msra.mxu0 0.0
    %1062 = vmatprep.mubr.f32.mxu0 0.0
    %1063 = vmatmul.mubr.f32.gmra.mrb[0].mxu0 %v987
    %v1064 = vpop.f32.mrb[0].mxu0
    %v1065 = vadd.f32 0.0, %v1064
    %v1066 = vpop.f32.mrb[0].mxu0
    %1067 = vmatprep.mubr.f32.mxu0 0.0
    %1068 = vmatmul.mubr.f32.gmra.mrb[0].mxu0 %v990
    %v1069 = vpop.f32.mrb[0].mxu0
    %v1070 = vadd.f32 0.0, %v1069
    %v1071 = vpop.f32.mrb[0].mxu0
    %1072 = vmatprep.mubr.f32.mxu0 0.0
    %1073 = vmatmul.mubr.f32.gmra.mrb[0].mxu0 %v993
    %v1074 = vpop.f32.mrb[0].mxu0
    %v1075 = vadd.f32 0.0, %v1074
    %v1076 = vpop.f32.mrb[0].mxu0
    %1077 = vmatprep.mubr.f32.mxu0 0.0
    %1078 = vmatmul.mubr.f32.gmra.mrb[0].mxu0 %v996
    %v1079 = vpop.f32.mrb[0].mxu0
    %v1080 = vadd.f32 0.0, %v1079
    %v1081 = vpop.f32.mrb[0].mxu0
    %1082 = vdwg.mxu0
    %v1083 = vadd.f32 %v965, %v1065
    %v1084 = vadd.f32 %v966, %v1070
    %v1085 = vadd.f32 %v967, %v1075
    %v1086 = vadd.f32 %v968, %v1080
    %s1087 = scalar_lea.vmem %s2, 224
    %v1088 = vld [vmem:[%s1087] sm:$0xff]
    %v1089 = vld [vmem:[%s1087 + $0x8] sm:$0xff]
    %v1090 = vld [vmem:[%s1087 + $0x10] sm:$0xff]
    %v1091 = vld [vmem:[%s1087 + $0x18] sm:$0xff]
    %1092 = vrot.lane.b32.xlu0 %v277, 100
    %v1093 = vpop.permute.xlu0 %1092
    %1094 = vrot.lane.b32.xlu0 %v278, 100
    %v1095 = vpop.permute.xlu0 %1094
    %1096 = vrot.lane.b32.xlu0 %v279, 100
    %v1097 = vpop.permute.xlu0 %1096
    %1098 = vrot.lane.b32.xlu0 %v280, 100
    %v1099 = vpop.permute.xlu0 %1098
    %v1105 = vsel %vm302, %v1088, 0
    %v1108 = vsel %vm302, %v1089, 0
    %v1111 = vsel %vm302, %v1090, 0
    %v1114 = vsel %vm302, %v1091, 0
    %1116 = vmatprep.subr.mxu0 0.0
    %1117 = vmatpush1.msra.mxu0 %v1093
    %1118 = vmatprep.subr.mxu0 0.0
    %1119 = vmatpush1.msra.mxu0 %v1095
    %1120 = vmatprep.subr.mxu0 0.0
    %1121 = vmatpush1.msra.mxu0 %v1097
    %1122 = vmatprep.subr.mxu0 0.0
    %1123 = vmatpush1.msra.mxu0 %v1099
    %1124 = vmatprep.subr.mxu0 0.0
    %1125 = vmatpush1.msra.mxu0 0.0
    %1126 = vmatprep.subr.mxu0 0.0
    %1127 = vmatpush1.msra.mxu0 0.0
    %1128 = vmatprep.subr.mxu0 0.0
    %1129 = vmatpush1.msra.mxu0 0.0
    %1130 = vmatprep.subr.mxu0 0.0
    %1131 = vmatpush1.msra.mxu0 0.0
    %1132 = vmatprep.subr.mxu0 0.0
    %1133 = vmatpush1.msra.mxu0 0.0
    %1134 = vmatprep.subr.mxu0 0.0
    %1135 = vmatpush1.msra.mxu0 0.0
    %1136 = vmatprep.subr.mxu0 0.0
    %1137 = vmatpush1.msra.mxu0 0.0
    %1138 = vmatprep.subr.mxu0 0.0
    %1139 = vmatpush1.msra.mxu0 0.0
    %1140 = vmatprep.subr.mxu0 0.0
    %1141 = vmatpush1.msra.mxu0 0.0
    %1142 = vmatprep.subr.mxu0 0.0
    %1143 = vmatpush1.msra.mxu0 0.0
    %1144 = vmatprep.subr.mxu0 0.0
    %1145 = vmatpush1.msra.mxu0 0.0
    %1146 = vmatprep.subr.mxu0 0.0
    %1147 = vmatpush1.msra.mxu0 0.0
    %1148 = vmatprep.subr.mxu0 0.0
    %1149 = vmatpush1.msra.mxu0 0.0
    %1150 = vmatprep.subr.mxu0 0.0
    %1151 = vmatpush1.msra.mxu0 0.0
    %1152 = vmatprep.subr.mxu0 0.0
    %1153 = vmatpush1.msra.mxu0 0.0
    %1154 = vmatprep.subr.mxu0 0.0
    %1155 = vmatpush1.msra.mxu0 0.0
    %1156 = vmatprep.subr.mxu0 0.0
    %1157 = vmatpush1.msra.mxu0 0.0
    %1158 = vmatprep.subr.mxu0 0.0
    %1159 = vmatpush1.msra.mxu0 0.0
    %1160 = vmatprep.subr.mxu0 0.0
    %1161 = vmatpush1.msra.mxu0 0.0
    %1162 = vmatprep.subr.mxu0 0.0
    %1163 = vmatpush1.msra.mxu0 0.0
    %1164 = vmatprep.subr.mxu0 0.0
    %1165 = vmatpush1.msra.mxu0 0.0
    %1166 = vmatprep.subr.mxu0 0.0
    %1167 = vmatpush1.msra.mxu0 0.0
    %1168 = vmatprep.subr.mxu0 0.0
    %1169 = vmatpush1.msra.mxu0 0.0
    %1170 = vmatprep.subr.mxu0 0.0
    %1171 = vmatpush1.msra.mxu0 0.0
    %1172 = vmatprep.subr.mxu0 0.0
    %1173 = vmatpush1.msra.mxu0 0.0
    %1174 = vmatprep.subr.mxu0 0.0
    %1175 = vmatpush1.msra.mxu0 0.0
    %1176 = vmatprep.subr.mxu0 0.0
    %1177 = vmatpush1.msra.mxu0 0.0
    %1178 = vmatprep.subr.mxu0 0.0
    %1179 = vmatpush1.msra.mxu0 0.0
    %1180 = vmatprep.mubr.f32.mxu0 0.0
    %1181 = vmatmul.mubr.f32.gmra.mrb[0].mxu0 %v1105
    %v1182 = vpop.f32.mrb[0].mxu0
    %v1183 = vadd.f32 0.0, %v1182
    %v1184 = vpop.f32.mrb[0].mxu0
    %1185 = vmatprep.mubr.f32.mxu0 0.0
    %1186 = vmatmul.mubr.f32.gmra.mrb[0].mxu0 %v1108
    %v1187 = vpop.f32.mrb[0].mxu0
    %v1188 = vadd.f32 0.0, %v1187
    %v1189 = vpop.f32.mrb[0].mxu0
    %1190 = vmatprep.mubr.f32.mxu0 0.0
    %1191 = vmatmul.mubr.f32.gmra.mrb[0].mxu0 %v1111
    %v1192 = vpop.f32.mrb[0].mxu0
    %v1193 = vadd.f32 0.0, %v1192
    %v1194 = vpop.f32.mrb[0].mxu0
    %1195 = vmatprep.mubr.f32.mxu0 0.0
    %1196 = vmatmul.mubr.f32.gmra.mrb[0].mxu0 %v1114
    %v1197 = vpop.f32.mrb[0].mxu0
    %v1198 = vadd.f32 0.0, %v1197
    %v1199 = vpop.f32.mrb[0].mxu0
    %1200 = vdwg.mxu0
    %v1201 = vadd.f32 %v1083, %v1183
    %v1202 = vadd.f32 %v1084, %v1188
    %v1203 = vadd.f32 %v1085, %v1193
    %v1204 = vadd.f32 %v1086, %v1198
    %s1205 = scalar_lea.vmem %s2, 256
    %v1206 = vld [vmem:[%s1205] sm:$0xff]
    %v1207 = vld [vmem:[%s1205 + $0x8] sm:$0xff]
    %v1208 = vld [vmem:[%s1205 + $0x10] sm:$0xff]
    %v1209 = vld [vmem:[%s1205 + $0x18] sm:$0xff]
    %1210 = vrot.lane.b32.xlu0 %v277, 96
    %v1211 = vpop.permute.xlu0 %1210
    %1212 = vrot.lane.b32.xlu0 %v278, 96
    %v1213 = vpop.permute.xlu0 %1212
    %1214 = vrot.lane.b32.xlu0 %v279, 96
    %v1215 = vpop.permute.xlu0 %1214
    %1216 = vrot.lane.b32.xlu0 %v280, 96
    %v1217 = vpop.permute.xlu0 %1216
    %v1223 = vsel %vm302, %v1206, 0
    %v1226 = vsel %vm302, %v1207, 0
    %v1229 = vsel %vm302, %v1208, 0
    %v1232 = vsel %vm302, %v1209, 0
    %1234 = vmatprep.subr.mxu0 0.0
    %1235 = vmatpush1.msra.mxu0 %v1211
    %1236 = vmatprep.subr.mxu0 0.0
    %1237 = vmatpush1.msra.mxu0 %v1213
    %1238 = vmatprep.subr.mxu0 0.0
    %1239 = vmatpush1.msra.mxu0 %v1215
    %1240 = vmatprep.subr.mxu0 0.0
    %1241 = vmatpush1.msra.mxu0 %v1217
    %1242 = vmatprep.subr.mxu0 0.0
    %1243 = vmatpush1.msra.mxu0 0.0
    %1244 = vmatprep.subr.mxu0 0.0
    %1245 = vmatpush1.msra.mxu0 0.0
    %1246 = vmatprep.subr.mxu0 0.0
    %1247 = vmatpush1.msra.mxu0 0.0
    %1248 = vmatprep.subr.mxu0 0.0
    %1249 = vmatpush1.msra.mxu0 0.0
    %1250 = vmatprep.subr.mxu0 0.0
    %1251 = vmatpush1.msra.mxu0 0.0
    %1252 = vmatprep.subr.mxu0 0.0
    %1253 = vmatpush1.msra.mxu0 0.0
    %1254 = vmatprep.subr.mxu0 0.0
    %1255 = vmatpush1.msra.mxu0 0.0
    %1256 = vmatprep.subr.mxu0 0.0
    %1257 = vmatpush1.msra.mxu0 0.0
    %1258 = vmatprep.subr.mxu0 0.0
    %1259 = vmatpush1.msra.mxu0 0.0
    %1260 = vmatprep.subr.mxu0 0.0
    %1261 = vmatpush1.msra.mxu0 0.0
    %1262 = vmatprep.subr.mxu0 0.0
    %1263 = vmatpush1.msra.mxu0 0.0
    %1264 = vmatprep.subr.mxu0 0.0
    %1265 = vmatpush1.msra.mxu0 0.0
    %1266 = vmatprep.subr.mxu0 0.0
    %1267 = vmatpush1.msra.mxu0 0.0
    %1268 = vmatprep.subr.mxu0 0.0
    %1269 = vmatpush1.msra.mxu0 0.0
    %1270 = vmatprep.subr.mxu0 0.0
    %1271 = vmatpush1.msra.mxu0 0.0
    %1272 = vmatprep.subr.mxu0 0.0
    %1273 = vmatpush1.msra.mxu0 0.0
    %1274 = vmatprep.subr.mxu0 0.0
    %1275 = vmatpush1.msra.mxu0 0.0
    %1276 = vmatprep.subr.mxu0 0.0
    %1277 = vmatpush1.msra.mxu0 0.0
    %1278 = vmatprep.subr.mxu0 0.0
    %1279 = vmatpush1.msra.mxu0 0.0
    %1280 = vmatprep.subr.mxu0 0.0
    %1281 = vmatpush1.msra.mxu0 0.0
    %1282 = vmatprep.subr.mxu0 0.0
    %1283 = vmatpush1.msra.mxu0 0.0
    %1284 = vmatprep.subr.mxu0 0.0
    %1285 = vmatpush1.msra.mxu0 0.0
    %1286 = vmatprep.subr.mxu0 0.0
    %1287 = vmatpush1.msra.mxu0 0.0
    %1288 = vmatprep.subr.mxu0 0.0
    %1289 = vmatpush1.msra.mxu0 0.0
    %1290 = vmatprep.subr.mxu0 0.0
    %1291 = vmatpush1.msra.mxu0 0.0
    %1292 = vmatprep.subr.mxu0 0.0
    %1293 = vmatpush1.msra.mxu0 0.0
    %1294 = vmatprep.subr.mxu0 0.0
    %1295 = vmatpush1.msra.mxu0 0.0
    %1296 = vmatprep.subr.mxu0 0.0
    %1297 = vmatpush1.msra.mxu0 0.0
    %1298 = vmatprep.mubr.f32.mxu0 0.0
    %1299 = vmatmul.mubr.f32.gmra.mrb[0].mxu0 %v1223
    %v1300 = vpop.f32.mrb[0].mxu0
    %v1301 = vadd.f32 0.0, %v1300
    %v1302 = vpop.f32.mrb[0].mxu0
    %1303 = vmatprep.mubr.f32.mxu0 0.0
    %1304 = vmatmul.mubr.f32.gmra.mrb[0].mxu0 %v1226
    %v1305 = vpop.f32.mrb[0].mxu0
    %v1306 = vadd.f32 0.0, %v1305
    %v1307 = vpop.f32.mrb[0].mxu0
    %1308 = vmatprep.mubr.f32.mxu0 0.0
    %1309 = vmatmul.mubr.f32.gmra.mrb[0].mxu0 %v1229
    %v1310 = vpop.f32.mrb[0].mxu0
    %v1311 = vadd.f32 0.0, %v1310
    %v1312 = vpop.f32.mrb[0].mxu0
    %1313 = vmatprep.mubr.f32.mxu0 0.0
    %1314 = vmatmul.mubr.f32.gmra.mrb[0].mxu0 %v1232
    %v1315 = vpop.f32.mrb[0].mxu0
    %v1316 = vadd.f32 0.0, %v1315
    %v1317 = vpop.f32.mrb[0].mxu0
    %1318 = vdwg.mxu0
    %v1319 = vadd.f32 %v1201, %v1301
    %v1320 = vadd.f32 %v1202, %v1306
    %v1321 = vadd.f32 %v1203, %v1311
    %v1322 = vadd.f32 %v1204, %v1316
    %s1323 = scalar_lea.vmem %s2, 288
    %v1324 = vld [vmem:[%s1323] sm:$0xff]
    %v1325 = vld [vmem:[%s1323 + $0x8] sm:$0xff]
    %v1326 = vld [vmem:[%s1323 + $0x10] sm:$0xff]
    %v1327 = vld [vmem:[%s1323 + $0x18] sm:$0xff]
    %1328 = vrot.lane.b32.xlu0 %v277, 92
    %v1329 = vpop.permute.xlu0 %1328
    %1330 = vrot.lane.b32.xlu0 %v278, 92
    %v1331 = vpop.permute.xlu0 %1330
    %1332 = vrot.lane.b32.xlu0 %v279, 92
    %v1333 = vpop.permute.xlu0 %1332
    %1334 = vrot.lane.b32.xlu0 %v280, 92
    %v1335 = vpop.permute.xlu0 %1334
    %v1341 = vsel %vm302, %v1324, 0
    %v1344 = vsel %vm302, %v1325, 0
    %v1347 = vsel %vm302, %v1326, 0
    %v1350 = vsel %vm302, %v1327, 0
    %1352 = vmatprep.subr.mxu0 0.0
    %1353 = vmatpush1.msra.mxu0 %v1329
    %1354 = vmatprep.subr.mxu0 0.0
    %1355 = vmatpush1.msra.mxu0 %v1331
    %1356 = vmatprep.subr.mxu0 0.0
    %1357 = vmatpush1.msra.mxu0 %v1333
    %1358 = vmatprep.subr.mxu0 0.0
    %1359 = vmatpush1.msra.mxu0 %v1335
    %1360 = vmatprep.subr.mxu0 0.0
    %1361 = vmatpush1.msra.mxu0 0.0
    %1362 = vmatprep.subr.mxu0 0.0
    %1363 = vmatpush1.msra.mxu0 0.0
    %1364 = vmatprep.subr.mxu0 0.0
    %1365 = vmatpush1.msra.mxu0 0.0
    %1366 = vmatprep.subr.mxu0 0.0
    %1367 = vmatpush1.msra.mxu0 0.0
    %1368 = vmatprep.subr.mxu0 0.0
    %1369 = vmatpush1.msra.mxu0 0.0
    %1370 = vmatprep.subr.mxu0 0.0
    %1371 = vmatpush1.msra.mxu0 0.0
    %1372 = vmatprep.subr.mxu0 0.0
    %1373 = vmatpush1.msra.mxu0 0.0
    %1374 = vmatprep.subr.mxu0 0.0
    %1375 = vmatpush1.msra.mxu0 0.0
    %1376 = vmatprep.subr.mxu0 0.0
    %1377 = vmatpush1.msra.mxu0 0.0
    %1378 = vmatprep.subr.mxu0 0.0
    %1379 = vmatpush1.msra.mxu0 0.0
    %1380 = vmatprep.subr.mxu0 0.0
    %1381 = vmatpush1.msra.mxu0 0.0
    %1382 = vmatprep.subr.mxu0 0.0
    %1383 = vmatpush1.msra.mxu0 0.0
    %1384 = vmatprep.subr.mxu0 0.0
    %1385 = vmatpush1.msra.mxu0 0.0
    %1386 = vmatprep.subr.mxu0 0.0
    %1387 = vmatpush1.msra.mxu0 0.0
    %1388 = vmatprep.subr.mxu0 0.0
    %1389 = vmatpush1.msra.mxu0 0.0
    %1390 = vmatprep.subr.mxu0 0.0
    %1391 = vmatpush1.msra.mxu0 0.0
    %1392 = vmatprep.subr.mxu0 0.0
    %1393 = vmatpush1.msra.mxu0 0.0
    %1394 = vmatprep.subr.mxu0 0.0
    %1395 = vmatpush1.msra.mxu0 0.0
    %1396 = vmatprep.subr.mxu0 0.0
    %1397 = vmatpush1.msra.mxu0 0.0
    %1398 = vmatprep.subr.mxu0 0.0
    %1399 = vmatpush1.msra.mxu0 0.0
    %1400 = vmatprep.subr.mxu0 0.0
    %1401 = vmatpush1.msra.mxu0 0.0
    %1402 = vmatprep.subr.mxu0 0.0
    %1403 = vmatpush1.msra.mxu0 0.0
    %1404 = vmatprep.subr.mxu0 0.0
    %1405 = vmatpush1.msra.mxu0 0.0
    %1406 = vmatprep.subr.mxu0 0.0
    %1407 = vmatpush1.msra.mxu0 0.0
    %1408 = vmatprep.subr.mxu0 0.0
    %1409 = vmatpush1.msra.mxu0 0.0
    %1410 = vmatprep.subr.mxu0 0.0
    %1411 = vmatpush1.msra.mxu0 0.0
    %1412 = vmatprep.subr.mxu0 0.0
    %1413 = vmatpush1.msra.mxu0 0.0
    %1414 = vmatprep.subr.mxu0 0.0
    %1415 = vmatpush1.msra.mxu0 0.0
    %1416 = vmatprep.mubr.f32.mxu0 0.0
    %1417 = vmatmul.mubr.f32.gmra.mrb[0].mxu0 %v1341
    %v1418 = vpop.f32.mrb[0].mxu0
    %v1419 = vadd.f32 0.0, %v1418
    %v1420 = vpop.f32.mrb[0].mxu0
    %1421 = vmatprep.mubr.f32.mxu0 0.0
    %1422 = vmatmul.mubr.f32.gmra.mrb[0].mxu0 %v1344
    %v1423 = vpop.f32.mrb[0].mxu0
    %v1424 = vadd.f32 0.0, %v1423
    %v1425 = vpop.f32.mrb[0].mxu0
    %1426 = vmatprep.mubr.f32.mxu0 0.0
    %1427 = vmatmul.mubr.f32.gmra.mrb[0].mxu0 %v1347
    %v1428 = vpop.f32.mrb[0].mxu0
    %v1429 = vadd.f32 0.0, %v1428
    %v1430 = vpop.f32.mrb[0].mxu0
    %1431 = vmatprep.mubr.f32.mxu0 0.0
    %1432 = vmatmul.mubr.f32.gmra.mrb[0].mxu0 %v1350
    %v1433 = vpop.f32.mrb[0].mxu0
    %v1434 = vadd.f32 0.0, %v1433
    %v1435 = vpop.f32.mrb[0].mxu0
    %1436 = vdwg.mxu0
    %v1437 = vadd.f32 %v1319, %v1419
    %v1438 = vadd.f32 %v1320, %v1424
    %v1439 = vadd.f32 %v1321, %v1429
    %v1440 = vadd.f32 %v1322, %v1434
    %s1441 = scalar_lea.vmem %s2, 320
    %v1442 = vld [vmem:[%s1441] sm:$0xff]
    %v1443 = vld [vmem:[%s1441 + $0x8] sm:$0xff]
    %v1444 = vld [vmem:[%s1441 + $0x10] sm:$0xff]
    %v1445 = vld [vmem:[%s1441 + $0x18] sm:$0xff]
    %1446 = vrot.lane.b32.xlu0 %v277, 88
    %v1447 = vpop.permute.xlu0 %1446
    %1448 = vrot.lane.b32.xlu0 %v278, 88
    %v1449 = vpop.permute.xlu0 %1448
    %1450 = vrot.lane.b32.xlu0 %v279, 88
    %v1451 = vpop.permute.xlu0 %1450
    %1452 = vrot.lane.b32.xlu0 %v280, 88
    %v1453 = vpop.permute.xlu0 %1452
    %v1459 = vsel %vm302, %v1442, 0
    %v1462 = vsel %vm302, %v1443, 0
    %v1465 = vsel %vm302, %v1444, 0
    %v1468 = vsel %vm302, %v1445, 0
    %1470 = vmatprep.subr.mxu0 0.0
    %1471 = vmatpush1.msra.mxu0 %v1447
    %1472 = vmatprep.subr.mxu0 0.0
    %1473 = vmatpush1.msra.mxu0 %v1449
    %1474 = vmatprep.subr.mxu0 0.0
    %1475 = vmatpush1.msra.mxu0 %v1451
    %1476 = vmatprep.subr.mxu0 0.0
    %1477 = vmatpush1.msra.mxu0 %v1453
    %1478 = vmatprep.subr.mxu0 0.0
    %1479 = vmatpush1.msra.mxu0 0.0
    %1480 = vmatprep.subr.mxu0 0.0
    %1481 = vmatpush1.msra.mxu0 0.0
    %1482 = vmatprep.subr.mxu0 0.0
    %1483 = vmatpush1.msra.mxu0 0.0
    %1484 = vmatprep.subr.mxu0 0.0
    %1485 = vmatpush1.msra.mxu0 0.0
    %1486 = vmatprep.subr.mxu0 0.0
    %1487 = vmatpush1.msra.mxu0 0.0
    %1488 = vmatprep.subr.mxu0 0.0
    %1489 = vmatpush1.msra.mxu0 0.0
    %1490 = vmatprep.subr.mxu0 0.0
    %1491 = vmatpush1.msra.mxu0 0.0
    %1492 = vmatprep.subr.mxu0 0.0
    %1493 = vmatpush1.msra.mxu0 0.0
    %1494 = vmatprep.subr.mxu0 0.0
    %1495 = vmatpush1.msra.mxu0 0.0
    %1496 = vmatprep.subr.mxu0 0.0
    %1497 = vmatpush1.msra.mxu0 0.0
    %1498 = vmatprep.subr.mxu0 0.0
    %1499 = vmatpush1.msra.mxu0 0.0
    %1500 = vmatprep.subr.mxu0 0.0
    %1501 = vmatpush1.msra.mxu0 0.0
    %1502 = vmatprep.subr.mxu0 0.0
    %1503 = vmatpush1.msra.mxu0 0.0
    %1504 = vmatprep.subr.mxu0 0.0
    %1505 = vmatpush1.msra.mxu0 0.0
    %1506 = vmatprep.subr.mxu0 0.0
    %1507 = vmatpush1.msra.mxu0 0.0
    %1508 = vmatprep.subr.mxu0 0.0
    %1509 = vmatpush1.msra.mxu0 0.0
    %1510 = vmatprep.subr.mxu0 0.0
    %1511 = vmatpush1.msra.mxu0 0.0
    %1512 = vmatprep.subr.mxu0 0.0
    %1513 = vmatpush1.msra.mxu0 0.0
    %1514 = vmatprep.subr.mxu0 0.0
    %1515 = vmatpush1.msra.mxu0 0.0
    %1516 = vmatprep.subr.mxu0 0.0
    %1517 = vmatpush1.msra.mxu0 0.0
    %1518 = vmatprep.subr.mxu0 0.0
    %1519 = vmatpush1.msra.mxu0 0.0
    %1520 = vmatprep.subr.mxu0 0.0
    %1521 = vmatpush1.msra.mxu0 0.0
    %1522 = vmatprep.subr.mxu0 0.0
    %1523 = vmatpush1.msra.mxu0 0.0
    %1524 = vmatprep.subr.mxu0 0.0
    %1525 = vmatpush1.msra.mxu0 0.0
    %1526 = vmatprep.subr.mxu0 0.0
    %1527 = vmatpush1.msra.mxu0 0.0
    %1528 = vmatprep.subr.mxu0 0.0
    %1529 = vmatpush1.msra.mxu0 0.0
    %1530 = vmatprep.subr.mxu0 0.0
    %1531 = vmatpush1.msra.mxu0 0.0
    %1532 = vmatprep.subr.mxu0 0.0
    %1533 = vmatpush1.msra.mxu0 0.0
    %1534 = vmatprep.mubr.f32.mxu0 0.0
    %1535 = vmatmul.mubr.f32.gmra.mrb[0].mxu0 %v1459
    %v1536 = vpop.f32.mrb[0].mxu0
    %v1537 = vadd.f32 0.0, %v1536
    %v1538 = vpop.f32.mrb[0].mxu0
    %1539 = vmatprep.mubr.f32.mxu0 0.0
    %1540 = vmatmul.mubr.f32.gmra.mrb[0].mxu0 %v1462
    %v1541 = vpop.f32.mrb[0].mxu0
    %v1542 = vadd.f32 0.0, %v1541
    %v1543 = vpop.f32.mrb[0].mxu0
    %1544 = vmatprep.mubr.f32.mxu0 0.0
    %1545 = vmatmul.mubr.f32.gmra.mrb[0].mxu0 %v1465
    %v1546 = vpop.f32.mrb[0].mxu0
    %v1547 = vadd.f32 0.0, %v1546
    %v1548 = vpop.f32.mrb[0].mxu0
    %1549 = vmatprep.mubr.f32.mxu0 0.0
    %1550 = vmatmul.mubr.f32.gmra.mrb[0].mxu0 %v1468
    %v1551 = vpop.f32.mrb[0].mxu0
    %v1552 = vadd.f32 0.0, %v1551
    %v1553 = vpop.f32.mrb[0].mxu0
    %1554 = vdwg.mxu0
    %v1555 = vadd.f32 %v1437, %v1537
    %v1556 = vadd.f32 %v1438, %v1542
    %v1557 = vadd.f32 %v1439, %v1547
    %v1558 = vadd.f32 %v1440, %v1552
    %1560 = vset.pattern.permute.xlu0 2
    %1561 = vperm.xlu0 %1560, %v34
    %v1562 = vpop.permute.xlu0 %1561
    %1565 = vset.pattern.permute.xlu0 2
    %1566 = vperm.xlu0 %1565, %v35
    %v1567 = vpop.permute.xlu0 %1566
    %1570 = vset.pattern.permute.xlu0 2
    %1571 = vperm.xlu0 %1570, %v36
    %v1572 = vpop.permute.xlu0 %1571
    %1575 = vset.pattern.permute.xlu0 2
    %1576 = vperm.xlu0 %1575, %v37
    %v1577 = vpop.permute.xlu0 %1576
    %v1579 = vadd.f32 %v1555, %v1562
    %v1580 = vadd.f32 %v1556, %v1567
    %v1581 = vadd.f32 %v1557, %v1572
    %v1582 = vadd.f32 %v1558, %v1577
    %v1583 = vld [vmem:[%s25] sm:$0xff]
    %v1584 = vld [vmem:[%s25 + $0x8] sm:$0xff]
    %v1585 = vld [vmem:[%s25 + $0x10] sm:$0xff]
    %v1586 = vld [vmem:[%s25 + $0x18] sm:$0xff]
    %1591 = vrot.lane.b32.xlu0 %v1583, 124
    %v1592 = vpop.permute.xlu0 %1591
    %1593 = vrot.lane.b32.xlu0 %v1584, 124
    %v1594 = vpop.permute.xlu0 %1593
    %1595 = vrot.lane.b32.xlu0 %v1585, 124
    %v1596 = vpop.permute.xlu0 %1595
    %1597 = vrot.lane.b32.xlu0 %v1586, 124
    %v1598 = vpop.permute.xlu0 %1597
    %1603 = vmatprep.subr.mxu0 0.0
    %1604 = vmatpush1.msra.mxu0 %v1592
    %1605 = vmatprep.subr.mxu0 0.0
    %1606 = vmatpush1.msra.mxu0 %v1594
    %1607 = vmatprep.subr.mxu0 0.0
    %1608 = vmatpush1.msra.mxu0 %v1596
    %1609 = vmatprep.subr.mxu0 0.0
    %1610 = vmatpush1.msra.mxu0 %v1598
    %1611 = vmatprep.subr.mxu0 0.0
    %1612 = vmatpush1.msra.mxu0 0.0
    %1613 = vmatprep.subr.mxu0 0.0
    %1614 = vmatpush1.msra.mxu0 0.0
    %1615 = vmatprep.subr.mxu0 0.0
    %1616 = vmatpush1.msra.mxu0 0.0
    %1617 = vmatprep.subr.mxu0 0.0
    %1618 = vmatpush1.msra.mxu0 0.0
    %1619 = vmatprep.subr.mxu0 0.0
    %1620 = vmatpush1.msra.mxu0 0.0
    %1621 = vmatprep.subr.mxu0 0.0
    %1622 = vmatpush1.msra.mxu0 0.0
    %1623 = vmatprep.subr.mxu0 0.0
    %1624 = vmatpush1.msra.mxu0 0.0
    %1625 = vmatprep.subr.mxu0 0.0
    %1626 = vmatpush1.msra.mxu0 0.0
    %1627 = vmatprep.subr.mxu0 0.0
    %1628 = vmatpush1.msra.mxu0 0.0
    %1629 = vmatprep.subr.mxu0 0.0
    %1630 = vmatpush1.msra.mxu0 0.0
    %1631 = vmatprep.subr.mxu0 0.0
    %1632 = vmatpush1.msra.mxu0 0.0
    %1633 = vmatprep.subr.mxu0 0.0
    %1634 = vmatpush1.msra.mxu0 0.0
    %1635 = vmatprep.subr.mxu0 0.0
    %1636 = vmatpush1.msra.mxu0 0.0
    %1637 = vmatprep.subr.mxu0 0.0
    %1638 = vmatpush1.msra.mxu0 0.0
    %1639 = vmatprep.subr.mxu0 0.0
    %1640 = vmatpush1.msra.mxu0 0.0
    %1641 = vmatprep.subr.mxu0 0.0
    %1642 = vmatpush1.msra.mxu0 0.0
    %1643 = vmatprep.subr.mxu0 0.0
    %1644 = vmatpush1.msra.mxu0 0.0
    %1645 = vmatprep.subr.mxu0 0.0
    %1646 = vmatpush1.msra.mxu0 0.0
    %1647 = vmatprep.subr.mxu0 0.0
    %1648 = vmatpush1.msra.mxu0 0.0
    %1649 = vmatprep.subr.mxu0 0.0
    %1650 = vmatpush1.msra.mxu0 0.0
    %1651 = vmatprep.subr.mxu0 0.0
    %1652 = vmatpush1.msra.mxu0 0.0
    %1653 = vmatprep.subr.mxu0 0.0
    %1654 = vmatpush1.msra.mxu0 0.0
    %1655 = vmatprep.subr.mxu0 0.0
    %1656 = vmatpush1.msra.mxu0 0.0
    %1657 = vmatprep.subr.mxu0 0.0
    %1658 = vmatpush1.msra.mxu0 0.0
    %1659 = vmatprep.subr.mxu0 0.0
    %1660 = vmatpush1.msra.mxu0 0.0
    %1661 = vmatprep.subr.mxu0 0.0
    %1662 = vmatpush1.msra.mxu0 0.0
    %1663 = vmatprep.subr.mxu0 0.0
    %1664 = vmatpush1.msra.mxu0 0.0
    %1665 = vmatprep.subr.mxu0 0.0
    %1666 = vmatpush1.msra.mxu0 0.0
    %1667 = vmatprep.mubr.f32.mxu0 0.0
    %1668 = vmatmul.mubr.f32.gmra.mrb[0].mxu0 %v304
    %v1669 = vpop.f32.mrb[0].mxu0
    %v1670 = vadd.f32 0.0, %v1669
    %v1671 = vpop.f32.mrb[0].mxu0
    %1672 = vmatprep.mubr.f32.mxu0 0.0
    %1673 = vmatmul.mubr.f32.gmra.mrb[0].mxu0 %v307
    %v1674 = vpop.f32.mrb[0].mxu0
    %v1675 = vadd.f32 0.0, %v1674
    %v1676 = vpop.f32.mrb[0].mxu0
    %1677 = vmatprep.mubr.f32.mxu0 0.0
    %1678 = vmatmul.mubr.f32.gmra.mrb[0].mxu0 %v310
    %v1679 = vpop.f32.mrb[0].mxu0
    %v1680 = vadd.f32 0.0, %v1679
    %v1681 = vpop.f32.mrb[0].mxu0
    %1682 = vmatprep.mubr.f32.mxu0 0.0
    %1683 = vmatmul.mubr.f32.gmra.mrb[0].mxu0 %v313
    %v1684 = vpop.f32.mrb[0].mxu0
    %v1685 = vadd.f32 0.0, %v1684
    %v1686 = vpop.f32.mrb[0].mxu0
    %1687 = vdwg.mxu0
    %1688 = vmatprep.subr.mxu0 0.0
    %1689 = vmatpush1.msra.mxu0 %v1583
    %1690 = vmatprep.subr.mxu0 0.0
    %1691 = vmatpush1.msra.mxu0 %v1584
    %1692 = vmatprep.subr.mxu0 0.0
    %1693 = vmatpush1.msra.mxu0 %v1585
    %1694 = vmatprep.subr.mxu0 0.0
    %1695 = vmatpush1.msra.mxu0 %v1586
    %1696 = vmatprep.subr.mxu0 0.0
    %1697 = vmatpush1.msra.mxu0 0.0
    %1698 = vmatprep.subr.mxu0 0.0
    %1699 = vmatpush1.msra.mxu0 0.0
    %1700 = vmatprep.subr.mxu0 0.0
    %1701 = vmatpush1.msra.mxu0 0.0
    %1702 = vmatprep.subr.mxu0 0.0
    %1703 = vmatpush1.msra.mxu0 0.0
    %1704 = vmatprep.subr.mxu0 0.0
    %1705 = vmatpush1.msra.mxu0 0.0
    %1706 = vmatprep.subr.mxu0 0.0
    %1707 = vmatpush1.msra.mxu0 0.0
    %1708 = vmatprep.subr.mxu0 0.0
    %1709 = vmatpush1.msra.mxu0 0.0
    %1710 = vmatprep.subr.mxu0 0.0
    %1711 = vmatpush1.msra.mxu0 0.0
    %1712 = vmatprep.subr.mxu0 0.0
    %1713 = vmatpush1.msra.mxu0 0.0
    %1714 = vmatprep.subr.mxu0 0.0
    %1715 = vmatpush1.msra.mxu0 0.0
    %1716 = vmatprep.subr.mxu0 0.0
    %1717 = vmatpush1.msra.mxu0 0.0
    %1718 = vmatprep.subr.mxu0 0.0
    %1719 = vmatpush1.msra.mxu0 0.0
    %1720 = vmatprep.subr.mxu0 0.0
    %1721 = vmatpush1.msra.mxu0 0.0
    %1722 = vmatprep.subr.mxu0 0.0
    %1723 = vmatpush1.msra.mxu0 0.0
    %1724 = vmatprep.subr.mxu0 0.0
    %1725 = vmatpush1.msra.mxu0 0.0
    %1726 = vmatprep.subr.mxu0 0.0
    %1727 = vmatpush1.msra.mxu0 0.0
    %1728 = vmatprep.subr.mxu0 0.0
    %1729 = vmatpush1.msra.mxu0 0.0
    %1730 = vmatprep.subr.mxu0 0.0
    %1731 = vmatpush1.msra.mxu0 0.0
    %1732 = vmatprep.subr.mxu0 0.0
    %1733 = vmatpush1.msra.mxu0 0.0
    %1734 = vmatprep.subr.mxu0 0.0
    %1735 = vmatpush1.msra.mxu0 0.0
    %1736 = vmatprep.subr.mxu0 0.0
    %1737 = vmatpush1.msra.mxu0 0.0
    %1738 = vmatprep.subr.mxu0 0.0
    %1739 = vmatpush1.msra.mxu0 0.0
    %1740 = vmatprep.subr.mxu0 0.0
    %1741 = vmatpush1.msra.mxu0 0.0
    %1742 = vmatprep.subr.mxu0 0.0
    %1743 = vmatpush1.msra.mxu0 0.0
    %1744 = vmatprep.subr.mxu0 0.0
    %1745 = vmatpush1.msra.mxu0 0.0
    %1746 = vmatprep.subr.mxu0 0.0
    %1747 = vmatpush1.msra.mxu0 0.0
    %1748 = vmatprep.subr.mxu0 0.0
    %1749 = vmatpush1.msra.mxu0 0.0
    %1750 = vmatprep.subr.mxu0 0.0
    %1751 = vmatpush1.msra.mxu0 0.0
    %1752 = vmatprep.mubr.f32.mxu0 0.0
    %1753 = vmatmul.mubr.f32.gmra.mrb[0].mxu0 %v401
    %v1754 = vpop.f32.mrb[0].mxu0
    %v1755 = vadd.f32 %v1670, %v1754
    %v1756 = vpop.f32.mrb[0].mxu0
    %1757 = vmatprep.mubr.f32.mxu0 0.0
    %1758 = vmatmul.mubr.f32.gmra.mrb[0].mxu0 %v404
    %v1759 = vpop.f32.mrb[0].mxu0
    %v1760 = vadd.f32 %v1675, %v1759
    %v1761 = vpop.f32.mrb[0].mxu0
    %1762 = vmatprep.mubr.f32.mxu0 0.0
    %1763 = vmatmul.mubr.f32.gmra.mrb[0].mxu0 %v407
    %v1764 = vpop.f32.mrb[0].mxu0
    %v1765 = vadd.f32 %v1680, %v1764
    %v1766 = vpop.f32.mrb[0].mxu0
    %1767 = vmatprep.mubr.f32.mxu0 0.0
    %1768 = vmatmul.mubr.f32.gmra.mrb[0].mxu0 %v410
    %v1769 = vpop.f32.mrb[0].mxu0
    %v1770 = vadd.f32 %v1685, %v1769
    %v1771 = vpop.f32.mrb[0].mxu0
    %1772 = vdwg.mxu0
    %1773 = vrot.lane.b32.xlu0 %v1583, 120
    %v1774 = vpop.permute.xlu0 %1773
    %1775 = vrot.lane.b32.xlu0 %v1584, 120
    %v1776 = vpop.permute.xlu0 %1775
    %1777 = vrot.lane.b32.xlu0 %v1585, 120
    %v1778 = vpop.permute.xlu0 %1777
    %1779 = vrot.lane.b32.xlu0 %v1586, 120
    %v1780 = vpop.permute.xlu0 %1779
    %1785 = vmatprep.subr.mxu0 0.0
    %1786 = vmatpush1.msra.mxu0 %v1774
    %1787 = vmatprep.subr.mxu0 0.0
    %1788 = vmatpush1.msra.mxu0 %v1776
    %1789 = vmatprep.subr.mxu0 0.0
    %1790 = vmatpush1.msra.mxu0 %v1778
    %1791 = vmatprep.subr.mxu0 0.0
    %1792 = vmatpush1.msra.mxu0 %v1780
    %1793 = vmatprep.subr.mxu0 0.0
    %1794 = vmatpush1.msra.mxu0 0.0
    %1795 = vmatprep.subr.mxu0 0.0
    %1796 = vmatpush1.msra.mxu0 0.0
    %1797 = vmatprep.subr.mxu0 0.0
    %1798 = vmatpush1.msra.mxu0 0.0
    %1799 = vmatprep.subr.mxu0 0.0
    %1800 = vmatpush1.msra.mxu0 0.0
    %1801 = vmatprep.subr.mxu0 0.0
    %1802 = vmatpush1.msra.mxu0 0.0
    %1803 = vmatprep.subr.mxu0 0.0
    %1804 = vmatpush1.msra.mxu0 0.0
    %1805 = vmatprep.subr.mxu0 0.0
    %1806 = vmatpush1.msra.mxu0 0.0
    %1807 = vmatprep.subr.mxu0 0.0
    %1808 = vmatpush1.msra.mxu0 0.0
    %1809 = vmatprep.subr.mxu0 0.0
    %1810 = vmatpush1.msra.mxu0 0.0
    %1811 = vmatprep.subr.mxu0 0.0
    %1812 = vmatpush1.msra.mxu0 0.0
    %1813 = vmatprep.subr.mxu0 0.0
    %1814 = vmatpush1.msra.mxu0 0.0
    %1815 = vmatprep.subr.mxu0 0.0
    %1816 = vmatpush1.msra.mxu0 0.0
    %1817 = vmatprep.subr.mxu0 0.0
    %1818 = vmatpush1.msra.mxu0 0.0
    %1819 = vmatprep.subr.mxu0 0.0
    %1820 = vmatpush1.msra.mxu0 0.0
    %1821 = vmatprep.subr.mxu0 0.0
    %1822 = vmatpush1.msra.mxu0 0.0
    %1823 = vmatprep.subr.mxu0 0.0
    %1824 = vmatpush1.msra.mxu0 0.0
    %1825 = vmatprep.subr.mxu0 0.0
    %1826 = vmatpush1.msra.mxu0 0.0
    %1827 = vmatprep.subr.mxu0 0.0
    %1828 = vmatpush1.msra.mxu0 0.0
    %1829 = vmatprep.subr.mxu0 0.0
    %1830 = vmatpush1.msra.mxu0 0.0
    %1831 = vmatprep.subr.mxu0 0.0
    %1832 = vmatpush1.msra.mxu0 0.0
    %1833 = vmatprep.subr.mxu0 0.0
    %1834 = vmatpush1.msra.mxu0 0.0
    %1835 = vmatprep.subr.mxu0 0.0
    %1836 = vmatpush1.msra.mxu0 0.0
    %1837 = vmatprep.subr.mxu0 0.0
    %1838 = vmatpush1.msra.mxu0 0.0
    %1839 = vmatprep.subr.mxu0 0.0
    %1840 = vmatpush1.msra.mxu0 0.0
    %1841 = vmatprep.subr.mxu0 0.0
    %1842 = vmatpush1.msra.mxu0 0.0
    %1843 = vmatprep.subr.mxu0 0.0
    %1844 = vmatpush1.msra.mxu0 0.0
    %1845 = vmatprep.subr.mxu0 0.0
    %1846 = vmatpush1.msra.mxu0 0.0
    %1847 = vmatprep.subr.mxu0 0.0
    %1848 = vmatpush1.msra.mxu0 0.0
    %1849 = vmatprep.mubr.f32.mxu0 0.0
    %1850 = vmatmul.mubr.f32.gmra.mrb[0].mxu0 %v515
    %v1851 = vpop.f32.mrb[0].mxu0
    %v1852 = vadd.f32 0.0, %v1851
    %v1853 = vpop.f32.mrb[0].mxu0
    %1854 = vmatprep.mubr.f32.mxu0 0.0
    %1855 = vmatmul.mubr.f32.gmra.mrb[0].mxu0 %v518
    %v1856 = vpop.f32.mrb[0].mxu0
    %v1857 = vadd.f32 0.0, %v1856
    %v1858 = vpop.f32.mrb[0].mxu0
    %1859 = vmatprep.mubr.f32.mxu0 0.0
    %1860 = vmatmul.mubr.f32.gmra.mrb[0].mxu0 %v521
    %v1861 = vpop.f32.mrb[0].mxu0
    %v1862 = vadd.f32 0.0, %v1861
    %v1863 = vpop.f32.mrb[0].mxu0
    %1864 = vmatprep.mubr.f32.mxu0 0.0
    %1865 = vmatmul.mubr.f32.gmra.mrb[0].mxu0 %v524
    %v1866 = vpop.f32.mrb[0].mxu0
    %v1867 = vadd.f32 0.0, %v1866
    %v1868 = vpop.f32.mrb[0].mxu0
    %1869 = vdwg.mxu0
    %v1870 = vadd.f32 %v1755, %v1852
    %v1871 = vadd.f32 %v1760, %v1857
    %v1872 = vadd.f32 %v1765, %v1862
    %v1873 = vadd.f32 %v1770, %v1867
    %1874 = vrot.lane.b32.xlu0 %v1583, 116
    %v1875 = vpop.permute.xlu0 %1874
    %1876 = vrot.lane.b32.xlu0 %v1584, 116
    %v1877 = vpop.permute.xlu0 %1876
    %1878 = vrot.lane.b32.xlu0 %v1585, 116
    %v1879 = vpop.permute.xlu0 %1878
    %1880 = vrot.lane.b32.xlu0 %v1586, 116
    %v1881 = vpop.permute.xlu0 %1880
    %1886 = vmatprep.subr.mxu0 0.0
    %1887 = vmatpush1.msra.mxu0 %v1875
    %1888 = vmatprep.subr.mxu0 0.0
    %1889 = vmatpush1.msra.mxu0 %v1877
    %1890 = vmatprep.subr.mxu0 0.0
    %1891 = vmatpush1.msra.mxu0 %v1879
    %1892 = vmatprep.subr.mxu0 0.0
    %1893 = vmatpush1.msra.mxu0 %v1881
    %1894 = vmatprep.subr.mxu0 0.0
    %1895 = vmatpush1.msra.mxu0 0.0
    %1896 = vmatprep.subr.mxu0 0.0
    %1897 = vmatpush1.msra.mxu0 0.0
    %1898 = vmatprep.subr.mxu0 0.0
    %1899 = vmatpush1.msra.mxu0 0.0
    %1900 = vmatprep.subr.mxu0 0.0
    %1901 = vmatpush1.msra.mxu0 0.0
    %1902 = vmatprep.subr.mxu0 0.0
    %1903 = vmatpush1.msra.mxu0 0.0
    %1904 = vmatprep.subr.mxu0 0.0
    %1905 = vmatpush1.msra.mxu0 0.0
    %1906 = vmatprep.subr.mxu0 0.0
    %1907 = vmatpush1.msra.mxu0 0.0
    %1908 = vmatprep.subr.mxu0 0.0
    %1909 = vmatpush1.msra.mxu0 0.0
    %1910 = vmatprep.subr.mxu0 0.0
    %1911 = vmatpush1.msra.mxu0 0.0
    %1912 = vmatprep.subr.mxu0 0.0
    %1913 = vmatpush1.msra.mxu0 0.0
    %1914 = vmatprep.subr.mxu0 0.0
    %1915 = vmatpush1.msra.mxu0 0.0
    %1916 = vmatprep.subr.mxu0 0.0
    %1917 = vmatpush1.msra.mxu0 0.0
    %1918 = vmatprep.subr.mxu0 0.0
    %1919 = vmatpush1.msra.mxu0 0.0
    %1920 = vmatprep.subr.mxu0 0.0
    %1921 = vmatpush1.msra.mxu0 0.0
    %1922 = vmatprep.subr.mxu0 0.0
    %1923 = vmatpush1.msra.mxu0 0.0
    %1924 = vmatprep.subr.mxu0 0.0
    %1925 = vmatpush1.msra.mxu0 0.0
    %1926 = vmatprep.subr.mxu0 0.0
    %1927 = vmatpush1.msra.mxu0 0.0
    %1928 = vmatprep.subr.mxu0 0.0
    %1929 = vmatpush1.msra.mxu0 0.0
    %1930 = vmatprep.subr.mxu0 0.0
    %1931 = vmatpush1.msra.mxu0 0.0
    %1932 = vmatprep.subr.mxu0 0.0
    %1933 = vmatpush1.msra.mxu0 0.0
    %1934 = vmatprep.subr.mxu0 0.0
    %1935 = vmatpush1.msra.mxu0 0.0
    %1936 = vmatprep.subr.mxu0 0.0
    %1937 = vmatpush1.msra.mxu0 0.0
    %1938 = vmatprep.subr.mxu0 0.0
    %1939 = vmatpush1.msra.mxu0 0.0
    %1940 = vmatprep.subr.mxu0 0.0
    %1941 = vmatpush1.msra.mxu0 0.0
    %1942 = vmatprep.subr.mxu0 0.0
    %1943 = vmatpush1.msra.mxu0 0.0
    %1944 = vmatprep.subr.mxu0 0.0
    %1945 = vmatpush1.msra.mxu0 0.0
    %1946 = vmatprep.subr.mxu0 0.0
    %1947 = vmatpush1.msra.mxu0 0.0
    %1948 = vmatprep.subr.mxu0 0.0
    %1949 = vmatpush1.msra.mxu0 0.0
    %1950 = vmatprep.mubr.f32.mxu0 0.0
    %1951 = vmatmul.mubr.f32.gmra.mrb[0].mxu0 %v633
    %v1952 = vpop.f32.mrb[0].mxu0
    %v1953 = vadd.f32 0.0, %v1952
    %v1954 = vpop.f32.mrb[0].mxu0
    %1955 = vmatprep.mubr.f32.mxu0 0.0
    %1956 = vmatmul.mubr.f32.gmra.mrb[0].mxu0 %v636
    %v1957 = vpop.f32.mrb[0].mxu0
    %v1958 = vadd.f32 0.0, %v1957
    %v1959 = vpop.f32.mrb[0].mxu0
    %1960 = vmatprep.mubr.f32.mxu0 0.0
    %1961 = vmatmul.mubr.f32.gmra.mrb[0].mxu0 %v639
    %v1962 = vpop.f32.mrb[0].mxu0
    %v1963 = vadd.f32 0.0, %v1962
    %v1964 = vpop.f32.mrb[0].mxu0
    %1965 = vmatprep.mubr.f32.mxu0 0.0
    %1966 = vmatmul.mubr.f32.gmra.mrb[0].mxu0 %v642
    %v1967 = vpop.f32.mrb[0].mxu0
    %v1968 = vadd.f32 0.0, %v1967
    %v1969 = vpop.f32.mrb[0].mxu0
    %1970 = vdwg.mxu0
    %v1971 = vadd.f32 %v1870, %v1953
    %v1972 = vadd.f32 %v1871, %v1958
    %v1973 = vadd.f32 %v1872, %v1963
    %v1974 = vadd.f32 %v1873, %v1968
    %1975 = vrot.lane.b32.xlu0 %v1583, 112
    %v1976 = vpop.permute.xlu0 %1975
    %1977 = vrot.lane.b32.xlu0 %v1584, 112
    %v1978 = vpop.permute.xlu0 %1977
    %1979 = vrot.lane.b32.xlu0 %v1585, 112
    %v1980 = vpop.permute.xlu0 %1979
    %1981 = vrot.lane.b32.xlu0 %v1586, 112
    %v1982 = vpop.permute.xlu0 %1981
    %1987 = vmatprep.subr.mxu0 0.0
    %1988 = vmatpush1.msra.mxu0 %v1976
    %1989 = vmatprep.subr.mxu0 0.0
    %1990 = vmatpush1.msra.mxu0 %v1978
    %1991 = vmatprep.subr.mxu0 0.0
    %1992 = vmatpush1.msra.mxu0 %v1980
    %1993 = vmatprep.subr.mxu0 0.0
    %1994 = vmatpush1.msra.mxu0 %v1982
    %1995 = vmatprep.subr.mxu0 0.0
    %1996 = vmatpush1.msra.mxu0 0.0
    %1997 = vmatprep.subr.mxu0 0.0
    %1998 = vmatpush1.msra.mxu0 0.0
    %1999 = vmatprep.subr.mxu0 0.0
    %2000 = vmatpush1.msra.mxu0 0.0
    %2001 = vmatprep.subr.mxu0 0.0
    %2002 = vmatpush1.msra.mxu0 0.0
    %2003 = vmatprep.subr.mxu0 0.0
    %2004 = vmatpush1.msra.mxu0 0.0
    %2005 = vmatprep.subr.mxu0 0.0
    %2006 = vmatpush1.msra.mxu0 0.0
    %2007 = vmatprep.subr.mxu0 0.0
    %2008 = vmatpush1.msra.mxu0 0.0
    %2009 = vmatprep.subr.mxu0 0.0
    %2010 = vmatpush1.msra.mxu0 0.0
    %2011 = vmatprep.subr.mxu0 0.0
    %2012 = vmatpush1.msra.mxu0 0.0
    %2013 = vmatprep.subr.mxu0 0.0
    %2014 = vmatpush1.msra.mxu0 0.0
    %2015 = vmatprep.subr.mxu0 0.0
    %2016 = vmatpush1.msra.mxu0 0.0
    %2017 = vmatprep.subr.mxu0 0.0
    %2018 = vmatpush1.msra.mxu0 0.0
    %2019 = vmatprep.subr.mxu0 0.0
    %2020 = vmatpush1.msra.mxu0 0.0
    %2021 = vmatprep.subr.mxu0 0.0
    %2022 = vmatpush1.msra.mxu0 0.0
    %2023 = vmatprep.subr.mxu0 0.0
    %2024 = vmatpush1.msra.mxu0 0.0
    %2025 = vmatprep.subr.mxu0 0.0
    %2026 = vmatpush1.msra.mxu0 0.0
    %2027 = vmatprep.subr.mxu0 0.0
    %2028 = vmatpush1.msra.mxu0 0.0
    %2029 = vmatprep.subr.mxu0 0.0
    %2030 = vmatpush1.msra.mxu0 0.0
    %2031 = vmatprep.subr.mxu0 0.0
    %2032 = vmatpush1.msra.mxu0 0.0
    %2033 = vmatprep.subr.mxu0 0.0
    %2034 = vmatpush1.msra.mxu0 0.0
    %2035 = vmatprep.subr.mxu0 0.0
    %2036 = vmatpush1.msra.mxu0 0.0
    %2037 = vmatprep.subr.mxu0 0.0
    %2038 = vmatpush1.msra.mxu0 0.0
    %2039 = vmatprep.subr.mxu0 0.0
    %2040 = vmatpush1.msra.mxu0 0.0
    %2041 = vmatprep.subr.mxu0 0.0
    %2042 = vmatpush1.msra.mxu0 0.0
    %2043 = vmatprep.subr.mxu0 0.0
    %2044 = vmatpush1.msra.mxu0 0.0
    %2045 = vmatprep.subr.mxu0 0.0
    %2046 = vmatpush1.msra.mxu0 0.0
    %2047 = vmatprep.subr.mxu0 0.0
    %2048 = vmatpush1.msra.mxu0 0.0
    %2049 = vmatprep.subr.mxu0 0.0
    %2050 = vmatpush1.msra.mxu0 0.0
    %2051 = vmatprep.mubr.f32.mxu0 0.0
    %2052 = vmatmul.mubr.f32.gmra.mrb[0].mxu0 %v751
    %v2053 = vpop.f32.mrb[0].mxu0
    %v2054 = vadd.f32 0.0, %v2053
    %v2055 = vpop.f32.mrb[0].mxu0
    %2056 = vmatprep.mubr.f32.mxu0 0.0
    %2057 = vmatmul.mubr.f32.gmra.mrb[0].mxu0 %v754
    %v2058 = vpop.f32.mrb[0].mxu0
    %v2059 = vadd.f32 0.0, %v2058
    %v2060 = vpop.f32.mrb[0].mxu0
    %2061 = vmatprep.mubr.f32.mxu0 0.0
    %2062 = vmatmul.mubr.f32.gmra.mrb[0].mxu0 %v757
    %v2063 = vpop.f32.mrb[0].mxu0
    %v2064 = vadd.f32 0.0, %v2063
    %v2065 = vpop.f32.mrb[0].mxu0
    %2066 = vmatprep.mubr.f32.mxu0 0.0
    %2067 = vmatmul.mubr.f32.gmra.mrb[0].mxu0 %v760
    %v2068 = vpop.f32.mrb[0].mxu0
    %v2069 = vadd.f32 0.0, %v2068
    %v2070 = vpop.f32.mrb[0].mxu0
    %2071 = vdwg.mxu0
    %v2072 = vadd.f32 %v1971, %v2054
    %v2073 = vadd.f32 %v1972, %v2059
    %v2074 = vadd.f32 %v1973, %v2064
    %v2075 = vadd.f32 %v1974, %v2069
    %2076 = vrot.lane.b32.xlu0 %v1583, 108
    %v2077 = vpop.permute.xlu0 %2076
    %2078 = vrot.lane.b32.xlu0 %v1584, 108
    %v2079 = vpop.permute.xlu0 %2078
    %2080 = vrot.lane.b32.xlu0 %v1585, 108
    %v2081 = vpop.permute.xlu0 %2080
    %2082 = vrot.lane.b32.xlu0 %v1586, 108
    %v2083 = vpop.permute.xlu0 %2082
    %2088 = vmatprep.subr.mxu0 0.0
    %2089 = vmatpush1.msra.mxu0 %v2077
    %2090 = vmatprep.subr.mxu0 0.0
    %2091 = vmatpush1.msra.mxu0 %v2079
    %2092 = vmatprep.subr.mxu0 0.0
    %2093 = vmatpush1.msra.mxu0 %v2081
    %2094 = vmatprep.subr.mxu0 0.0
    %2095 = vmatpush1.msra.mxu0 %v2083
    %2096 = vmatprep.subr.mxu0 0.0
    %2097 = vmatpush1.msra.mxu0 0.0
    %2098 = vmatprep.subr.mxu0 0.0
    %2099 = vmatpush1.msra.mxu0 0.0
    %2100 = vmatprep.subr.mxu0 0.0
    %2101 = vmatpush1.msra.mxu0 0.0
    %2102 = vmatprep.subr.mxu0 0.0
    %2103 = vmatpush1.msra.mxu0 0.0
    %2104 = vmatprep.subr.mxu0 0.0
    %2105 = vmatpush1.msra.mxu0 0.0
    %2106 = vmatprep.subr.mxu0 0.0
    %2107 = vmatpush1.msra.mxu0 0.0
    %2108 = vmatprep.subr.mxu0 0.0
    %2109 = vmatpush1.msra.mxu0 0.0
    %2110 = vmatprep.subr.mxu0 0.0
    %2111 = vmatpush1.msra.mxu0 0.0
    %2112 = vmatprep.subr.mxu0 0.0
    %2113 = vmatpush1.msra.mxu0 0.0
    %2114 = vmatprep.subr.mxu0 0.0
    %2115 = vmatpush1.msra.mxu0 0.0
    %2116 = vmatprep.subr.mxu0 0.0
    %2117 = vmatpush1.msra.mxu0 0.0
    %2118 = vmatprep.subr.mxu0 0.0
    %2119 = vmatpush1.msra.mxu0 0.0
    %2120 = vmatprep.subr.mxu0 0.0
    %2121 = vmatpush1.msra.mxu0 0.0
    %2122 = vmatprep.subr.mxu0 0.0
    %2123 = vmatpush1.msra.mxu0 0.0
    %2124 = vmatprep.subr.mxu0 0.0
    %2125 = vmatpush1.msra.mxu0 0.0
    %2126 = vmatprep.subr.mxu0 0.0
    %2127 = vmatpush1.msra.mxu0 0.0
    %2128 = vmatprep.subr.mxu0 0.0
    %2129 = vmatpush1.msra.mxu0 0.0
    %2130 = vmatprep.subr.mxu0 0.0
    %2131 = vmatpush1.msra.mxu0 0.0
    %2132 = vmatprep.subr.mxu0 0.0
    %2133 = vmatpush1.msra.mxu0 0.0
    %2134 = vmatprep.subr.mxu0 0.0
    %2135 = vmatpush1.msra.mxu0 0.0
    %2136 = vmatprep.subr.mxu0 0.0
    %2137 = vmatpush1.msra.mxu0 0.0
    %2138 = vmatprep.subr.mxu0 0.0
    %2139 = vmatpush1.msra.mxu0 0.0
    %2140 = vmatprep.subr.mxu0 0.0
    %2141 = vmatpush1.msra.mxu0 0.0
    %2142 = vmatprep.subr.mxu0 0.0
    %2143 = vmatpush1.msra.mxu0 0.0
    %2144 = vmatprep.subr.mxu0 0.0
    %2145 = vmatpush1.msra.mxu0 0.0
    %2146 = vmatprep.subr.mxu0 0.0
    %2147 = vmatpush1.msra.mxu0 0.0
    %2148 = vmatprep.subr.mxu0 0.0
    %2149 = vmatpush1.msra.mxu0 0.0
    %2150 = vmatprep.subr.mxu0 0.0
    %2151 = vmatpush1.msra.mxu0 0.0
    %2152 = vmatprep.mubr.f32.mxu0 0.0
    %2153 = vmatmul.mubr.f32.gmra.mrb[0].mxu0 %v869
    %v2154 = vpop.f32.mrb[0].mxu0
    %v2155 = vadd.f32 0.0, %v2154
    %v2156 = vpop.f32.mrb[0].mxu0
    %2157 = vmatprep.mubr.f32.mxu0 0.0
    %2158 = vmatmul.mubr.f32.gmra.mrb[0].mxu0 %v872
    %v2159 = vpop.f32.mrb[0].mxu0
    %v2160 = vadd.f32 0.0, %v2159
    %v2161 = vpop.f32.mrb[0].mxu0
    %2162 = vmatprep.mubr.f32.mxu0 0.0
    %2163 = vmatmul.mubr.f32.gmra.mrb[0].mxu0 %v875
    %v2164 = vpop.f32.mrb[0].mxu0
    %v2165 = vadd.f32 0.0, %v2164
    %v2166 = vpop.f32.mrb[0].mxu0
    %2167 = vmatprep.mubr.f32.mxu0 0.0
    %2168 = vmatmul.mubr.f32.gmra.mrb[0].mxu0 %v878
    %v2169 = vpop.f32.mrb[0].mxu0
    %v2170 = vadd.f32 0.0, %v2169
    %v2171 = vpop.f32.mrb[0].mxu0
    %2172 = vdwg.mxu0
    %v2173 = vadd.f32 %v2072, %v2155
    %v2174 = vadd.f32 %v2073, %v2160
    %v2175 = vadd.f32 %v2074, %v2165
    %v2176 = vadd.f32 %v2075, %v2170
    %2177 = vrot.lane.b32.xlu0 %v1583, 104
    %v2178 = vpop.permute.xlu0 %2177
    %2179 = vrot.lane.b32.xlu0 %v1584, 104
    %v2180 = vpop.permute.xlu0 %2179
    %2181 = vrot.lane.b32.xlu0 %v1585, 104
    %v2182 = vpop.permute.xlu0 %2181
    %2183 = vrot.lane.b32.xlu0 %v1586, 104
    %v2184 = vpop.permute.xlu0 %2183
    %2189 = vmatprep.subr.mxu0 0.0
    %2190 = vmatpush1.msra.mxu0 %v2178
    %2191 = vmatprep.subr.mxu0 0.0
    %2192 = vmatpush1.msra.mxu0 %v2180
    %2193 = vmatprep.subr.mxu0 0.0
    %2194 = vmatpush1.msra.mxu0 %v2182
    %2195 = vmatprep.subr.mxu0 0.0
    %2196 = vmatpush1.msra.mxu0 %v2184
    %2197 = vmatprep.subr.mxu0 0.0
    %2198 = vmatpush1.msra.mxu0 0.0
    %2199 = vmatprep.subr.mxu0 0.0
    %2200 = vmatpush1.msra.mxu0 0.0
    %2201 = vmatprep.subr.mxu0 0.0
    %2202 = vmatpush1.msra.mxu0 0.0
    %2203 = vmatprep.subr.mxu0 0.0
    %2204 = vmatpush1.msra.mxu0 0.0
    %2205 = vmatprep.subr.mxu0 0.0
    %2206 = vmatpush1.msra.mxu0 0.0
    %2207 = vmatprep.subr.mxu0 0.0
    %2208 = vmatpush1.msra.mxu0 0.0
    %2209 = vmatprep.subr.mxu0 0.0
    %2210 = vmatpush1.msra.mxu0 0.0
    %2211 = vmatprep.subr.mxu0 0.0
    %2212 = vmatpush1.msra.mxu0 0.0
    %2213 = vmatprep.subr.mxu0 0.0
    %2214 = vmatpush1.msra.mxu0 0.0
    %2215 = vmatprep.subr.mxu0 0.0
    %2216 = vmatpush1.msra.mxu0 0.0
    %2217 = vmatprep.subr.mxu0 0.0
    %2218 = vmatpush1.msra.mxu0 0.0
    %2219 = vmatprep.subr.mxu0 0.0
    %2220 = vmatpush1.msra.mxu0 0.0
    %2221 = vmatprep.subr.mxu0 0.0
    %2222 = vmatpush1.msra.mxu0 0.0
    %2223 = vmatprep.subr.mxu0 0.0
    %2224 = vmatpush1.msra.mxu0 0.0
    %2225 = vmatprep.subr.mxu0 0.0
    %2226 = vmatpush1.msra.mxu0 0.0
    %2227 = vmatprep.subr.mxu0 0.0
    %2228 = vmatpush1.msra.mxu0 0.0
    %2229 = vmatprep.subr.mxu0 0.0
    %2230 = vmatpush1.msra.mxu0 0.0
    %2231 = vmatprep.subr.mxu0 0.0
    %2232 = vmatpush1.msra.mxu0 0.0
    %2233 = vmatprep.subr.mxu0 0.0
    %2234 = vmatpush1.msra.mxu0 0.0
    %2235 = vmatprep.subr.mxu0 0.0
    %2236 = vmatpush1.msra.mxu0 0.0
    %2237 = vmatprep.subr.mxu0 0.0
    %2238 = vmatpush1.msra.mxu0 0.0
    %2239 = vmatprep.subr.mxu0 0.0
    %2240 = vmatpush1.msra.mxu0 0.0
    %2241 = vmatprep.subr.mxu0 0.0
    %2242 = vmatpush1.msra.mxu0 0.0
    %2243 = vmatprep.subr.mxu0 0.0
    %2244 = vmatpush1.msra.mxu0 0.0
    %2245 = vmatprep.subr.mxu0 0.0
    %2246 = vmatpush1.msra.mxu0 0.0
    %2247 = vmatprep.subr.mxu0 0.0
    %2248 = vmatpush1.msra.mxu0 0.0
    %2249 = vmatprep.subr.mxu0 0.0
    %2250 = vmatpush1.msra.mxu0 0.0
    %2251 = vmatprep.subr.mxu0 0.0
    %2252 = vmatpush1.msra.mxu0 0.0
    %2253 = vmatprep.mubr.f32.mxu0 0.0
    %2254 = vmatmul.mubr.f32.gmra.mrb[0].mxu0 %v987
    %v2255 = vpop.f32.mrb[0].mxu0
    %v2256 = vadd.f32 0.0, %v2255
    %v2257 = vpop.f32.mrb[0].mxu0
    %2258 = vmatprep.mubr.f32.mxu0 0.0
    %2259 = vmatmul.mubr.f32.gmra.mrb[0].mxu0 %v990
    %v2260 = vpop.f32.mrb[0].mxu0
    %v2261 = vadd.f32 0.0, %v2260
    %v2262 = vpop.f32.mrb[0].mxu0
    %2263 = vmatprep.mubr.f32.mxu0 0.0
    %2264 = vmatmul.mubr.f32.gmra.mrb[0].mxu0 %v993
    %v2265 = vpop.f32.mrb[0].mxu0
    %v2266 = vadd.f32 0.0, %v2265
    %v2267 = vpop.f32.mrb[0].mxu0
    %2268 = vmatprep.mubr.f32.mxu0 0.0
    %2269 = vmatmul.mubr.f32.gmra.mrb[0].mxu0 %v996
    %v2270 = vpop.f32.mrb[0].mxu0
    %v2271 = vadd.f32 0.0, %v2270
    %v2272 = vpop.f32.mrb[0].mxu0
    %2273 = vdwg.mxu0
    %v2274 = vadd.f32 %v2173, %v2256
    %v2275 = vadd.f32 %v2174, %v2261
    %v2276 = vadd.f32 %v2175, %v2266
    %v2277 = vadd.f32 %v2176, %v2271
    %2278 = vrot.lane.b32.xlu0 %v1583, 100
    %v2279 = vpop.permute.xlu0 %2278
    %2280 = vrot.lane.b32.xlu0 %v1584, 100
    %v2281 = vpop.permute.xlu0 %2280
    %2282 = vrot.lane.b32.xlu0 %v1585, 100
    %v2283 = vpop.permute.xlu0 %2282
    %2284 = vrot.lane.b32.xlu0 %v1586, 100
    %v2285 = vpop.permute.xlu0 %2284
    %2290 = vmatprep.subr.mxu0 0.0
    %2291 = vmatpush1.msra.mxu0 %v2279
    %2292 = vmatprep.subr.mxu0 0.0
    %2293 = vmatpush1.msra.mxu0 %v2281
    %2294 = vmatprep.subr.mxu0 0.0
    %2295 = vmatpush1.msra.mxu0 %v2283
    %2296 = vmatprep.subr.mxu0 0.0
    %2297 = vmatpush1.msra.mxu0 %v2285
    %2298 = vmatprep.subr.mxu0 0.0
    %2299 = vmatpush1.msra.mxu0 0.0
    %2300 = vmatprep.subr.mxu0 0.0
    %2301 = vmatpush1.msra.mxu0 0.0
    %2302 = vmatprep.subr.mxu0 0.0
    %2303 = vmatpush1.msra.mxu0 0.0
    %2304 = vmatprep.subr.mxu0 0.0
    %2305 = vmatpush1.msra.mxu0 0.0
    %2306 = vmatprep.subr.mxu0 0.0
    %2307 = vmatpush1.msra.mxu0 0.0
    %2308 = vmatprep.subr.mxu0 0.0
    %2309 = vmatpush1.msra.mxu0 0.0
    %2310 = vmatprep.subr.mxu0 0.0
    %2311 = vmatpush1.msra.mxu0 0.0
    %2312 = vmatprep.subr.mxu0 0.0
    %2313 = vmatpush1.msra.mxu0 0.0
    %2314 = vmatprep.subr.mxu0 0.0
    %2315 = vmatpush1.msra.mxu0 0.0
    %2316 = vmatprep.subr.mxu0 0.0
    %2317 = vmatpush1.msra.mxu0 0.0
    %2318 = vmatprep.subr.mxu0 0.0
    %2319 = vmatpush1.msra.mxu0 0.0
    %2320 = vmatprep.subr.mxu0 0.0
    %2321 = vmatpush1.msra.mxu0 0.0
    %2322 = vmatprep.subr.mxu0 0.0
    %2323 = vmatpush1.msra.mxu0 0.0
    %2324 = vmatprep.subr.mxu0 0.0
    %2325 = vmatpush1.msra.mxu0 0.0
    %2326 = vmatprep.subr.mxu0 0.0
    %2327 = vmatpush1.msra.mxu0 0.0
    %2328 = vmatprep.subr.mxu0 0.0
    %2329 = vmatpush1.msra.mxu0 0.0
    %2330 = vmatprep.subr.mxu0 0.0
    %2331 = vmatpush1.msra.mxu0 0.0
    %2332 = vmatprep.subr.mxu0 0.0
    %2333 = vmatpush1.msra.mxu0 0.0
    %2334 = vmatprep.subr.mxu0 0.0
    %2335 = vmatpush1.msra.mxu0 0.0
    %2336 = vmatprep.subr.mxu0 0.0
    %2337 = vmatpush1.msra.mxu0 0.0
    %2338 = vmatprep.subr.mxu0 0.0
    %2339 = vmatpush1.msra.mxu0 0.0
    %2340 = vmatprep.subr.mxu0 0.0
    %2341 = vmatpush1.msra.mxu0 0.0
    %2342 = vmatprep.subr.mxu0 0.0
    %2343 = vmatpush1.msra.mxu0 0.0
    %2344 = vmatprep.subr.mxu0 0.0
    %2345 = vmatpush1.msra.mxu0 0.0
    %2346 = vmatprep.subr.mxu0 0.0
    %2347 = vmatpush1.msra.mxu0 0.0
    %2348 = vmatprep.subr.mxu0 0.0
    %2349 = vmatpush1.msra.mxu0 0.0
    %2350 = vmatprep.subr.mxu0 0.0
    %2351 = vmatpush1.msra.mxu0 0.0
    %2352 = vmatprep.subr.mxu0 0.0
    %2353 = vmatpush1.msra.mxu0 0.0
    %2354 = vmatprep.mubr.f32.mxu0 0.0
    %2355 = vmatmul.mubr.f32.gmra.mrb[0].mxu0 %v1105
    %v2356 = vpop.f32.mrb[0].mxu0
    %v2357 = vadd.f32 0.0, %v2356
    %v2358 = vpop.f32.mrb[0].mxu0
    %2359 = vmatprep.mubr.f32.mxu0 0.0
    %2360 = vmatmul.mubr.f32.gmra.mrb[0].mxu0 %v1108
    %v2361 = vpop.f32.mrb[0].mxu0
    %v2362 = vadd.f32 0.0, %v2361
    %v2363 = vpop.f32.mrb[0].mxu0
    %2364 = vmatprep.mubr.f32.mxu0 0.0
    %2365 = vmatmul.mubr.f32.gmra.mrb[0].mxu0 %v1111
    %v2366 = vpop.f32.mrb[0].mxu0
    %v2367 = vadd.f32 0.0, %v2366
    %v2368 = vpop.f32.mrb[0].mxu0
    %2369 = vmatprep.mubr.f32.mxu0 0.0
    %2370 = vmatmul.mubr.f32.gmra.mrb[0].mxu0 %v1114
    %v2371 = vpop.f32.mrb[0].mxu0
    %v2372 = vadd.f32 0.0, %v2371
    %v2373 = vpop.f32.mrb[0].mxu0
    %2374 = vdwg.mxu0
    %v2375 = vadd.f32 %v2274, %v2357
    %v2376 = vadd.f32 %v2275, %v2362
    %v2377 = vadd.f32 %v2276, %v2367
    %v2378 = vadd.f32 %v2277, %v2372
    %2379 = vrot.lane.b32.xlu0 %v1583, 96
    %v2380 = vpop.permute.xlu0 %2379
    %2381 = vrot.lane.b32.xlu0 %v1584, 96
    %v2382 = vpop.permute.xlu0 %2381
    %2383 = vrot.lane.b32.xlu0 %v1585, 96
    %v2384 = vpop.permute.xlu0 %2383
    %2385 = vrot.lane.b32.xlu0 %v1586, 96
    %v2386 = vpop.permute.xlu0 %2385
    %2391 = vmatprep.subr.mxu0 0.0
    %2392 = vmatpush1.msra.mxu0 %v2380
    %2393 = vmatprep.subr.mxu0 0.0
    %2394 = vmatpush1.msra.mxu0 %v2382
    %2395 = vmatprep.subr.mxu0 0.0
    %2396 = vmatpush1.msra.mxu0 %v2384
    %2397 = vmatprep.subr.mxu0 0.0
    %2398 = vmatpush1.msra.mxu0 %v2386
    %2399 = vmatprep.subr.mxu0 0.0
    %2400 = vmatpush1.msra.mxu0 0.0
    %2401 = vmatprep.subr.mxu0 0.0
    %2402 = vmatpush1.msra.mxu0 0.0
    %2403 = vmatprep.subr.mxu0 0.0
    %2404 = vmatpush1.msra.mxu0 0.0
    %2405 = vmatprep.subr.mxu0 0.0
    %2406 = vmatpush1.msra.mxu0 0.0
    %2407 = vmatprep.subr.mxu0 0.0
    %2408 = vmatpush1.msra.mxu0 0.0
    %2409 = vmatprep.subr.mxu0 0.0
    %2410 = vmatpush1.msra.mxu0 0.0
    %2411 = vmatprep.subr.mxu0 0.0
    %2412 = vmatpush1.msra.mxu0 0.0
    %2413 = vmatprep.subr.mxu0 0.0
    %2414 = vmatpush1.msra.mxu0 0.0
    %2415 = vmatprep.subr.mxu0 0.0
    %2416 = vmatpush1.msra.mxu0 0.0
    %2417 = vmatprep.subr.mxu0 0.0
    %2418 = vmatpush1.msra.mxu0 0.0
    %2419 = vmatprep.subr.mxu0 0.0
    %2420 = vmatpush1.msra.mxu0 0.0
    %2421 = vmatprep.subr.mxu0 0.0
    %2422 = vmatpush1.msra.mxu0 0.0
    %2423 = vmatprep.subr.mxu0 0.0
    %2424 = vmatpush1.msra.mxu0 0.0
    %2425 = vmatprep.subr.mxu0 0.0
    %2426 = vmatpush1.msra.mxu0 0.0
    %2427 = vmatprep.subr.mxu0 0.0
    %2428 = vmatpush1.msra.mxu0 0.0
    %2429 = vmatprep.subr.mxu0 0.0
    %2430 = vmatpush1.msra.mxu0 0.0
    %2431 = vmatprep.subr.mxu0 0.0
    %2432 = vmatpush1.msra.mxu0 0.0
    %2433 = vmatprep.subr.mxu0 0.0
    %2434 = vmatpush1.msra.mxu0 0.0
    %2435 = vmatprep.subr.mxu0 0.0
    %2436 = vmatpush1.msra.mxu0 0.0
    %2437 = vmatprep.subr.mxu0 0.0
    %2438 = vmatpush1.msra.mxu0 0.0
    %2439 = vmatprep.subr.mxu0 0.0
    %2440 = vmatpush1.msra.mxu0 0.0
    %2441 = vmatprep.subr.mxu0 0.0
    %2442 = vmatpush1.msra.mxu0 0.0
    %2443 = vmatprep.subr.mxu0 0.0
    %2444 = vmatpush1.msra.mxu0 0.0
    %2445 = vmatprep.subr.mxu0 0.0
    %2446 = vmatpush1.msra.mxu0 0.0
    %2447 = vmatprep.subr.mxu0 0.0
    %2448 = vmatpush1.msra.mxu0 0.0
    %2449 = vmatprep.subr.mxu0 0.0
    %2450 = vmatpush1.msra.mxu0 0.0
    %2451 = vmatprep.subr.mxu0 0.0
    %2452 = vmatpush1.msra.mxu0 0.0
    %2453 = vmatprep.subr.mxu0 0.0
    %2454 = vmatpush1.msra.mxu0 0.0
    %2455 = vmatprep.mubr.f32.mxu0 0.0
    %2456 = vmatmul.mubr.f32.gmra.mrb[0].mxu0 %v1223
    %v2457 = vpop.f32.mrb[0].mxu0
    %v2458 = vadd.f32 0.0, %v2457
    %v2459 = vpop.f32.mrb[0].mxu0
    %2460 = vmatprep.mubr.f32.mxu0 0.0
    %2461 = vmatmul.mubr.f32.gmra.mrb[0].mxu0 %v1226
    %v2462 = vpop.f32.mrb[0].mxu0
    %v2463 = vadd.f32 0.0, %v2462
    %v2464 = vpop.f32.mrb[0].mxu0
    %2465 = vmatprep.mubr.f32.mxu0 0.0
    %2466 = vmatmul.mubr.f32.gmra.mrb[0].mxu0 %v1229
    %v2467 = vpop.f32.mrb[0].mxu0
    %v2468 = vadd.f32 0.0, %v2467
    %v2469 = vpop.f32.mrb[0].mxu0
    %2470 = vmatprep.mubr.f32.mxu0 0.0
    %2471 = vmatmul.mubr.f32.gmra.mrb[0].mxu0 %v1232
    %v2472 = vpop.f32.mrb[0].mxu0
    %v2473 = vadd.f32 0.0, %v2472
    %v2474 = vpop.f32.mrb[0].mxu0
    %2475 = vdwg.mxu0
    %v2476 = vadd.f32 %v2375, %v2458
    %v2477 = vadd.f32 %v2376, %v2463
    %v2478 = vadd.f32 %v2377, %v2468
    %v2479 = vadd.f32 %v2378, %v2473
    %2480 = vrot.lane.b32.xlu0 %v1583, 92
    %v2481 = vpop.permute.xlu0 %2480
    %2482 = vrot.lane.b32.xlu0 %v1584, 92
    %v2483 = vpop.permute.xlu0 %2482
    %2484 = vrot.lane.b32.xlu0 %v1585, 92
    %v2485 = vpop.permute.xlu0 %2484
    %2486 = vrot.lane.b32.xlu0 %v1586, 92
    %v2487 = vpop.permute.xlu0 %2486
    %2492 = vmatprep.subr.mxu0 0.0
    %2493 = vmatpush1.msra.mxu0 %v2481
    %2494 = vmatprep.subr.mxu0 0.0
    %2495 = vmatpush1.msra.mxu0 %v2483
    %2496 = vmatprep.subr.mxu0 0.0
    %2497 = vmatpush1.msra.mxu0 %v2485
    %2498 = vmatprep.subr.mxu0 0.0
    %2499 = vmatpush1.msra.mxu0 %v2487
    %2500 = vmatprep.subr.mxu0 0.0
    %2501 = vmatpush1.msra.mxu0 0.0
    %2502 = vmatprep.subr.mxu0 0.0
    %2503 = vmatpush1.msra.mxu0 0.0
    %2504 = vmatprep.subr.mxu0 0.0
    %2505 = vmatpush1.msra.mxu0 0.0
    %2506 = vmatprep.subr.mxu0 0.0
    %2507 = vmatpush1.msra.mxu0 0.0
    %2508 = vmatprep.subr.mxu0 0.0
    %2509 = vmatpush1.msra.mxu0 0.0
    %2510 = vmatprep.subr.mxu0 0.0
    %2511 = vmatpush1.msra.mxu0 0.0
    %2512 = vmatprep.subr.mxu0 0.0
    %2513 = vmatpush1.msra.mxu0 0.0
    %2514 = vmatprep.subr.mxu0 0.0
    %2515 = vmatpush1.msra.mxu0 0.0
    %2516 = vmatprep.subr.mxu0 0.0
    %2517 = vmatpush1.msra.mxu0 0.0
    %2518 = vmatprep.subr.mxu0 0.0
    %2519 = vmatpush1.msra.mxu0 0.0
    %2520 = vmatprep.subr.mxu0 0.0
    %2521 = vmatpush1.msra.mxu0 0.0
    %2522 = vmatprep.subr.mxu0 0.0
    %2523 = vmatpush1.msra.mxu0 0.0
    %2524 = vmatprep.subr.mxu0 0.0
    %2525 = vmatpush1.msra.mxu0 0.0
    %2526 = vmatprep.subr.mxu0 0.0
    %2527 = vmatpush1.msra.mxu0 0.0
    %2528 = vmatprep.subr.mxu0 0.0
    %2529 = vmatpush1.msra.mxu0 0.0
    %2530 = vmatprep.subr.mxu0 0.0
    %2531 = vmatpush1.msra.mxu0 0.0
    %2532 = vmatprep.subr.mxu0 0.0
    %2533 = vmatpush1.msra.mxu0 0.0
    %2534 = vmatprep.subr.mxu0 0.0
    %2535 = vmatpush1.msra.mxu0 0.0
    %2536 = vmatprep.subr.mxu0 0.0
    %2537 = vmatpush1.msra.mxu0 0.0
    %2538 = vmatprep.subr.mxu0 0.0
    %2539 = vmatpush1.msra.mxu0 0.0
    %2540 = vmatprep.subr.mxu0 0.0
    %2541 = vmatpush1.msra.mxu0 0.0
    %2542 = vmatprep.subr.mxu0 0.0
    %2543 = vmatpush1.msra.mxu0 0.0
    %2544 = vmatprep.subr.mxu0 0.0
    %2545 = vmatpush1.msra.mxu0 0.0
    %2546 = vmatprep.subr.mxu0 0.0
    %2547 = vmatpush1.msra.mxu0 0.0
    %2548 = vmatprep.subr.mxu0 0.0
    %2549 = vmatpush1.msra.mxu0 0.0
    %2550 = vmatprep.subr.mxu0 0.0
    %2551 = vmatpush1.msra.mxu0 0.0
    %2552 = vmatprep.subr.mxu0 0.0
    %2553 = vmatpush1.msra.mxu0 0.0
    %2554 = vmatprep.subr.mxu0 0.0
    %2555 = vmatpush1.msra.mxu0 0.0
    %2556 = vmatprep.mubr.f32.mxu0 0.0
    %2557 = vmatmul.mubr.f32.gmra.mrb[0].mxu0 %v1341
    %v2558 = vpop.f32.mrb[0].mxu0
    %v2559 = vadd.f32 0.0, %v2558
    %v2560 = vpop.f32.mrb[0].mxu0
    %2561 = vmatprep.mubr.f32.mxu0 0.0
    %2562 = vmatmul.mubr.f32.gmra.mrb[0].mxu0 %v1344
    %v2563 = vpop.f32.mrb[0].mxu0
    %v2564 = vadd.f32 0.0, %v2563
    %v2565 = vpop.f32.mrb[0].mxu0
    %2566 = vmatprep.mubr.f32.mxu0 0.0
    %2567 = vmatmul.mubr.f32.gmra.mrb[0].mxu0 %v1347
    %v2568 = vpop.f32.mrb[0].mxu0
    %v2569 = vadd.f32 0.0, %v2568
    %v2570 = vpop.f32.mrb[0].mxu0
    %2571 = vmatprep.mubr.f32.mxu0 0.0
    %2572 = vmatmul.mubr.f32.gmra.mrb[0].mxu0 %v1350
    %v2573 = vpop.f32.mrb[0].mxu0
    %v2574 = vadd.f32 0.0, %v2573
    %v2575 = vpop.f32.mrb[0].mxu0
    %2576 = vdwg.mxu0
    %v2577 = vadd.f32 %v2476, %v2559
    %v2578 = vadd.f32 %v2477, %v2564
    %v2579 = vadd.f32 %v2478, %v2569
    %v2580 = vadd.f32 %v2479, %v2574
    %2581 = vrot.lane.b32.xlu0 %v1583, 88
    %v2582 = vpop.permute.xlu0 %2581
    %2583 = vrot.lane.b32.xlu0 %v1584, 88
    %v2584 = vpop.permute.xlu0 %2583
    %2585 = vrot.lane.b32.xlu0 %v1585, 88
    %v2586 = vpop.permute.xlu0 %2585
    %2587 = vrot.lane.b32.xlu0 %v1586, 88
    %v2588 = vpop.permute.xlu0 %2587
    %2593 = vmatprep.subr.mxu0 0.0
    %2594 = vmatpush1.msra.mxu0 %v2582
    %2595 = vmatprep.subr.mxu0 0.0
    %2596 = vmatpush1.msra.mxu0 %v2584
    %2597 = vmatprep.subr.mxu0 0.0
    %2598 = vmatpush1.msra.mxu0 %v2586
    %2599 = vmatprep.subr.mxu0 0.0
    %2600 = vmatpush1.msra.mxu0 %v2588
    %2601 = vmatprep.subr.mxu0 0.0
    %2602 = vmatpush1.msra.mxu0 0.0
    %2603 = vmatprep.subr.mxu0 0.0
    %2604 = vmatpush1.msra.mxu0 0.0
    %2605 = vmatprep.subr.mxu0 0.0
    %2606 = vmatpush1.msra.mxu0 0.0
    %2607 = vmatprep.subr.mxu0 0.0
    %2608 = vmatpush1.msra.mxu0 0.0
    %2609 = vmatprep.subr.mxu0 0.0
    %2610 = vmatpush1.msra.mxu0 0.0
    %2611 = vmatprep.subr.mxu0 0.0
    %2612 = vmatpush1.msra.mxu0 0.0
    %2613 = vmatprep.subr.mxu0 0.0
    %2614 = vmatpush1.msra.mxu0 0.0
    %2615 = vmatprep.subr.mxu0 0.0
    %2616 = vmatpush1.msra.mxu0 0.0
    %2617 = vmatprep.subr.mxu0 0.0
    %2618 = vmatpush1.msra.mxu0 0.0
    %2619 = vmatprep.subr.mxu0 0.0
    %2620 = vmatpush1.msra.mxu0 0.0
    %2621 = vmatprep.subr.mxu0 0.0
    %2622 = vmatpush1.msra.mxu0 0.0
    %2623 = vmatprep.subr.mxu0 0.0
    %2624 = vmatpush1.msra.mxu0 0.0
    %2625 = vmatprep.subr.mxu0 0.0
    %2626 = vmatpush1.msra.mxu0 0.0
    %2627 = vmatprep.subr.mxu0 0.0
    %2628 = vmatpush1.msra.mxu0 0.0
    %2629 = vmatprep.subr.mxu0 0.0
    %2630 = vmatpush1.msra.mxu0 0.0
    %2631 = vmatprep.subr.mxu0 0.0
    %2632 = vmatpush1.msra.mxu0 0.0
    %2633 = vmatprep.subr.mxu0 0.0
    %2634 = vmatpush1.msra.mxu0 0.0
    %2635 = vmatprep.subr.mxu0 0.0
    %2636 = vmatpush1.msra.mxu0 0.0
    %2637 = vmatprep.subr.mxu0 0.0
    %2638 = vmatpush1.msra.mxu0 0.0
    %2639 = vmatprep.subr.mxu0 0.0
    %2640 = vmatpush1.msra.mxu0 0.0
    %2641 = vmatprep.subr.mxu0 0.0
    %2642 = vmatpush1.msra.mxu0 0.0
    %2643 = vmatprep.subr.mxu0 0.0
    %2644 = vmatpush1.msra.mxu0 0.0
    %2645 = vmatprep.subr.mxu0 0.0
    %2646 = vmatpush1.msra.mxu0 0.0
    %2647 = vmatprep.subr.mxu0 0.0
    %2648 = vmatpush1.msra.mxu0 0.0
    %2649 = vmatprep.subr.mxu0 0.0
    %2650 = vmatpush1.msra.mxu0 0.0
    %2651 = vmatprep.subr.mxu0 0.0
    %2652 = vmatpush1.msra.mxu0 0.0
    %2653 = vmatprep.subr.mxu0 0.0
    %2654 = vmatpush1.msra.mxu0 0.0
    %2655 = vmatprep.subr.mxu0 0.0
    %2656 = vmatpush1.msra.mxu0 0.0
    %2657 = vmatprep.mubr.f32.mxu0 0.0
    %2658 = vmatmul.mubr.f32.gmra.mrb[0].mxu0 %v1459
    %v2659 = vpop.f32.mrb[0].mxu0
    %v2660 = vadd.f32 0.0, %v2659
    %v2661 = vpop.f32.mrb[0].mxu0
    %2662 = vmatprep.mubr.f32.mxu0 0.0
    %2663 = vmatmul.mubr.f32.gmra.mrb[0].mxu0 %v1462
    %v2664 = vpop.f32.mrb[0].mxu0
    %v2665 = vadd.f32 0.0, %v2664
    %v2666 = vpop.f32.mrb[0].mxu0
    %2667 = vmatprep.mubr.f32.mxu0 0.0
    %2668 = vmatmul.mubr.f32.gmra.mrb[0].mxu0 %v1465
    %v2669 = vpop.f32.mrb[0].mxu0
    %v2670 = vadd.f32 0.0, %v2669
    %v2671 = vpop.f32.mrb[0].mxu0
    %2672 = vmatprep.mubr.f32.mxu0 0.0
    %2673 = vmatmul.mubr.f32.gmra.mrb[0].mxu0 %v1468
    %v2674 = vpop.f32.mrb[0].mxu0
    %v2675 = vadd.f32 0.0, %v2674
    %v2676 = vpop.f32.mrb[0].mxu0
    %2677 = vdwg.mxu0
    %v2678 = vadd.f32 %v2577, %v2660
    %v2679 = vadd.f32 %v2578, %v2665
    %v2680 = vadd.f32 %v2579, %v2670
    %v2681 = vadd.f32 %v2580, %v2675
    %v2682 = vadd.f32 %v2678, %v1562
    %v2683 = vadd.f32 %v2679, %v1567
    %v2684 = vadd.f32 %v2680, %v1572
    %v2685 = vadd.f32 %v2681, %v1577
    %v2686 = vsel %vm47, %v1579, 0.0
    %2687 = vadd.xlane.f32.xlu0 %v2686
    %v2688 = vpop.xlane.xlu0 %2687
    %v2689 = vsel %vm47, %v1580, 0.0
    %2690 = vadd.xlane.f32.xlu0 %v2689
    %v2691 = vpop.xlane.xlu0 %2690
    %v2692 = vsel %vm47, %v1581, 0.0
    %2693 = vadd.xlane.f32.xlu0 %v2692
    %v2694 = vpop.xlane.xlu0 %2693
    %v2695 = vsel %vm47, %v1582, 0.0
    %2696 = vadd.xlane.f32.xlu0 %v2695
    %v2697 = vpop.xlane.xlu0 %2696
    %v2698 = vmul.f32 %v1579, %v1579
    %v2699 = vmul.f32 %v1580, %v1580
    %v2700 = vmul.f32 %v1581, %v1581
    %v2701 = vmul.f32 %v1582, %v1582
    %v2702 = vsel %vm47, %v2698, 0.0
    %2703 = vadd.xlane.f32.xlu0 %v2702
    %v2704 = vpop.xlane.xlu0 %2703
    %v2705 = vsel %vm47, %v2699, 0.0
    %2706 = vadd.xlane.f32.xlu0 %v2705
    %v2707 = vpop.xlane.xlu0 %2706
    %v2708 = vsel %vm47, %v2700, 0.0
    %2709 = vadd.xlane.f32.xlu0 %v2708
    %v2710 = vpop.xlane.xlu0 %2709
    %v2711 = vsel %vm47, %v2701, 0.0
    %2712 = vadd.xlane.f32.xlu0 %v2711
    %v2713 = vpop.xlane.xlu0 %2712
    %v2714 = vsel %vm47, %v2682, 0.0
    %2715 = vadd.xlane.f32.xlu0 %v2714
    %v2716 = vpop.xlane.xlu0 %2715
    %v2717 = vsel %vm47, %v2683, 0.0
    %2718 = vadd.xlane.f32.xlu0 %v2717
    %v2719 = vpop.xlane.xlu0 %2718
    %v2720 = vsel %vm47, %v2684, 0.0
    %2721 = vadd.xlane.f32.xlu0 %v2720
    %v2722 = vpop.xlane.xlu0 %2721
    %v2723 = vsel %vm47, %v2685, 0.0
    %2724 = vadd.xlane.f32.xlu0 %v2723
    %v2725 = vpop.xlane.xlu0 %2724
    %v2726 = vadd.f32 %v2688, %v2716
    %v2727 = vadd.f32 %v2691, %v2719
    %v2728 = vadd.f32 %v2694, %v2722
    %v2729 = vadd.f32 %v2697, %v2725
    %v2730 = vmul.f32 %v2682, %v2682
    %v2731 = vmul.f32 %v2683, %v2683
    %v2732 = vmul.f32 %v2684, %v2684
    %v2733 = vmul.f32 %v2685, %v2685
    %v2734 = vsel %vm47, %v2730, 0.0
    %2735 = vadd.xlane.f32.xlu0 %v2734
    %v2736 = vpop.xlane.xlu0 %2735
    %v2737 = vsel %vm47, %v2731, 0.0
    %2738 = vadd.xlane.f32.xlu0 %v2737
    %v2739 = vpop.xlane.xlu0 %2738
    %v2740 = vsel %vm47, %v2732, 0.0
    %2741 = vadd.xlane.f32.xlu0 %v2740
    %v2742 = vpop.xlane.xlu0 %2741
    %v2743 = vsel %vm47, %v2733, 0.0
    %2744 = vadd.xlane.f32.xlu0 %v2743
    %v2745 = vpop.xlane.xlu0 %2744
    %v2746 = vadd.f32 %v2704, %v2736
    %v2747 = vadd.f32 %v2707, %v2739
    %v2748 = vadd.f32 %v2710, %v2742
    %v2749 = vadd.f32 %v2713, %v2745
    %v2750 = vmul.f32 %v2726, 0.0078125
    %v2751 = vmul.f32 %v2727, 0.0078125
    %v2752 = vmul.f32 %v2728, 0.0078125
    %v2753 = vmul.f32 %v2729, 0.0078125
    %v2754 = vmul.f32 %v2746, 0.0078125
    %v2755 = vmul.f32 %v2747, 0.0078125
    %v2756 = vmul.f32 %v2748, 0.0078125
    %v2757 = vmul.f32 %v2749, 0.0078125
    %v2758 = vmul.f32 %v2750, %v2750
    %v2759 = vmul.f32 %v2751, %v2751
    %v2760 = vmul.f32 %v2752, %v2752
    %v2761 = vmul.f32 %v2753, %v2753
    %v2762 = vsub.f32 %v2754, %v2758
    %v2763 = vsub.f32 %v2755, %v2759
    %v2764 = vsub.f32 %v2756, %v2760
    %v2765 = vsub.f32 %v2757, %v2761
    %v2766 = vmax.f32 %v2762, 0.0
    %v2767 = vmax.f32 %v2763, 0.0
    %v2768 = vmax.f32 %v2764, 0.0
    %v2769 = vmax.f32 %v2765, 0.0
    %v2770 = vadd.f32 %v2766, 1e-05
    %v2771 = vadd.f32 %v2767, 1e-05
    %v2772 = vadd.f32 %v2768, 1e-05
    %v2773 = vadd.f32 %v2769, 1e-05
    %v2774 = vrsqrt.pop %v2770
    %v2775 = vrsqrt.pop %v2771
    %v2776 = vrsqrt.pop %v2772
    %v2777 = vrsqrt.pop %v2773
    %v2778 = vmul.f32 %v34, %v2774
    %v2779 = vmul.f32 %v35, %v2775
    %v2780 = vmul.f32 %v36, %v2776
    %v2781 = vmul.f32 %v37, %v2777
    %v2782 = vmul.f32 %v2750, %v2778
    %v2783 = vmul.f32 %v2751, %v2779
    %v2784 = vmul.f32 %v2752, %v2780
    %v2785 = vmul.f32 %v2753, %v2781
    %2790 = vrot.lane.b32.xlu0 %v2782, 1
    %v2791 = vpop.permute.xlu0 %2790
    %2792 = vrot.lane.b32.xlu0 %v2783, 1
    %v2793 = vpop.permute.xlu0 %2792
    %2794 = vrot.lane.b32.xlu0 %v2784, 1
    %v2795 = vpop.permute.xlu0 %2794
    %2796 = vrot.lane.b32.xlu0 %v2785, 1
    %v2797 = vpop.permute.xlu0 %2796
    %v2802 = vsub.f32 %v34, %v2791
    %v2803 = vsub.f32 %v35, %v2793
    %v2804 = vsub.f32 %v36, %v2795
    %v2805 = vsub.f32 %v37, %v2797
    %2807 = vset.pattern.permute.xlu0 3
    %2808 = vperm.xlu0 %2807, %v2778
    %v2809 = vpop.permute.xlu0 %2808
    %2812 = vset.pattern.permute.xlu0 3
    %2813 = vperm.xlu0 %2812, %v2779
    %v2814 = vpop.permute.xlu0 %2813
    %2817 = vset.pattern.permute.xlu0 3
    %2818 = vperm.xlu0 %2817, %v2780
    %v2819 = vpop.permute.xlu0 %2818
    %2822 = vset.pattern.permute.xlu0 3
    %2823 = vperm.xlu0 %2822, %v2781
    %v2824 = vpop.permute.xlu0 %2823
    %v2826 = vmul.f32 %v1579, %v2809
    %v2827 = vmul.f32 %v1580, %v2814
    %v2828 = vmul.f32 %v1581, %v2819
    %v2829 = vmul.f32 %v1582, %v2824
    %2831 = vset.pattern.permute.xlu0 4
    %2832 = vperm.xlu0 %2831, %v2802
    %v2833 = vpop.permute.xlu0 %2832
    %2836 = vset.pattern.permute.xlu0 4
    %2837 = vperm.xlu0 %2836, %v2803
    %v2838 = vpop.permute.xlu0 %2837
    %2841 = vset.pattern.permute.xlu0 4
    %2842 = vperm.xlu0 %2841, %v2804
    %v2843 = vpop.permute.xlu0 %2842
    %2846 = vset.pattern.permute.xlu0 4
    %2847 = vperm.xlu0 %2846, %v2805
    %v2848 = vpop.permute.xlu0 %2847
    %v2850 = vadd.f32 %v2826, %v2833
    %v2851 = vadd.f32 %v2827, %v2838
    %v2852 = vadd.f32 %v2828, %v2843
    %v2853 = vadd.f32 %v2829, %v2848
    %v2854 = vmax.f32 %v2850, 0.0
    %v2855 = vmax.f32 %v2851, 0.0
    %v2856 = vmax.f32 %v2852, 0.0
    %v2857 = vmax.f32 %v2853, 0.0
    %v2858 = vmul.f32 %v2682, %v2809
    %v2859 = vmul.f32 %v2683, %v2814
    %v2860 = vmul.f32 %v2684, %v2819
    %v2861 = vmul.f32 %v2685, %v2824
    %v2862 = vadd.f32 %v2858, %v2833
    %v2863 = vadd.f32 %v2859, %v2838
    %v2864 = vadd.f32 %v2860, %v2843
    %v2865 = vadd.f32 %v2861, %v2848
    %v2866 = vmax.f32 %v2862, 0.0
    %v2867 = vmax.f32 %v2863, 0.0
    %v2868 = vmax.f32 %v2864, 0.0
    %v2869 = vmax.f32 %v2865, 0.0
    %2874 = vrot.lane.b32.xlu0 %v2854, 20
    %v2875 = vpop.permute.xlu0 %2874
    %2876 = vrot.lane.b32.xlu0 %v2855, 20
    %v2877 = vpop.permute.xlu0 %2876
    %2878 = vrot.lane.b32.xlu0 %v2856, 20
    %v2879 = vpop.permute.xlu0 %2878
    %2880 = vrot.lane.b32.xlu0 %v2857, 20
    %v2881 = vpop.permute.xlu0 %2880
    %2886 = vst.msk [vmem:[#allocation2] sm:$0xff] %vm248, %v2875
    %2887 = vst.msk [vmem:[#allocation2 + $0x8] sm:$0xff] %vm248, %v2877
    %2888 = vst.msk [vmem:[#allocation2 + $0x10] sm:$0xff] %vm248, %v2879
    %2889 = vst.msk [vmem:[#allocation2 + $0x18] sm:$0xff] %vm248, %v2881
    %2894 = vrot.lane.b32.xlu0 %v2866, 20
    %v2895 = vpop.permute.xlu0 %2894
    %2896 = vrot.lane.b32.xlu0 %v2867, 20
    %v2897 = vpop.permute.xlu0 %2896
    %2898 = vrot.lane.b32.xlu0 %v2868, 20
    %v2899 = vpop.permute.xlu0 %2898
    %2900 = vrot.lane.b32.xlu0 %v2869, 20
    %v2901 = vpop.permute.xlu0 %2900
    %2906 = vst.msk [vmem:[%s25] sm:$0xff] %vm248, %v2895
    %2907 = vst.msk [vmem:[%s25 + $0x8] sm:$0xff] %vm248, %v2897
    %2908 = vst.msk [vmem:[%s25 + $0x10] sm:$0xff] %vm248, %v2899
    %2909 = vst.msk [vmem:[%s25 + $0x18] sm:$0xff] %vm248, %v2901
    %s2910 = scalar_lea.vmem %s2, 352
    %v2911 = vld [vmem:[%s2910] sm:$0xff]
    %v2912 = vld [vmem:[%s2910 + $0x8] sm:$0xff]
    %v2913 = vld [vmem:[%s2910 + $0x10] sm:$0xff]
    %v2914 = vld [vmem:[%s2910 + $0x18] sm:$0xff]
    %v2915 = vld [vmem:[#allocation2] sm:$0xff]
    %v2916 = vld [vmem:[#allocation2 + $0x8] sm:$0xff]
    %v2917 = vld [vmem:[#allocation2 + $0x10] sm:$0xff]
    %v2918 = vld [vmem:[#allocation2 + $0x18] sm:$0xff]
    %s2919 = scalar_lea.vmem %s2, 384
    %v2920 = vld [vmem:[%s2919] sm:$0xff]
    %v2921 = vld [vmem:[%s2919 + $0x8] sm:$0xff]
    %v2922 = vld [vmem:[%s2919 + $0x10] sm:$0xff]
    %v2923 = vld [vmem:[%s2919 + $0x18] sm:$0xff]
    %2928 = vrot.lane.b32.xlu0 %v2915, 124
    %v2929 = vpop.permute.xlu0 %2928
    %2930 = vrot.lane.b32.xlu0 %v2916, 124
    %v2931 = vpop.permute.xlu0 %2930
    %2932 = vrot.lane.b32.xlu0 %v2917, 124
    %v2933 = vpop.permute.xlu0 %2932
    %2934 = vrot.lane.b32.xlu0 %v2918, 124
    %v2935 = vpop.permute.xlu0 %2934
    %v2941 = vsel %vm302, %v2920, 0
    %v2944 = vsel %vm302, %v2921, 0
    %v2947 = vsel %vm302, %v2922, 0
    %v2950 = vsel %vm302, %v2923, 0
    %2952 = vmatprep.subr.mxu0 0.0
    %2953 = vmatpush1.msra.mxu0 %v2929
    %2954 = vmatprep.subr.mxu0 0.0
    %2955 = vmatpush1.msra.mxu0 %v2931
    %2956 = vmatprep.subr.mxu0 0.0
    %2957 = vmatpush1.msra.mxu0 %v2933
    %2958 = vmatprep.subr.mxu0 0.0
    %2959 = vmatpush1.msra.mxu0 %v2935
    %2960 = vmatprep.subr.mxu0 0.0
    %2961 = vmatpush1.msra.mxu0 0.0
    %2962 = vmatprep.subr.mxu0 0.0
    %2963 = vmatpush1.msra.mxu0 0.0
    %2964 = vmatprep.subr.mxu0 0.0
    %2965 = vmatpush1.msra.mxu0 0.0
    %2966 = vmatprep.subr.mxu0 0.0
    %2967 = vmatpush1.msra.mxu0 0.0
    %2968 = vmatprep.subr.mxu0 0.0
    %2969 = vmatpush1.msra.mxu0 0.0
    %2970 = vmatprep.subr.mxu0 0.0
    %2971 = vmatpush1.msra.mxu0 0.0
    %2972 = vmatprep.subr.mxu0 0.0
    %2973 = vmatpush1.msra.mxu0 0.0
    %2974 = vmatprep.subr.mxu0 0.0
    %2975 = vmatpush1.msra.mxu0 0.0
    %2976 = vmatprep.subr.mxu0 0.0
    %2977 = vmatpush1.msra.mxu0 0.0
    %2978 = vmatprep.subr.mxu0 0.0
    %2979 = vmatpush1.msra.mxu0 0.0
    %2980 = vmatprep.subr.mxu0 0.0
    %2981 = vmatpush1.msra.mxu0 0.0
    %2982 = vmatprep.subr.mxu0 0.0
    %2983 = vmatpush1.msra.mxu0 0.0
    %2984 = vmatprep.subr.mxu0 0.0
    %2985 = vmatpush1.msra.mxu0 0.0
    %2986 = vmatprep.subr.mxu0 0.0
    %2987 = vmatpush1.msra.mxu0 0.0
    %2988 = vmatprep.subr.mxu0 0.0
    %2989 = vmatpush1.msra.mxu0 0.0
    %2990 = vmatprep.subr.mxu0 0.0
    %2991 = vmatpush1.msra.mxu0 0.0
    %2992 = vmatprep.subr.mxu0 0.0
    %2993 = vmatpush1.msra.mxu0 0.0
    %2994 = vmatprep.subr.mxu0 0.0
    %2995 = vmatpush1.msra.mxu0 0.0
    %2996 = vmatprep.subr.mxu0 0.0
    %2997 = vmatpush1.msra.mxu0 0.0
    %2998 = vmatprep.subr.mxu0 0.0
    %2999 = vmatpush1.msra.mxu0 0.0
    %3000 = vmatprep.subr.mxu0 0.0
    %3001 = vmatpush1.msra.mxu0 0.0
    %3002 = vmatprep.subr.mxu0 0.0
    %3003 = vmatpush1.msra.mxu0 0.0
    %3004 = vmatprep.subr.mxu0 0.0
    %3005 = vmatpush1.msra.mxu0 0.0
    %3006 = vmatprep.subr.mxu0 0.0
    %3007 = vmatpush1.msra.mxu0 0.0
    %3008 = vmatprep.subr.mxu0 0.0
    %3009 = vmatpush1.msra.mxu0 0.0
    %3010 = vmatprep.subr.mxu0 0.0
    %3011 = vmatpush1.msra.mxu0 0.0
    %3012 = vmatprep.subr.mxu0 0.0
    %3013 = vmatpush1.msra.mxu0 0.0
    %3014 = vmatprep.subr.mxu0 0.0
    %3015 = vmatpush1.msra.mxu0 0.0
    %3016 = vmatprep.mubr.f32.mxu0 0.0
    %3017 = vmatmul.mubr.f32.gmra.mrb[0].mxu0 %v2941
    %v3018 = vpop.f32.mrb[0].mxu0
    %v3019 = vadd.f32 0.0, %v3018
    %v3020 = vpop.f32.mrb[0].mxu0
    %3021 = vmatprep.mubr.f32.mxu0 0.0
    %3022 = vmatmul.mubr.f32.gmra.mrb[0].mxu0 %v2944
    %v3023 = vpop.f32.mrb[0].mxu0
    %v3024 = vadd.f32 0.0, %v3023
    %v3025 = vpop.f32.mrb[0].mxu0
    %3026 = vmatprep.mubr.f32.mxu0 0.0
    %3027 = vmatmul.mubr.f32.gmra.mrb[0].mxu0 %v2947
    %v3028 = vpop.f32.mrb[0].mxu0
    %v3029 = vadd.f32 0.0, %v3028
    %v3030 = vpop.f32.mrb[0].mxu0
    %3031 = vmatprep.mubr.f32.mxu0 0.0
    %3032 = vmatmul.mubr.f32.gmra.mrb[0].mxu0 %v2950
    %v3033 = vpop.f32.mrb[0].mxu0
    %v3034 = vadd.f32 0.0, %v3033
    %v3035 = vpop.f32.mrb[0].mxu0
    %3036 = vdwg.mxu0
    %v3038 = vsel %vm302, %v2911, 0
    %v3041 = vsel %vm302, %v2912, 0
    %v3044 = vsel %vm302, %v2913, 0
    %v3047 = vsel %vm302, %v2914, 0
    %3049 = vmatprep.subr.mxu0 0.0
    %3050 = vmatpush1.msra.mxu0 %v2915
    %3051 = vmatprep.subr.mxu0 0.0
    %3052 = vmatpush1.msra.mxu0 %v2916
    %3053 = vmatprep.subr.mxu0 0.0
    %3054 = vmatpush1.msra.mxu0 %v2917
    %3055 = vmatprep.subr.mxu0 0.0
    %3056 = vmatpush1.msra.mxu0 %v2918
    %3057 = vmatprep.subr.mxu0 0.0
    %3058 = vmatpush1.msra.mxu0 0.0
    %3059 = vmatprep.subr.mxu0 0.0
    %3060 = vmatpush1.msra.mxu0 0.0
    %3061 = vmatprep.subr.mxu0 0.0
    %3062 = vmatpush1.msra.mxu0 0.0
    %3063 = vmatprep.subr.mxu0 0.0
    %3064 = vmatpush1.msra.mxu0 0.0
    %3065 = vmatprep.subr.mxu0 0.0
    %3066 = vmatpush1.msra.mxu0 0.0
    %3067 = vmatprep.subr.mxu0 0.0
    %3068 = vmatpush1.msra.mxu0 0.0
    %3069 = vmatprep.subr.mxu0 0.0
    %3070 = vmatpush1.msra.mxu0 0.0
    %3071 = vmatprep.subr.mxu0 0.0
    %3072 = vmatpush1.msra.mxu0 0.0
    %3073 = vmatprep.subr.mxu0 0.0
    %3074 = vmatpush1.msra.mxu0 0.0
    %3075 = vmatprep.subr.mxu0 0.0
    %3076 = vmatpush1.msra.mxu0 0.0
    %3077 = vmatprep.subr.mxu0 0.0
    %3078 = vmatpush1.msra.mxu0 0.0
    %3079 = vmatprep.subr.mxu0 0.0
    %3080 = vmatpush1.msra.mxu0 0.0
    %3081 = vmatprep.subr.mxu0 0.0
    %3082 = vmatpush1.msra.mxu0 0.0
    %3083 = vmatprep.subr.mxu0 0.0
    %3084 = vmatpush1.msra.mxu0 0.0
    %3085 = vmatprep.subr.mxu0 0.0
    %3086 = vmatpush1.msra.mxu0 0.0
    %3087 = vmatprep.subr.mxu0 0.0
    %3088 = vmatpush1.msra.mxu0 0.0
    %3089 = vmatprep.subr.mxu0 0.0
    %3090 = vmatpush1.msra.mxu0 0.0
    %3091 = vmatprep.subr.mxu0 0.0
    %3092 = vmatpush1.msra.mxu0 0.0
    %3093 = vmatprep.subr.mxu0 0.0
    %3094 = vmatpush1.msra.mxu0 0.0
    %3095 = vmatprep.subr.mxu0 0.0
    %3096 = vmatpush1.msra.mxu0 0.0
    %3097 = vmatprep.subr.mxu0 0.0
    %3098 = vmatpush1.msra.mxu0 0.0
    %3099 = vmatprep.subr.mxu0 0.0
    %3100 = vmatpush1.msra.mxu0 0.0
    %3101 = vmatprep.subr.mxu0 0.0
    %3102 = vmatpush1.msra.mxu0 0.0
    %3103 = vmatprep.subr.mxu0 0.0
    %3104 = vmatpush1.msra.mxu0 0.0
    %3105 = vmatprep.subr.mxu0 0.0
    %3106 = vmatpush1.msra.mxu0 0.0
    %3107 = vmatprep.subr.mxu0 0.0
    %3108 = vmatpush1.msra.mxu0 0.0
    %3109 = vmatprep.subr.mxu0 0.0
    %3110 = vmatpush1.msra.mxu0 0.0
    %3111 = vmatprep.subr.mxu0 0.0
    %3112 = vmatpush1.msra.mxu0 0.0
    %3113 = vmatprep.mubr.f32.mxu0 0.0
    %3114 = vmatmul.mubr.f32.gmra.mrb[0].mxu0 %v3038
    %v3115 = vpop.f32.mrb[0].mxu0
    %v3116 = vadd.f32 %v3019, %v3115
    %v3117 = vpop.f32.mrb[0].mxu0
    %3118 = vmatprep.mubr.f32.mxu0 0.0
    %3119 = vmatmul.mubr.f32.gmra.mrb[0].mxu0 %v3041
    %v3120 = vpop.f32.mrb[0].mxu0
    %v3121 = vadd.f32 %v3024, %v3120
    %v3122 = vpop.f32.mrb[0].mxu0
    %3123 = vmatprep.mubr.f32.mxu0 0.0
    %3124 = vmatmul.mubr.f32.gmra.mrb[0].mxu0 %v3044
    %v3125 = vpop.f32.mrb[0].mxu0
    %v3126 = vadd.f32 %v3029, %v3125
    %v3127 = vpop.f32.mrb[0].mxu0
    %3128 = vmatprep.mubr.f32.mxu0 0.0
    %3129 = vmatmul.mubr.f32.gmra.mrb[0].mxu0 %v3047
    %v3130 = vpop.f32.mrb[0].mxu0
    %v3131 = vadd.f32 %v3034, %v3130
    %v3132 = vpop.f32.mrb[0].mxu0
    %3133 = vdwg.mxu0
    %s3134 = scalar_lea.vmem %s2, 416
    %v3135 = vld [vmem:[%s3134] sm:$0xff]
    %v3136 = vld [vmem:[%s3134 + $0x8] sm:$0xff]
    %v3137 = vld [vmem:[%s3134 + $0x10] sm:$0xff]
    %v3138 = vld [vmem:[%s3134 + $0x18] sm:$0xff]
    %3139 = vrot.lane.b32.xlu0 %v2915, 120
    %v3140 = vpop.permute.xlu0 %3139
    %3141 = vrot.lane.b32.xlu0 %v2916, 120
    %v3142 = vpop.permute.xlu0 %3141
    %3143 = vrot.lane.b32.xlu0 %v2917, 120
    %v3144 = vpop.permute.xlu0 %3143
    %3145 = vrot.lane.b32.xlu0 %v2918, 120
    %v3146 = vpop.permute.xlu0 %3145
    %v3152 = vsel %vm302, %v3135, 0
    %v3155 = vsel %vm302, %v3136, 0
    %v3158 = vsel %vm302, %v3137, 0
    %v3161 = vsel %vm302, %v3138, 0
    %3163 = vmatprep.subr.mxu0 0.0
    %3164 = vmatpush1.msra.mxu0 %v3140
    %3165 = vmatprep.subr.mxu0 0.0
    %3166 = vmatpush1.msra.mxu0 %v3142
    %3167 = vmatprep.subr.mxu0 0.0
    %3168 = vmatpush1.msra.mxu0 %v3144
    %3169 = vmatprep.subr.mxu0 0.0
    %3170 = vmatpush1.msra.mxu0 %v3146
    %3171 = vmatprep.subr.mxu0 0.0
    %3172 = vmatpush1.msra.mxu0 0.0
    %3173 = vmatprep.subr.mxu0 0.0
    %3174 = vmatpush1.msra.mxu0 0.0
    %3175 = vmatprep.subr.mxu0 0.0
    %3176 = vmatpush1.msra.mxu0 0.0
    %3177 = vmatprep.subr.mxu0 0.0
    %3178 = vmatpush1.msra.mxu0 0.0
    %3179 = vmatprep.subr.mxu0 0.0
    %3180 = vmatpush1.msra.mxu0 0.0
    %3181 = vmatprep.subr.mxu0 0.0
    %3182 = vmatpush1.msra.mxu0 0.0
    %3183 = vmatprep.subr.mxu0 0.0
    %3184 = vmatpush1.msra.mxu0 0.0
    %3185 = vmatprep.subr.mxu0 0.0
    %3186 = vmatpush1.msra.mxu0 0.0
    %3187 = vmatprep.subr.mxu0 0.0
    %3188 = vmatpush1.msra.mxu0 0.0
    %3189 = vmatprep.subr.mxu0 0.0
    %3190 = vmatpush1.msra.mxu0 0.0
    %3191 = vmatprep.subr.mxu0 0.0
    %3192 = vmatpush1.msra.mxu0 0.0
    %3193 = vmatprep.subr.mxu0 0.0
    %3194 = vmatpush1.msra.mxu0 0.0
    %3195 = vmatprep.subr.mxu0 0.0
    %3196 = vmatpush1.msra.mxu0 0.0
    %3197 = vmatprep.subr.mxu0 0.0
    %3198 = vmatpush1.msra.mxu0 0.0
    %3199 = vmatprep.subr.mxu0 0.0
    %3200 = vmatpush1.msra.mxu0 0.0
    %3201 = vmatprep.subr.mxu0 0.0
    %3202 = vmatpush1.msra.mxu0 0.0
    %3203 = vmatprep.subr.mxu0 0.0
    %3204 = vmatpush1.msra.mxu0 0.0
    %3205 = vmatprep.subr.mxu0 0.0
    %3206 = vmatpush1.msra.mxu0 0.0
    %3207 = vmatprep.subr.mxu0 0.0
    %3208 = vmatpush1.msra.mxu0 0.0
    %3209 = vmatprep.subr.mxu0 0.0
    %3210 = vmatpush1.msra.mxu0 0.0
    %3211 = vmatprep.subr.mxu0 0.0
    %3212 = vmatpush1.msra.mxu0 0.0
    %3213 = vmatprep.subr.mxu0 0.0
    %3214 = vmatpush1.msra.mxu0 0.0
    %3215 = vmatprep.subr.mxu0 0.0
    %3216 = vmatpush1.msra.mxu0 0.0
    %3217 = vmatprep.subr.mxu0 0.0
    %3218 = vmatpush1.msra.mxu0 0.0
    %3219 = vmatprep.subr.mxu0 0.0
    %3220 = vmatpush1.msra.mxu0 0.0
    %3221 = vmatprep.subr.mxu0 0.0
    %3222 = vmatpush1.msra.mxu0 0.0
    %3223 = vmatprep.subr.mxu0 0.0
    %3224 = vmatpush1.msra.mxu0 0.0
    %3225 = vmatprep.subr.mxu0 0.0
    %3226 = vmatpush1.msra.mxu0 0.0
    %3227 = vmatprep.mubr.f32.mxu0 0.0
    %3228 = vmatmul.mubr.f32.gmra.mrb[0].mxu0 %v3152
    %v3229 = vpop.f32.mrb[0].mxu0
    %v3230 = vadd.f32 0.0, %v3229
    %v3231 = vpop.f32.mrb[0].mxu0
    %3232 = vmatprep.mubr.f32.mxu0 0.0
    %3233 = vmatmul.mubr.f32.gmra.mrb[0].mxu0 %v3155
    %v3234 = vpop.f32.mrb[0].mxu0
    %v3235 = vadd.f32 0.0, %v3234
    %v3236 = vpop.f32.mrb[0].mxu0
    %3237 = vmatprep.mubr.f32.mxu0 0.0
    %3238 = vmatmul.mubr.f32.gmra.mrb[0].mxu0 %v3158
    %v3239 = vpop.f32.mrb[0].mxu0
    %v3240 = vadd.f32 0.0, %v3239
    %v3241 = vpop.f32.mrb[0].mxu0
    %3242 = vmatprep.mubr.f32.mxu0 0.0
    %3243 = vmatmul.mubr.f32.gmra.mrb[0].mxu0 %v3161
    %v3244 = vpop.f32.mrb[0].mxu0
    %v3245 = vadd.f32 0.0, %v3244
    %v3246 = vpop.f32.mrb[0].mxu0
    %3247 = vdwg.mxu0
    %v3248 = vadd.f32 %v3116, %v3230
    %v3249 = vadd.f32 %v3121, %v3235
    %v3250 = vadd.f32 %v3126, %v3240
    %v3251 = vadd.f32 %v3131, %v3245
    %s3252 = scalar_lea.vmem %s2, 448
    %v3253 = vld [vmem:[%s3252] sm:$0xff]
    %v3254 = vld [vmem:[%s3252 + $0x8] sm:$0xff]
    %v3255 = vld [vmem:[%s3252 + $0x10] sm:$0xff]
    %v3256 = vld [vmem:[%s3252 + $0x18] sm:$0xff]
    %3257 = vrot.lane.b32.xlu0 %v2915, 116
    %v3258 = vpop.permute.xlu0 %3257
    %3259 = vrot.lane.b32.xlu0 %v2916, 116
    %v3260 = vpop.permute.xlu0 %3259
    %3261 = vrot.lane.b32.xlu0 %v2917, 116
    %v3262 = vpop.permute.xlu0 %3261
    %3263 = vrot.lane.b32.xlu0 %v2918, 116
    %v3264 = vpop.permute.xlu0 %3263
    %v3270 = vsel %vm302, %v3253, 0
    %v3273 = vsel %vm302, %v3254, 0
    %v3276 = vsel %vm302, %v3255, 0
    %v3279 = vsel %vm302, %v3256, 0
    %3281 = vmatprep.subr.mxu0 0.0
    %3282 = vmatpush1.msra.mxu0 %v3258
    %3283 = vmatprep.subr.mxu0 0.0
    %3284 = vmatpush1.msra.mxu0 %v3260
    %3285 = vmatprep.subr.mxu0 0.0
    %3286 = vmatpush1.msra.mxu0 %v3262
    %3287 = vmatprep.subr.mxu0 0.0
    %3288 = vmatpush1.msra.mxu0 %v3264
    %3289 = vmatprep.subr.mxu0 0.0
    %3290 = vmatpush1.msra.mxu0 0.0
    %3291 = vmatprep.subr.mxu0 0.0
    %3292 = vmatpush1.msra.mxu0 0.0
    %3293 = vmatprep.subr.mxu0 0.0
    %3294 = vmatpush1.msra.mxu0 0.0
    %3295 = vmatprep.subr.mxu0 0.0
    %3296 = vmatpush1.msra.mxu0 0.0
    %3297 = vmatprep.subr.mxu0 0.0
    %3298 = vmatpush1.msra.mxu0 0.0
    %3299 = vmatprep.subr.mxu0 0.0
    %3300 = vmatpush1.msra.mxu0 0.0
    %3301 = vmatprep.subr.mxu0 0.0
    %3302 = vmatpush1.msra.mxu0 0.0
    %3303 = vmatprep.subr.mxu0 0.0
    %3304 = vmatpush1.msra.mxu0 0.0
    %3305 = vmatprep.subr.mxu0 0.0
    %3306 = vmatpush1.msra.mxu0 0.0
    %3307 = vmatprep.subr.mxu0 0.0
    %3308 = vmatpush1.msra.mxu0 0.0
    %3309 = vmatprep.subr.mxu0 0.0
    %3310 = vmatpush1.msra.mxu0 0.0
    %3311 = vmatprep.subr.mxu0 0.0
    %3312 = vmatpush1.msra.mxu0 0.0
    %3313 = vmatprep.subr.mxu0 0.0
    %3314 = vmatpush1.msra.mxu0 0.0
    %3315 = vmatprep.subr.mxu0 0.0
    %3316 = vmatpush1.msra.mxu0 0.0
    %3317 = vmatprep.subr.mxu0 0.0
    %3318 = vmatpush1.msra.mxu0 0.0
    %3319 = vmatprep.subr.mxu0 0.0
    %3320 = vmatpush1.msra.mxu0 0.0
    %3321 = vmatprep.subr.mxu0 0.0
    %3322 = vmatpush1.msra.mxu0 0.0
    %3323 = vmatprep.subr.mxu0 0.0
    %3324 = vmatpush1.msra.mxu0 0.0
    %3325 = vmatprep.subr.mxu0 0.0
    %3326 = vmatpush1.msra.mxu0 0.0
    %3327 = vmatprep.subr.mxu0 0.0
    %3328 = vmatpush1.msra.mxu0 0.0
    %3329 = vmatprep.subr.mxu0 0.0
    %3330 = vmatpush1.msra.mxu0 0.0
    %3331 = vmatprep.subr.mxu0 0.0
    %3332 = vmatpush1.msra.mxu0 0.0
    %3333 = vmatprep.subr.mxu0 0.0
    %3334 = vmatpush1.msra.mxu0 0.0
    %3335 = vmatprep.subr.mxu0 0.0
    %3336 = vmatpush1.msra.mxu0 0.0
    %3337 = vmatprep.subr.mxu0 0.0
    %3338 = vmatpush1.msra.mxu0 0.0
    %3339 = vmatprep.subr.mxu0 0.0
    %3340 = vmatpush1.msra.mxu0 0.0
    %3341 = vmatprep.subr.mxu0 0.0
    %3342 = vmatpush1.msra.mxu0 0.0
    %3343 = vmatprep.subr.mxu0 0.0
    %3344 = vmatpush1.msra.mxu0 0.0
    %3345 = vmatprep.mubr.f32.mxu0 0.0
    %3346 = vmatmul.mubr.f32.gmra.mrb[0].mxu0 %v3270
    %v3347 = vpop.f32.mrb[0].mxu0
    %v3348 = vadd.f32 0.0, %v3347
    %v3349 = vpop.f32.mrb[0].mxu0
    %3350 = vmatprep.mubr.f32.mxu0 0.0
    %3351 = vmatmul.mubr.f32.gmra.mrb[0].mxu0 %v3273
    %v3352 = vpop.f32.mrb[0].mxu0
    %v3353 = vadd.f32 0.0, %v3352
    %v3354 = vpop.f32.mrb[0].mxu0
    %3355 = vmatprep.mubr.f32.mxu0 0.0
    %3356 = vmatmul.mubr.f32.gmra.mrb[0].mxu0 %v3276
    %v3357 = vpop.f32.mrb[0].mxu0
    %v3358 = vadd.f32 0.0, %v3357
    %v3359 = vpop.f32.mrb[0].mxu0
    %3360 = vmatprep.mubr.f32.mxu0 0.0
    %3361 = vmatmul.mubr.f32.gmra.mrb[0].mxu0 %v3279
    %v3362 = vpop.f32.mrb[0].mxu0
    %v3363 = vadd.f32 0.0, %v3362
    %v3364 = vpop.f32.mrb[0].mxu0
    %3365 = vdwg.mxu0
    %v3366 = vadd.f32 %v3248, %v3348
    %v3367 = vadd.f32 %v3249, %v3353
    %v3368 = vadd.f32 %v3250, %v3358
    %v3369 = vadd.f32 %v3251, %v3363
    %s3370 = scalar_lea.vmem %s2, 480
    %v3371 = vld [vmem:[%s3370] sm:$0xff]
    %v3372 = vld [vmem:[%s3370 + $0x8] sm:$0xff]
    %v3373 = vld [vmem:[%s3370 + $0x10] sm:$0xff]
    %v3374 = vld [vmem:[%s3370 + $0x18] sm:$0xff]
    %3375 = vrot.lane.b32.xlu0 %v2915, 112
    %v3376 = vpop.permute.xlu0 %3375
    %3377 = vrot.lane.b32.xlu0 %v2916, 112
    %v3378 = vpop.permute.xlu0 %3377
    %3379 = vrot.lane.b32.xlu0 %v2917, 112
    %v3380 = vpop.permute.xlu0 %3379
    %3381 = vrot.lane.b32.xlu0 %v2918, 112
    %v3382 = vpop.permute.xlu0 %3381
    %v3388 = vsel %vm302, %v3371, 0
    %v3391 = vsel %vm302, %v3372, 0
    %v3394 = vsel %vm302, %v3373, 0
    %v3397 = vsel %vm302, %v3374, 0
    %3399 = vmatprep.subr.mxu0 0.0
    %3400 = vmatpush1.msra.mxu0 %v3376
    %3401 = vmatprep.subr.mxu0 0.0
    %3402 = vmatpush1.msra.mxu0 %v3378
    %3403 = vmatprep.subr.mxu0 0.0
    %3404 = vmatpush1.msra.mxu0 %v3380
    %3405 = vmatprep.subr.mxu0 0.0
    %3406 = vmatpush1.msra.mxu0 %v3382
    %3407 = vmatprep.subr.mxu0 0.0
    %3408 = vmatpush1.msra.mxu0 0.0
    %3409 = vmatprep.subr.mxu0 0.0
    %3410 = vmatpush1.msra.mxu0 0.0
    %3411 = vmatprep.subr.mxu0 0.0
    %3412 = vmatpush1.msra.mxu0 0.0
    %3413 = vmatprep.subr.mxu0 0.0
    %3414 = vmatpush1.msra.mxu0 0.0
    %3415 = vmatprep.subr.mxu0 0.0
    %3416 = vmatpush1.msra.mxu0 0.0
    %3417 = vmatprep.subr.mxu0 0.0
    %3418 = vmatpush1.msra.mxu0 0.0
    %3419 = vmatprep.subr.mxu0 0.0
    %3420 = vmatpush1.msra.mxu0 0.0
    %3421 = vmatprep.subr.mxu0 0.0
    %3422 = vmatpush1.msra.mxu0 0.0
    %3423 = vmatprep.subr.mxu0 0.0
    %3424 = vmatpush1.msra.mxu0 0.0
    %3425 = vmatprep.subr.mxu0 0.0
    %3426 = vmatpush1.msra.mxu0 0.0
    %3427 = vmatprep.subr.mxu0 0.0
    %3428 = vmatpush1.msra.mxu0 0.0
    %3429 = vmatprep.subr.mxu0 0.0
    %3430 = vmatpush1.msra.mxu0 0.0
    %3431 = vmatprep.subr.mxu0 0.0
    %3432 = vmatpush1.msra.mxu0 0.0
    %3433 = vmatprep.subr.mxu0 0.0
    %3434 = vmatpush1.msra.mxu0 0.0
    %3435 = vmatprep.subr.mxu0 0.0
    %3436 = vmatpush1.msra.mxu0 0.0
    %3437 = vmatprep.subr.mxu0 0.0
    %3438 = vmatpush1.msra.mxu0 0.0
    %3439 = vmatprep.subr.mxu0 0.0
    %3440 = vmatpush1.msra.mxu0 0.0
    %3441 = vmatprep.subr.mxu0 0.0
    %3442 = vmatpush1.msra.mxu0 0.0
    %3443 = vmatprep.subr.mxu0 0.0
    %3444 = vmatpush1.msra.mxu0 0.0
    %3445 = vmatprep.subr.mxu0 0.0
    %3446 = vmatpush1.msra.mxu0 0.0
    %3447 = vmatprep.subr.mxu0 0.0
    %3448 = vmatpush1.msra.mxu0 0.0
    %3449 = vmatprep.subr.mxu0 0.0
    %3450 = vmatpush1.msra.mxu0 0.0
    %3451 = vmatprep.subr.mxu0 0.0
    %3452 = vmatpush1.msra.mxu0 0.0
    %3453 = vmatprep.subr.mxu0 0.0
    %3454 = vmatpush1.msra.mxu0 0.0
    %3455 = vmatprep.subr.mxu0 0.0
    %3456 = vmatpush1.msra.mxu0 0.0
    %3457 = vmatprep.subr.mxu0 0.0
    %3458 = vmatpush1.msra.mxu0 0.0
    %3459 = vmatprep.subr.mxu0 0.0
    %3460 = vmatpush1.msra.mxu0 0.0
    %3461 = vmatprep.subr.mxu0 0.0
    %3462 = vmatpush1.msra.mxu0 0.0
    %3463 = vmatprep.mubr.f32.mxu0 0.0
    %3464 = vmatmul.mubr.f32.gmra.mrb[0].mxu0 %v3388
    %v3465 = vpop.f32.mrb[0].mxu0
    %v3466 = vadd.f32 0.0, %v3465
    %v3467 = vpop.f32.mrb[0].mxu0
    %3468 = vmatprep.mubr.f32.mxu0 0.0
    %3469 = vmatmul.mubr.f32.gmra.mrb[0].mxu0 %v3391
    %v3470 = vpop.f32.mrb[0].mxu0
    %v3471 = vadd.f32 0.0, %v3470
    %v3472 = vpop.f32.mrb[0].mxu0
    %3473 = vmatprep.mubr.f32.mxu0 0.0
    %3474 = vmatmul.mubr.f32.gmra.mrb[0].mxu0 %v3394
    %v3475 = vpop.f32.mrb[0].mxu0
    %v3476 = vadd.f32 0.0, %v3475
    %v3477 = vpop.f32.mrb[0].mxu0
    %3478 = vmatprep.mubr.f32.mxu0 0.0
    %3479 = vmatmul.mubr.f32.gmra.mrb[0].mxu0 %v3397
    %v3480 = vpop.f32.mrb[0].mxu0
    %v3481 = vadd.f32 0.0, %v3480
    %v3482 = vpop.f32.mrb[0].mxu0
    %3483 = vdwg.mxu0
    %v3484 = vadd.f32 %v3366, %v3466
    %v3485 = vadd.f32 %v3367, %v3471
    %v3486 = vadd.f32 %v3368, %v3476
    %v3487 = vadd.f32 %v3369, %v3481
    %s3488 = scalar_lea.vmem %s2, 512
    %v3489 = vld [vmem:[%s3488] sm:$0xff]
    %v3490 = vld [vmem:[%s3488 + $0x8] sm:$0xff]
    %v3491 = vld [vmem:[%s3488 + $0x10] sm:$0xff]
    %v3492 = vld [vmem:[%s3488 + $0x18] sm:$0xff]
    %3493 = vrot.lane.b32.xlu0 %v2915, 108
    %v3494 = vpop.permute.xlu0 %3493
    %3495 = vrot.lane.b32.xlu0 %v2916, 108
    %v3496 = vpop.permute.xlu0 %3495
    %3497 = vrot.lane.b32.xlu0 %v2917, 108
    %v3498 = vpop.permute.xlu0 %3497
    %3499 = vrot.lane.b32.xlu0 %v2918, 108
    %v3500 = vpop.permute.xlu0 %3499
    %v3506 = vsel %vm302, %v3489, 0
    %v3509 = vsel %vm302, %v3490, 0
    %v3512 = vsel %vm302, %v3491, 0
    %v3515 = vsel %vm302, %v3492, 0
    %3517 = vmatprep.subr.mxu0 0.0
    %3518 = vmatpush1.msra.mxu0 %v3494
    %3519 = vmatprep.subr.mxu0 0.0
    %3520 = vmatpush1.msra.mxu0 %v3496
    %3521 = vmatprep.subr.mxu0 0.0
    %3522 = vmatpush1.msra.mxu0 %v3498
    %3523 = vmatprep.subr.mxu0 0.0
    %3524 = vmatpush1.msra.mxu0 %v3500
    %3525 = vmatprep.subr.mxu0 0.0
    %3526 = vmatpush1.msra.mxu0 0.0
    %3527 = vmatprep.subr.mxu0 0.0
    %3528 = vmatpush1.msra.mxu0 0.0
    %3529 = vmatprep.subr.mxu0 0.0
    %3530 = vmatpush1.msra.mxu0 0.0
    %3531 = vmatprep.subr.mxu0 0.0
    %3532 = vmatpush1.msra.mxu0 0.0
    %3533 = vmatprep.subr.mxu0 0.0
    %3534 = vmatpush1.msra.mxu0 0.0
    %3535 = vmatprep.subr.mxu0 0.0
    %3536 = vmatpush1.msra.mxu0 0.0
    %3537 = vmatprep.subr.mxu0 0.0
    %3538 = vmatpush1.msra.mxu0 0.0
    %3539 = vmatprep.subr.mxu0 0.0
    %3540 = vmatpush1.msra.mxu0 0.0
    %3541 = vmatprep.subr.mxu0 0.0
    %3542 = vmatpush1.msra.mxu0 0.0
    %3543 = vmatprep.subr.mxu0 0.0
    %3544 = vmatpush1.msra.mxu0 0.0
    %3545 = vmatprep.subr.mxu0 0.0
    %3546 = vmatpush1.msra.mxu0 0.0
    %3547 = vmatprep.subr.mxu0 0.0
    %3548 = vmatpush1.msra.mxu0 0.0
    %3549 = vmatprep.subr.mxu0 0.0
    %3550 = vmatpush1.msra.mxu0 0.0
    %3551 = vmatprep.subr.mxu0 0.0
    %3552 = vmatpush1.msra.mxu0 0.0
    %3553 = vmatprep.subr.mxu0 0.0
    %3554 = vmatpush1.msra.mxu0 0.0
    %3555 = vmatprep.subr.mxu0 0.0
    %3556 = vmatpush1.msra.mxu0 0.0
    %3557 = vmatprep.subr.mxu0 0.0
    %3558 = vmatpush1.msra.mxu0 0.0
    %3559 = vmatprep.subr.mxu0 0.0
    %3560 = vmatpush1.msra.mxu0 0.0
    %3561 = vmatprep.subr.mxu0 0.0
    %3562 = vmatpush1.msra.mxu0 0.0
    %3563 = vmatprep.subr.mxu0 0.0
    %3564 = vmatpush1.msra.mxu0 0.0
    %3565 = vmatprep.subr.mxu0 0.0
    %3566 = vmatpush1.msra.mxu0 0.0
    %3567 = vmatprep.subr.mxu0 0.0
    %3568 = vmatpush1.msra.mxu0 0.0
    %3569 = vmatprep.subr.mxu0 0.0
    %3570 = vmatpush1.msra.mxu0 0.0
    %3571 = vmatprep.subr.mxu0 0.0
    %3572 = vmatpush1.msra.mxu0 0.0
    %3573 = vmatprep.subr.mxu0 0.0
    %3574 = vmatpush1.msra.mxu0 0.0
    %3575 = vmatprep.subr.mxu0 0.0
    %3576 = vmatpush1.msra.mxu0 0.0
    %3577 = vmatprep.subr.mxu0 0.0
    %3578 = vmatpush1.msra.mxu0 0.0
    %3579 = vmatprep.subr.mxu0 0.0
    %3580 = vmatpush1.msra.mxu0 0.0
    %3581 = vmatprep.mubr.f32.mxu0 0.0
    %3582 = vmatmul.mubr.f32.gmra.mrb[0].mxu0 %v3506
    %v3583 = vpop.f32.mrb[0].mxu0
    %v3584 = vadd.f32 0.0, %v3583
    %v3585 = vpop.f32.mrb[0].mxu0
    %3586 = vmatprep.mubr.f32.mxu0 0.0
    %3587 = vmatmul.mubr.f32.gmra.mrb[0].mxu0 %v3509
    %v3588 = vpop.f32.mrb[0].mxu0
    %v3589 = vadd.f32 0.0, %v3588
    %v3590 = vpop.f32.mrb[0].mxu0
    %3591 = vmatprep.mubr.f32.mxu0 0.0
    %3592 = vmatmul.mubr.f32.gmra.mrb[0].mxu0 %v3512
    %v3593 = vpop.f32.mrb[0].mxu0
    %v3594 = vadd.f32 0.0, %v3593
    %v3595 = vpop.f32.mrb[0].mxu0
    %3596 = vmatprep.mubr.f32.mxu0 0.0
    %3597 = vmatmul.mubr.f32.gmra.mrb[0].mxu0 %v3515
    %v3598 = vpop.f32.mrb[0].mxu0
    %v3599 = vadd.f32 0.0, %v3598
    %v3600 = vpop.f32.mrb[0].mxu0
    %3601 = vdwg.mxu0
    %v3602 = vadd.f32 %v3484, %v3584
    %v3603 = vadd.f32 %v3485, %v3589
    %v3604 = vadd.f32 %v3486, %v3594
    %v3605 = vadd.f32 %v3487, %v3599
    %s3606 = scalar_lea.vmem %s2, 544
    %v3607 = vld [vmem:[%s3606] sm:$0xff]
    %v3608 = vld [vmem:[%s3606 + $0x8] sm:$0xff]
    %v3609 = vld [vmem:[%s3606 + $0x10] sm:$0xff]
    %v3610 = vld [vmem:[%s3606 + $0x18] sm:$0xff]
    %3611 = vrot.lane.b32.xlu0 %v2915, 104
    %v3612 = vpop.permute.xlu0 %3611
    %3613 = vrot.lane.b32.xlu0 %v2916, 104
    %v3614 = vpop.permute.xlu0 %3613
    %3615 = vrot.lane.b32.xlu0 %v2917, 104
    %v3616 = vpop.permute.xlu0 %3615
    %3617 = vrot.lane.b32.xlu0 %v2918, 104
    %v3618 = vpop.permute.xlu0 %3617
    %v3624 = vsel %vm302, %v3607, 0
    %v3627 = vsel %vm302, %v3608, 0
    %v3630 = vsel %vm302, %v3609, 0
    %v3633 = vsel %vm302, %v3610, 0
    %3635 = vmatprep.subr.mxu0 0.0
    %3636 = vmatpush1.msra.mxu0 %v3612
    %3637 = vmatprep.subr.mxu0 0.0
    %3638 = vmatpush1.msra.mxu0 %v3614
    %3639 = vmatprep.subr.mxu0 0.0
    %3640 = vmatpush1.msra.mxu0 %v3616
    %3641 = vmatprep.subr.mxu0 0.0
    %3642 = vmatpush1.msra.mxu0 %v3618
    %3643 = vmatprep.subr.mxu0 0.0
    %3644 = vmatpush1.msra.mxu0 0.0
    %3645 = vmatprep.subr.mxu0 0.0
    %3646 = vmatpush1.msra.mxu0 0.0
    %3647 = vmatprep.subr.mxu0 0.0
    %3648 = vmatpush1.msra.mxu0 0.0
    %3649 = vmatprep.subr.mxu0 0.0
    %3650 = vmatpush1.msra.mxu0 0.0
    %3651 = vmatprep.subr.mxu0 0.0
    %3652 = vmatpush1.msra.mxu0 0.0
    %3653 = vmatprep.subr.mxu0 0.0
    %3654 = vmatpush1.msra.mxu0 0.0
    %3655 = vmatprep.subr.mxu0 0.0
    %3656 = vmatpush1.msra.mxu0 0.0
    %3657 = vmatprep.subr.mxu0 0.0
    %3658 = vmatpush1.msra.mxu0 0.0
    %3659 = vmatprep.subr.mxu0 0.0
    %3660 = vmatpush1.msra.mxu0 0.0
    %3661 = vmatprep.subr.mxu0 0.0
    %3662 = vmatpush1.msra.mxu0 0.0
    %3663 = vmatprep.subr.mxu0 0.0
    %3664 = vmatpush1.msra.mxu0 0.0
    %3665 = vmatprep.subr.mxu0 0.0
    %3666 = vmatpush1.msra.mxu0 0.0
    %3667 = vmatprep.subr.mxu0 0.0
    %3668 = vmatpush1.msra.mxu0 0.0
    %3669 = vmatprep.subr.mxu0 0.0
    %3670 = vmatpush1.msra.mxu0 0.0
    %3671 = vmatprep.subr.mxu0 0.0
    %3672 = vmatpush1.msra.mxu0 0.0
    %3673 = vmatprep.subr.mxu0 0.0
    %3674 = vmatpush1.msra.mxu0 0.0
    %3675 = vmatprep.subr.mxu0 0.0
    %3676 = vmatpush1.msra.mxu0 0.0
    %3677 = vmatprep.subr.mxu0 0.0
    %3678 = vmatpush1.msra.mxu0 0.0
    %3679 = vmatprep.subr.mxu0 0.0
    %3680 = vmatpush1.msra.mxu0 0.0
    %3681 = vmatprep.subr.mxu0 0.0
    %3682 = vmatpush1.msra.mxu0 0.0
    %3683 = vmatprep.subr.mxu0 0.0
    %3684 = vmatpush1.msra.mxu0 0.0
    %3685 = vmatprep.subr.mxu0 0.0
    %3686 = vmatpush1.msra.mxu0 0.0
    %3687 = vmatprep.subr.mxu0 0.0
    %3688 = vmatpush1.msra.mxu0 0.0
    %3689 = vmatprep.subr.mxu0 0.0
    %3690 = vmatpush1.msra.mxu0 0.0
    %3691 = vmatprep.subr.mxu0 0.0
    %3692 = vmatpush1.msra.mxu0 0.0
    %3693 = vmatprep.subr.mxu0 0.0
    %3694 = vmatpush1.msra.mxu0 0.0
    %3695 = vmatprep.subr.mxu0 0.0
    %3696 = vmatpush1.msra.mxu0 0.0
    %3697 = vmatprep.subr.mxu0 0.0
    %3698 = vmatpush1.msra.mxu0 0.0
    %3699 = vmatprep.mubr.f32.mxu0 0.0
    %3700 = vmatmul.mubr.f32.gmra.mrb[0].mxu0 %v3624
    %v3701 = vpop.f32.mrb[0].mxu0
    %v3702 = vadd.f32 0.0, %v3701
    %v3703 = vpop.f32.mrb[0].mxu0
    %3704 = vmatprep.mubr.f32.mxu0 0.0
    %3705 = vmatmul.mubr.f32.gmra.mrb[0].mxu0 %v3627
    %v3706 = vpop.f32.mrb[0].mxu0
    %v3707 = vadd.f32 0.0, %v3706
    %v3708 = vpop.f32.mrb[0].mxu0
    %3709 = vmatprep.mubr.f32.mxu0 0.0
    %3710 = vmatmul.mubr.f32.gmra.mrb[0].mxu0 %v3630
    %v3711 = vpop.f32.mrb[0].mxu0
    %v3712 = vadd.f32 0.0, %v3711
    %v3713 = vpop.f32.mrb[0].mxu0
    %3714 = vmatprep.mubr.f32.mxu0 0.0
    %3715 = vmatmul.mubr.f32.gmra.mrb[0].mxu0 %v3633
    %v3716 = vpop.f32.mrb[0].mxu0
    %v3717 = vadd.f32 0.0, %v3716
    %v3718 = vpop.f32.mrb[0].mxu0
    %3719 = vdwg.mxu0
    %v3720 = vadd.f32 %v3602, %v3702
    %v3721 = vadd.f32 %v3603, %v3707
    %v3722 = vadd.f32 %v3604, %v3712
    %v3723 = vadd.f32 %v3605, %v3717
    %s3724 = scalar_lea.vmem %s2, 576
    %v3725 = vld [vmem:[%s3724] sm:$0xff]
    %v3726 = vld [vmem:[%s3724 + $0x8] sm:$0xff]
    %v3727 = vld [vmem:[%s3724 + $0x10] sm:$0xff]
    %v3728 = vld [vmem:[%s3724 + $0x18] sm:$0xff]
    %3729 = vrot.lane.b32.xlu0 %v2915, 100
    %v3730 = vpop.permute.xlu0 %3729
    %3731 = vrot.lane.b32.xlu0 %v2916, 100
    %v3732 = vpop.permute.xlu0 %3731
    %3733 = vrot.lane.b32.xlu0 %v2917, 100
    %v3734 = vpop.permute.xlu0 %3733
    %3735 = vrot.lane.b32.xlu0 %v2918, 100
    %v3736 = vpop.permute.xlu0 %3735
    %v3742 = vsel %vm302, %v3725, 0
    %v3745 = vsel %vm302, %v3726, 0
    %v3748 = vsel %vm302, %v3727, 0
    %v3751 = vsel %vm302, %v3728, 0
    %3753 = vmatprep.subr.mxu0 0.0
    %3754 = vmatpush1.msra.mxu0 %v3730
    %3755 = vmatprep.subr.mxu0 0.0
    %3756 = vmatpush1.msra.mxu0 %v3732
    %3757 = vmatprep.subr.mxu0 0.0
    %3758 = vmatpush1.msra.mxu0 %v3734
    %3759 = vmatprep.subr.mxu0 0.0
    %3760 = vmatpush1.msra.mxu0 %v3736
    %3761 = vmatprep.subr.mxu0 0.0
    %3762 = vmatpush1.msra.mxu0 0.0
    %3763 = vmatprep.subr.mxu0 0.0
    %3764 = vmatpush1.msra.mxu0 0.0
    %3765 = vmatprep.subr.mxu0 0.0
    %3766 = vmatpush1.msra.mxu0 0.0
    %3767 = vmatprep.subr.mxu0 0.0
    %3768 = vmatpush1.msra.mxu0 0.0
    %3769 = vmatprep.subr.mxu0 0.0
    %3770 = vmatpush1.msra.mxu0 0.0
    %3771 = vmatprep.subr.mxu0 0.0
    %3772 = vmatpush1.msra.mxu0 0.0
    %3773 = vmatprep.subr.mxu0 0.0
    %3774 = vmatpush1.msra.mxu0 0.0
    %3775 = vmatprep.subr.mxu0 0.0
    %3776 = vmatpush1.msra.mxu0 0.0
    %3777 = vmatprep.subr.mxu0 0.0
    %3778 = vmatpush1.msra.mxu0 0.0
    %3779 = vmatprep.subr.mxu0 0.0
    %3780 = vmatpush1.msra.mxu0 0.0
    %3781 = vmatprep.subr.mxu0 0.0
    %3782 = vmatpush1.msra.mxu0 0.0
    %3783 = vmatprep.subr.mxu0 0.0
    %3784 = vmatpush1.msra.mxu0 0.0
    %3785 = vmatprep.subr.mxu0 0.0
    %3786 = vmatpush1.msra.mxu0 0.0
    %3787 = vmatprep.subr.mxu0 0.0
    %3788 = vmatpush1.msra.mxu0 0.0
    %3789 = vmatprep.subr.mxu0 0.0
    %3790 = vmatpush1.msra.mxu0 0.0
    %3791 = vmatprep.subr.mxu0 0.0
    %3792 = vmatpush1.msra.mxu0 0.0
    %3793 = vmatprep.subr.mxu0 0.0
    %3794 = vmatpush1.msra.mxu0 0.0
    %3795 = vmatprep.subr.mxu0 0.0
    %3796 = vmatpush1.msra.mxu0 0.0
    %3797 = vmatprep.subr.mxu0 0.0
    %3798 = vmatpush1.msra.mxu0 0.0
    %3799 = vmatprep.subr.mxu0 0.0
    %3800 = vmatpush1.msra.mxu0 0.0
    %3801 = vmatprep.subr.mxu0 0.0
    %3802 = vmatpush1.msra.mxu0 0.0
    %3803 = vmatprep.subr.mxu0 0.0
    %3804 = vmatpush1.msra.mxu0 0.0
    %3805 = vmatprep.subr.mxu0 0.0
    %3806 = vmatpush1.msra.mxu0 0.0
    %3807 = vmatprep.subr.mxu0 0.0
    %3808 = vmatpush1.msra.mxu0 0.0
    %3809 = vmatprep.subr.mxu0 0.0
    %3810 = vmatpush1.msra.mxu0 0.0
    %3811 = vmatprep.subr.mxu0 0.0
    %3812 = vmatpush1.msra.mxu0 0.0
    %3813 = vmatprep.subr.mxu0 0.0
    %3814 = vmatpush1.msra.mxu0 0.0
    %3815 = vmatprep.subr.mxu0 0.0
    %3816 = vmatpush1.msra.mxu0 0.0
    %3817 = vmatprep.mubr.f32.mxu0 0.0
    %3818 = vmatmul.mubr.f32.gmra.mrb[0].mxu0 %v3742
    %v3819 = vpop.f32.mrb[0].mxu0
    %v3820 = vadd.f32 0.0, %v3819
    %v3821 = vpop.f32.mrb[0].mxu0
    %3822 = vmatprep.mubr.f32.mxu0 0.0
    %3823 = vmatmul.mubr.f32.gmra.mrb[0].mxu0 %v3745
    %v3824 = vpop.f32.mrb[0].mxu0
    %v3825 = vadd.f32 0.0, %v3824
    %v3826 = vpop.f32.mrb[0].mxu0
    %3827 = vmatprep.mubr.f32.mxu0 0.0
    %3828 = vmatmul.mubr.f32.gmra.mrb[0].mxu0 %v3748
    %v3829 = vpop.f32.mrb[0].mxu0
    %v3830 = vadd.f32 0.0, %v3829
    %v3831 = vpop.f32.mrb[0].mxu0
    %3832 = vmatprep.mubr.f32.mxu0 0.0
    %3833 = vmatmul.mubr.f32.gmra.mrb[0].mxu0 %v3751
    %v3834 = vpop.f32.mrb[0].mxu0
    %v3835 = vadd.f32 0.0, %v3834
    %v3836 = vpop.f32.mrb[0].mxu0
    %3837 = vdwg.mxu0
    %v3838 = vadd.f32 %v3720, %v3820
    %v3839 = vadd.f32 %v3721, %v3825
    %v3840 = vadd.f32 %v3722, %v3830
    %v3841 = vadd.f32 %v3723, %v3835
    %s3842 = scalar_lea.vmem %s2, 608
    %v3843 = vld [vmem:[%s3842] sm:$0xff]
    %v3844 = vld [vmem:[%s3842 + $0x8] sm:$0xff]
    %v3845 = vld [vmem:[%s3842 + $0x10] sm:$0xff]
    %v3846 = vld [vmem:[%s3842 + $0x18] sm:$0xff]
    %3847 = vrot.lane.b32.xlu0 %v2915, 96
    %v3848 = vpop.permute.xlu0 %3847
    %3849 = vrot.lane.b32.xlu0 %v2916, 96
    %v3850 = vpop.permute.xlu0 %3849
    %3851 = vrot.lane.b32.xlu0 %v2917, 96
    %v3852 = vpop.permute.xlu0 %3851
    %3853 = vrot.lane.b32.xlu0 %v2918, 96
    %v3854 = vpop.permute.xlu0 %3853
    %v3860 = vsel %vm302, %v3843, 0
    %v3863 = vsel %vm302, %v3844, 0
    %v3866 = vsel %vm302, %v3845, 0
    %v3869 = vsel %vm302, %v3846, 0
    %3871 = vmatprep.subr.mxu0 0.0
    %3872 = vmatpush1.msra.mxu0 %v3848
    %3873 = vmatprep.subr.mxu0 0.0
    %3874 = vmatpush1.msra.mxu0 %v3850
    %3875 = vmatprep.subr.mxu0 0.0
    %3876 = vmatpush1.msra.mxu0 %v3852
    %3877 = vmatprep.subr.mxu0 0.0
    %3878 = vmatpush1.msra.mxu0 %v3854
    %3879 = vmatprep.subr.mxu0 0.0
    %3880 = vmatpush1.msra.mxu0 0.0
    %3881 = vmatprep.subr.mxu0 0.0
    %3882 = vmatpush1.msra.mxu0 0.0
    %3883 = vmatprep.subr.mxu0 0.0
    %3884 = vmatpush1.msra.mxu0 0.0
    %3885 = vmatprep.subr.mxu0 0.0
    %3886 = vmatpush1.msra.mxu0 0.0
    %3887 = vmatprep.subr.mxu0 0.0
    %3888 = vmatpush1.msra.mxu0 0.0
    %3889 = vmatprep.subr.mxu0 0.0
    %3890 = vmatpush1.msra.mxu0 0.0
    %3891 = vmatprep.subr.mxu0 0.0
    %3892 = vmatpush1.msra.mxu0 0.0
    %3893 = vmatprep.subr.mxu0 0.0
    %3894 = vmatpush1.msra.mxu0 0.0
    %3895 = vmatprep.subr.mxu0 0.0
    %3896 = vmatpush1.msra.mxu0 0.0
    %3897 = vmatprep.subr.mxu0 0.0
    %3898 = vmatpush1.msra.mxu0 0.0
    %3899 = vmatprep.subr.mxu0 0.0
    %3900 = vmatpush1.msra.mxu0 0.0
    %3901 = vmatprep.subr.mxu0 0.0
    %3902 = vmatpush1.msra.mxu0 0.0
    %3903 = vmatprep.subr.mxu0 0.0
    %3904 = vmatpush1.msra.mxu0 0.0
    %3905 = vmatprep.subr.mxu0 0.0
    %3906 = vmatpush1.msra.mxu0 0.0
    %3907 = vmatprep.subr.mxu0 0.0
    %3908 = vmatpush1.msra.mxu0 0.0
    %3909 = vmatprep.subr.mxu0 0.0
    %3910 = vmatpush1.msra.mxu0 0.0
    %3911 = vmatprep.subr.mxu0 0.0
    %3912 = vmatpush1.msra.mxu0 0.0
    %3913 = vmatprep.subr.mxu0 0.0
    %3914 = vmatpush1.msra.mxu0 0.0
    %3915 = vmatprep.subr.mxu0 0.0
    %3916 = vmatpush1.msra.mxu0 0.0
    %3917 = vmatprep.subr.mxu0 0.0
    %3918 = vmatpush1.msra.mxu0 0.0
    %3919 = vmatprep.subr.mxu0 0.0
    %3920 = vmatpush1.msra.mxu0 0.0
    %3921 = vmatprep.subr.mxu0 0.0
    %3922 = vmatpush1.msra.mxu0 0.0
    %3923 = vmatprep.subr.mxu0 0.0
    %3924 = vmatpush1.msra.mxu0 0.0
    %3925 = vmatprep.subr.mxu0 0.0
    %3926 = vmatpush1.msra.mxu0 0.0
    %3927 = vmatprep.subr.mxu0 0.0
    %3928 = vmatpush1.msra.mxu0 0.0
    %3929 = vmatprep.subr.mxu0 0.0
    %3930 = vmatpush1.msra.mxu0 0.0
    %3931 = vmatprep.subr.mxu0 0.0
    %3932 = vmatpush1.msra.mxu0 0.0
    %3933 = vmatprep.subr.mxu0 0.0
    %3934 = vmatpush1.msra.mxu0 0.0
    %3935 = vmatprep.mubr.f32.mxu0 0.0
    %3936 = vmatmul.mubr.f32.gmra.mrb[0].mxu0 %v3860
    %v3937 = vpop.f32.mrb[0].mxu0
    %v3938 = vadd.f32 0.0, %v3937
    %v3939 = vpop.f32.mrb[0].mxu0
    %3940 = vmatprep.mubr.f32.mxu0 0.0
    %3941 = vmatmul.mubr.f32.gmra.mrb[0].mxu0 %v3863
    %v3942 = vpop.f32.mrb[0].mxu0
    %v3943 = vadd.f32 0.0, %v3942
    %v3944 = vpop.f32.mrb[0].mxu0
    %3945 = vmatprep.mubr.f32.mxu0 0.0
    %3946 = vmatmul.mubr.f32.gmra.mrb[0].mxu0 %v3866
    %v3947 = vpop.f32.mrb[0].mxu0
    %v3948 = vadd.f32 0.0, %v3947
    %v3949 = vpop.f32.mrb[0].mxu0
    %3950 = vmatprep.mubr.f32.mxu0 0.0
    %3951 = vmatmul.mubr.f32.gmra.mrb[0].mxu0 %v3869
    %v3952 = vpop.f32.mrb[0].mxu0
    %v3953 = vadd.f32 0.0, %v3952
    %v3954 = vpop.f32.mrb[0].mxu0
    %3955 = vdwg.mxu0
    %v3956 = vadd.f32 %v3838, %v3938
    %v3957 = vadd.f32 %v3839, %v3943
    %v3958 = vadd.f32 %v3840, %v3948
    %v3959 = vadd.f32 %v3841, %v3953
    %s3960 = scalar_lea.vmem %s2, 640
    %v3961 = vld [vmem:[%s3960] sm:$0xff]
    %v3962 = vld [vmem:[%s3960 + $0x8] sm:$0xff]
    %v3963 = vld [vmem:[%s3960 + $0x10] sm:$0xff]
    %v3964 = vld [vmem:[%s3960 + $0x18] sm:$0xff]
    %3965 = vrot.lane.b32.xlu0 %v2915, 92
    %v3966 = vpop.permute.xlu0 %3965
    %3967 = vrot.lane.b32.xlu0 %v2916, 92
    %v3968 = vpop.permute.xlu0 %3967
    %3969 = vrot.lane.b32.xlu0 %v2917, 92
    %v3970 = vpop.permute.xlu0 %3969
    %3971 = vrot.lane.b32.xlu0 %v2918, 92
    %v3972 = vpop.permute.xlu0 %3971
    %v3978 = vsel %vm302, %v3961, 0
    %v3981 = vsel %vm302, %v3962, 0
    %v3984 = vsel %vm302, %v3963, 0
    %v3987 = vsel %vm302, %v3964, 0
    %3989 = vmatprep.subr.mxu0 0.0
    %3990 = vmatpush1.msra.mxu0 %v3966
    %3991 = vmatprep.subr.mxu0 0.0
    %3992 = vmatpush1.msra.mxu0 %v3968
    %3993 = vmatprep.subr.mxu0 0.0
    %3994 = vmatpush1.msra.mxu0 %v3970
    %3995 = vmatprep.subr.mxu0 0.0
    %3996 = vmatpush1.msra.mxu0 %v3972
    %3997 = vmatprep.subr.mxu0 0.0
    %3998 = vmatpush1.msra.mxu0 0.0
    %3999 = vmatprep.subr.mxu0 0.0
    %4000 = vmatpush1.msra.mxu0 0.0
    %4001 = vmatprep.subr.mxu0 0.0
    %4002 = vmatpush1.msra.mxu0 0.0
    %4003 = vmatprep.subr.mxu0 0.0
    %4004 = vmatpush1.msra.mxu0 0.0
    %4005 = vmatprep.subr.mxu0 0.0
    %4006 = vmatpush1.msra.mxu0 0.0
    %4007 = vmatprep.subr.mxu0 0.0
    %4008 = vmatpush1.msra.mxu0 0.0
    %4009 = vmatprep.subr.mxu0 0.0
    %4010 = vmatpush1.msra.mxu0 0.0
    %4011 = vmatprep.subr.mxu0 0.0
    %4012 = vmatpush1.msra.mxu0 0.0
    %4013 = vmatprep.subr.mxu0 0.0
    %4014 = vmatpush1.msra.mxu0 0.0
    %4015 = vmatprep.subr.mxu0 0.0
    %4016 = vmatpush1.msra.mxu0 0.0
    %4017 = vmatprep.subr.mxu0 0.0
    %4018 = vmatpush1.msra.mxu0 0.0
    %4019 = vmatprep.subr.mxu0 0.0
    %4020 = vmatpush1.msra.mxu0 0.0
    %4021 = vmatprep.subr.mxu0 0.0
    %4022 = vmatpush1.msra.mxu0 0.0
    %4023 = vmatprep.subr.mxu0 0.0
    %4024 = vmatpush1.msra.mxu0 0.0
    %4025 = vmatprep.subr.mxu0 0.0
    %4026 = vmatpush1.msra.mxu0 0.0
    %4027 = vmatprep.subr.mxu0 0.0
    %4028 = vmatpush1.msra.mxu0 0.0
    %4029 = vmatprep.subr.mxu0 0.0
    %4030 = vmatpush1.msra.mxu0 0.0
    %4031 = vmatprep.subr.mxu0 0.0
    %4032 = vmatpush1.msra.mxu0 0.0
    %4033 = vmatprep.subr.mxu0 0.0
    %4034 = vmatpush1.msra.mxu0 0.0
    %4035 = vmatprep.subr.mxu0 0.0
    %4036 = vmatpush1.msra.mxu0 0.0
    %4037 = vmatprep.subr.mxu0 0.0
    %4038 = vmatpush1.msra.mxu0 0.0
    %4039 = vmatprep.subr.mxu0 0.0
    %4040 = vmatpush1.msra.mxu0 0.0
    %4041 = vmatprep.subr.mxu0 0.0
    %4042 = vmatpush1.msra.mxu0 0.0
    %4043 = vmatprep.subr.mxu0 0.0
    %4044 = vmatpush1.msra.mxu0 0.0
    %4045 = vmatprep.subr.mxu0 0.0
    %4046 = vmatpush1.msra.mxu0 0.0
    %4047 = vmatprep.subr.mxu0 0.0
    %4048 = vmatpush1.msra.mxu0 0.0
    %4049 = vmatprep.subr.mxu0 0.0
    %4050 = vmatpush1.msra.mxu0 0.0
    %4051 = vmatprep.subr.mxu0 0.0
    %4052 = vmatpush1.msra.mxu0 0.0
    %4053 = vmatprep.mubr.f32.mxu0 0.0
    %4054 = vmatmul.mubr.f32.gmra.mrb[0].mxu0 %v3978
    %v4055 = vpop.f32.mrb[0].mxu0
    %v4056 = vadd.f32 0.0, %v4055
    %v4057 = vpop.f32.mrb[0].mxu0
    %4058 = vmatprep.mubr.f32.mxu0 0.0
    %4059 = vmatmul.mubr.f32.gmra.mrb[0].mxu0 %v3981
    %v4060 = vpop.f32.mrb[0].mxu0
    %v4061 = vadd.f32 0.0, %v4060
    %v4062 = vpop.f32.mrb[0].mxu0
    %4063 = vmatprep.mubr.f32.mxu0 0.0
    %4064 = vmatmul.mubr.f32.gmra.mrb[0].mxu0 %v3984
    %v4065 = vpop.f32.mrb[0].mxu0
    %v4066 = vadd.f32 0.0, %v4065
    %v4067 = vpop.f32.mrb[0].mxu0
    %4068 = vmatprep.mubr.f32.mxu0 0.0
    %4069 = vmatmul.mubr.f32.gmra.mrb[0].mxu0 %v3987
    %v4070 = vpop.f32.mrb[0].mxu0
    %v4071 = vadd.f32 0.0, %v4070
    %v4072 = vpop.f32.mrb[0].mxu0
    %4073 = vdwg.mxu0
    %v4074 = vadd.f32 %v3956, %v4056
    %v4075 = vadd.f32 %v3957, %v4061
    %v4076 = vadd.f32 %v3958, %v4066
    %v4077 = vadd.f32 %v3959, %v4071
    %s4078 = scalar_lea.vmem %s2, 672
    %v4079 = vld [vmem:[%s4078] sm:$0xff]
    %v4080 = vld [vmem:[%s4078 + $0x8] sm:$0xff]
    %v4081 = vld [vmem:[%s4078 + $0x10] sm:$0xff]
    %v4082 = vld [vmem:[%s4078 + $0x18] sm:$0xff]
    %4083 = vrot.lane.b32.xlu0 %v2915, 88
    %v4084 = vpop.permute.xlu0 %4083
    %4085 = vrot.lane.b32.xlu0 %v2916, 88
    %v4086 = vpop.permute.xlu0 %4085
    %4087 = vrot.lane.b32.xlu0 %v2917, 88
    %v4088 = vpop.permute.xlu0 %4087
    %4089 = vrot.lane.b32.xlu0 %v2918, 88
    %v4090 = vpop.permute.xlu0 %4089
    %v4096 = vsel %vm302, %v4079, 0
    %v4099 = vsel %vm302, %v4080, 0
    %v4102 = vsel %vm302, %v4081, 0
    %v4105 = vsel %vm302, %v4082, 0
    %4107 = vmatprep.subr.mxu0 0.0
    %4108 = vmatpush1.msra.mxu0 %v4084
    %4109 = vmatprep.subr.mxu0 0.0
    %4110 = vmatpush1.msra.mxu0 %v4086
    %4111 = vmatprep.subr.mxu0 0.0
    %4112 = vmatpush1.msra.mxu0 %v4088
    %4113 = vmatprep.subr.mxu0 0.0
    %4114 = vmatpush1.msra.mxu0 %v4090
    %4115 = vmatprep.subr.mxu0 0.0
    %4116 = vmatpush1.msra.mxu0 0.0
    %4117 = vmatprep.subr.mxu0 0.0
    %4118 = vmatpush1.msra.mxu0 0.0
    %4119 = vmatprep.subr.mxu0 0.0
    %4120 = vmatpush1.msra.mxu0 0.0
    %4121 = vmatprep.subr.mxu0 0.0
    %4122 = vmatpush1.msra.mxu0 0.0
    %4123 = vmatprep.subr.mxu0 0.0
    %4124 = vmatpush1.msra.mxu0 0.0
    %4125 = vmatprep.subr.mxu0 0.0
    %4126 = vmatpush1.msra.mxu0 0.0
    %4127 = vmatprep.subr.mxu0 0.0
    %4128 = vmatpush1.msra.mxu0 0.0
    %4129 = vmatprep.subr.mxu0 0.0
    %4130 = vmatpush1.msra.mxu0 0.0
    %4131 = vmatprep.subr.mxu0 0.0
    %4132 = vmatpush1.msra.mxu0 0.0
    %4133 = vmatprep.subr.mxu0 0.0
    %4134 = vmatpush1.msra.mxu0 0.0
    %4135 = vmatprep.subr.mxu0 0.0
    %4136 = vmatpush1.msra.mxu0 0.0
    %4137 = vmatprep.subr.mxu0 0.0
    %4138 = vmatpush1.msra.mxu0 0.0
    %4139 = vmatprep.subr.mxu0 0.0
    %4140 = vmatpush1.msra.mxu0 0.0
    %4141 = vmatprep.subr.mxu0 0.0
    %4142 = vmatpush1.msra.mxu0 0.0
    %4143 = vmatprep.subr.mxu0 0.0
    %4144 = vmatpush1.msra.mxu0 0.0
    %4145 = vmatprep.subr.mxu0 0.0
    %4146 = vmatpush1.msra.mxu0 0.0
    %4147 = vmatprep.subr.mxu0 0.0
    %4148 = vmatpush1.msra.mxu0 0.0
    %4149 = vmatprep.subr.mxu0 0.0
    %4150 = vmatpush1.msra.mxu0 0.0
    %4151 = vmatprep.subr.mxu0 0.0
    %4152 = vmatpush1.msra.mxu0 0.0
    %4153 = vmatprep.subr.mxu0 0.0
    %4154 = vmatpush1.msra.mxu0 0.0
    %4155 = vmatprep.subr.mxu0 0.0
    %4156 = vmatpush1.msra.mxu0 0.0
    %4157 = vmatprep.subr.mxu0 0.0
    %4158 = vmatpush1.msra.mxu0 0.0
    %4159 = vmatprep.subr.mxu0 0.0
    %4160 = vmatpush1.msra.mxu0 0.0
    %4161 = vmatprep.subr.mxu0 0.0
    %4162 = vmatpush1.msra.mxu0 0.0
    %4163 = vmatprep.subr.mxu0 0.0
    %4164 = vmatpush1.msra.mxu0 0.0
    %4165 = vmatprep.subr.mxu0 0.0
    %4166 = vmatpush1.msra.mxu0 0.0
    %4167 = vmatprep.subr.mxu0 0.0
    %4168 = vmatpush1.msra.mxu0 0.0
    %4169 = vmatprep.subr.mxu0 0.0
    %4170 = vmatpush1.msra.mxu0 0.0
    %4171 = vmatprep.mubr.f32.mxu0 0.0
    %4172 = vmatmul.mubr.f32.gmra.mrb[0].mxu0 %v4096
    %v4173 = vpop.f32.mrb[0].mxu0
    %v4174 = vadd.f32 0.0, %v4173
    %v4175 = vpop.f32.mrb[0].mxu0
    %4176 = vmatprep.mubr.f32.mxu0 0.0
    %4177 = vmatmul.mubr.f32.gmra.mrb[0].mxu0 %v4099
    %v4178 = vpop.f32.mrb[0].mxu0
    %v4179 = vadd.f32 0.0, %v4178
    %v4180 = vpop.f32.mrb[0].mxu0
    %4181 = vmatprep.mubr.f32.mxu0 0.0
    %4182 = vmatmul.mubr.f32.gmra.mrb[0].mxu0 %v4102
    %v4183 = vpop.f32.mrb[0].mxu0
    %v4184 = vadd.f32 0.0, %v4183
    %v4185 = vpop.f32.mrb[0].mxu0
    %4186 = vmatprep.mubr.f32.mxu0 0.0
    %4187 = vmatmul.mubr.f32.gmra.mrb[0].mxu0 %v4105
    %v4188 = vpop.f32.mrb[0].mxu0
    %v4189 = vadd.f32 0.0, %v4188
    %v4190 = vpop.f32.mrb[0].mxu0
    %4191 = vdwg.mxu0
    %v4192 = vadd.f32 %v4074, %v4174
    %v4193 = vadd.f32 %v4075, %v4179
    %v4194 = vadd.f32 %v4076, %v4184
    %v4195 = vadd.f32 %v4077, %v4189
    %4196 = vset.pattern.permute.xlu0 5
    %4197 = vperm.xlu0 %4196, %v34
    %v4198 = vpop.permute.xlu0 %4197
    %4200 = vset.pattern.permute.xlu0 5
    %4201 = vperm.xlu0 %4200, %v35
    %v4202 = vpop.permute.xlu0 %4201
    %4204 = vset.pattern.permute.xlu0 5
    %4205 = vperm.xlu0 %4204, %v36
    %v4206 = vpop.permute.xlu0 %4205
    %4208 = vset.pattern.permute.xlu0 5
    %4209 = vperm.xlu0 %4208, %v37
    %v4210 = vpop.permute.xlu0 %4209
    %v4212 = vadd.f32 %v4192, %v4198
    %v4213 = vadd.f32 %v4193, %v4202
    %v4214 = vadd.f32 %v4194, %v4206
    %v4215 = vadd.f32 %v4195, %v4210
    %v4216 = vld [vmem:[%s25] sm:$0xff]
    %v4217 = vld [vmem:[%s25 + $0x8] sm:$0xff]
    %v4218 = vld [vmem:[%s25 + $0x10] sm:$0xff]
    %v4219 = vld [vmem:[%s25 + $0x18] sm:$0xff]
    %4224 = vrot.lane.b32.xlu0 %v4216, 124
    %v4225 = vpop.permute.xlu0 %4224
    %4226 = vrot.lane.b32.xlu0 %v4217, 124
    %v4227 = vpop.permute.xlu0 %4226
    %4228 = vrot.lane.b32.xlu0 %v4218, 124
    %v4229 = vpop.permute.xlu0 %4228
    %4230 = vrot.lane.b32.xlu0 %v4219, 124
    %v4231 = vpop.permute.xlu0 %4230
    %4236 = vmatprep.subr.mxu0 0.0
    %4237 = vmatpush1.msra.mxu0 %v4225
    %4238 = vmatprep.subr.mxu0 0.0
    %4239 = vmatpush1.msra.mxu0 %v4227
    %4240 = vmatprep.subr.mxu0 0.0
    %4241 = vmatpush1.msra.mxu0 %v4229
    %4242 = vmatprep.subr.mxu0 0.0
    %4243 = vmatpush1.msra.mxu0 %v4231
    %4244 = vmatprep.subr.mxu0 0.0
    %4245 = vmatpush1.msra.mxu0 0.0
    %4246 = vmatprep.subr.mxu0 0.0
    %4247 = vmatpush1.msra.mxu0 0.0
    %4248 = vmatprep.subr.mxu0 0.0
    %4249 = vmatpush1.msra.mxu0 0.0
    %4250 = vmatprep.subr.mxu0 0.0
    %4251 = vmatpush1.msra.mxu0 0.0
    %4252 = vmatprep.subr.mxu0 0.0
    %4253 = vmatpush1.msra.mxu0 0.0
    %4254 = vmatprep.subr.mxu0 0.0
    %4255 = vmatpush1.msra.mxu0 0.0
    %4256 = vmatprep.subr.mxu0 0.0
    %4257 = vmatpush1.msra.mxu0 0.0
    %4258 = vmatprep.subr.mxu0 0.0
    %4259 = vmatpush1.msra.mxu0 0.0
    %4260 = vmatprep.subr.mxu0 0.0
    %4261 = vmatpush1.msra.mxu0 0.0
    %4262 = vmatprep.subr.mxu0 0.0
    %4263 = vmatpush1.msra.mxu0 0.0
    %4264 = vmatprep.subr.mxu0 0.0
    %4265 = vmatpush1.msra.mxu0 0.0
    %4266 = vmatprep.subr.mxu0 0.0
    %4267 = vmatpush1.msra.mxu0 0.0
    %4268 = vmatprep.subr.mxu0 0.0
    %4269 = vmatpush1.msra.mxu0 0.0
    %4270 = vmatprep.subr.mxu0 0.0
    %4271 = vmatpush1.msra.mxu0 0.0
    %4272 = vmatprep.subr.mxu0 0.0
    %4273 = vmatpush1.msra.mxu0 0.0
    %4274 = vmatprep.subr.mxu0 0.0
    %4275 = vmatpush1.msra.mxu0 0.0
    %4276 = vmatprep.subr.mxu0 0.0
    %4277 = vmatpush1.msra.mxu0 0.0
    %4278 = vmatprep.subr.mxu0 0.0
    %4279 = vmatpush1.msra.mxu0 0.0
    %4280 = vmatprep.subr.mxu0 0.0
    %4281 = vmatpush1.msra.mxu0 0.0
    %4282 = vmatprep.subr.mxu0 0.0
    %4283 = vmatpush1.msra.mxu0 0.0
    %4284 = vmatprep.subr.mxu0 0.0
    %4285 = vmatpush1.msra.mxu0 0.0
    %4286 = vmatprep.subr.mxu0 0.0
    %4287 = vmatpush1.msra.mxu0 0.0
    %4288 = vmatprep.subr.mxu0 0.0
    %4289 = vmatpush1.msra.mxu0 0.0
    %4290 = vmatprep.subr.mxu0 0.0
    %4291 = vmatpush1.msra.mxu0 0.0
    %4292 = vmatprep.subr.mxu0 0.0
    %4293 = vmatpush1.msra.mxu0 0.0
    %4294 = vmatprep.subr.mxu0 0.0
    %4295 = vmatpush1.msra.mxu0 0.0
    %4296 = vmatprep.subr.mxu0 0.0
    %4297 = vmatpush1.msra.mxu0 0.0
    %4298 = vmatprep.subr.mxu0 0.0
    %4299 = vmatpush1.msra.mxu0 0.0
    %4300 = vmatprep.mubr.f32.mxu0 0.0
    %4301 = vmatmul.mubr.f32.gmra.mrb[0].mxu0 %v2941
    %v4302 = vpop.f32.mrb[0].mxu0
    %v4303 = vadd.f32 0.0, %v4302
    %v4304 = vpop.f32.mrb[0].mxu0
    %4305 = vmatprep.mubr.f32.mxu0 0.0
    %4306 = vmatmul.mubr.f32.gmra.mrb[0].mxu0 %v2944
    %v4307 = vpop.f32.mrb[0].mxu0
    %v4308 = vadd.f32 0.0, %v4307
    %v4309 = vpop.f32.mrb[0].mxu0
    %4310 = vmatprep.mubr.f32.mxu0 0.0
    %4311 = vmatmul.mubr.f32.gmra.mrb[0].mxu0 %v2947
    %v4312 = vpop.f32.mrb[0].mxu0
    %v4313 = vadd.f32 0.0, %v4312
    %v4314 = vpop.f32.mrb[0].mxu0
    %4315 = vmatprep.mubr.f32.mxu0 0.0
    %4316 = vmatmul.mubr.f32.gmra.mrb[0].mxu0 %v2950
    %v4317 = vpop.f32.mrb[0].mxu0
    %v4318 = vadd.f32 0.0, %v4317
    %v4319 = vpop.f32.mrb[0].mxu0
    %4320 = vdwg.mxu0
    %4321 = vmatprep.subr.mxu0 0.0
    %4322 = vmatpush1.msra.mxu0 %v4216
    %4323 = vmatprep.subr.mxu0 0.0
    %4324 = vmatpush1.msra.mxu0 %v4217
    %4325 = vmatprep.subr.mxu0 0.0
    %4326 = vmatpush1.msra.mxu0 %v4218
    %4327 = vmatprep.subr.mxu0 0.0
    %4328 = vmatpush1.msra.mxu0 %v4219
    %4329 = vmatprep.subr.mxu0 0.0
    %4330 = vmatpush1.msra.mxu0 0.0
    %4331 = vmatprep.subr.mxu0 0.0
    %4332 = vmatpush1.msra.mxu0 0.0
    %4333 = vmatprep.subr.mxu0 0.0
    %4334 = vmatpush1.msra.mxu0 0.0
    %4335 = vmatprep.subr.mxu0 0.0
    %4336 = vmatpush1.msra.mxu0 0.0
    %4337 = vmatprep.subr.mxu0 0.0
    %4338 = vmatpush1.msra.mxu0 0.0
    %4339 = vmatprep.subr.mxu0 0.0
    %4340 = vmatpush1.msra.mxu0 0.0
    %4341 = vmatprep.subr.mxu0 0.0
    %4342 = vmatpush1.msra.mxu0 0.0
    %4343 = vmatprep.subr.mxu0 0.0
    %4344 = vmatpush1.msra.mxu0 0.0
    %4345 = vmatprep.subr.mxu0 0.0
    %4346 = vmatpush1.msra.mxu0 0.0
    %4347 = vmatprep.subr.mxu0 0.0
    %4348 = vmatpush1.msra.mxu0 0.0
    %4349 = vmatprep.subr.mxu0 0.0
    %4350 = vmatpush1.msra.mxu0 0.0
    %4351 = vmatprep.subr.mxu0 0.0
    %4352 = vmatpush1.msra.mxu0 0.0
    %4353 = vmatprep.subr.mxu0 0.0
    %4354 = vmatpush1.msra.mxu0 0.0
    %4355 = vmatprep.subr.mxu0 0.0
    %4356 = vmatpush1.msra.mxu0 0.0
    %4357 = vmatprep.subr.mxu0 0.0
    %4358 = vmatpush1.msra.mxu0 0.0
    %4359 = vmatprep.subr.mxu0 0.0
    %4360 = vmatpush1.msra.mxu0 0.0
    %4361 = vmatprep.subr.mxu0 0.0
    %4362 = vmatpush1.msra.mxu0 0.0
    %4363 = vmatprep.subr.mxu0 0.0
    %4364 = vmatpush1.msra.mxu0 0.0
    %4365 = vmatprep.subr.mxu0 0.0
    %4366 = vmatpush1.msra.mxu0 0.0
    %4367 = vmatprep.subr.mxu0 0.0
    %4368 = vmatpush1.msra.mxu0 0.0
    %4369 = vmatprep.subr.mxu0 0.0
    %4370 = vmatpush1.msra.mxu0 0.0
    %4371 = vmatprep.subr.mxu0 0.0
    %4372 = vmatpush1.msra.mxu0 0.0
    %4373 = vmatprep.subr.mxu0 0.0
    %4374 = vmatpush1.msra.mxu0 0.0
    %4375 = vmatprep.subr.mxu0 0.0
    %4376 = vmatpush1.msra.mxu0 0.0
    %4377 = vmatprep.subr.mxu0 0.0
    %4378 = vmatpush1.msra.mxu0 0.0
    %4379 = vmatprep.subr.mxu0 0.0
    %4380 = vmatpush1.msra.mxu0 0.0
    %4381 = vmatprep.subr.mxu0 0.0
    %4382 = vmatpush1.msra.mxu0 0.0
    %4383 = vmatprep.subr.mxu0 0.0
    %4384 = vmatpush1.msra.mxu0 0.0
    %4385 = vmatprep.mubr.f32.mxu0 0.0
    %4386 = vmatmul.mubr.f32.gmra.mrb[0].mxu0 %v3038
    %v4387 = vpop.f32.mrb[0].mxu0
    %v4388 = vadd.f32 %v4303, %v4387
    %v4389 = vpop.f32.mrb[0].mxu0
    %4390 = vmatprep.mubr.f32.mxu0 0.0
    %4391 = vmatmul.mubr.f32.gmra.mrb[0].mxu0 %v3041
    %v4392 = vpop.f32.mrb[0].mxu0
    %v4393 = vadd.f32 %v4308, %v4392
    %v4394 = vpop.f32.mrb[0].mxu0
    %4395 = vmatprep.mubr.f32.mxu0 0.0
    %4396 = vmatmul.mubr.f32.gmra.mrb[0].mxu0 %v3044
    %v4397 = vpop.f32.mrb[0].mxu0
    %v4398 = vadd.f32 %v4313, %v4397
    %v4399 = vpop.f32.mrb[0].mxu0
    %4400 = vmatprep.mubr.f32.mxu0 0.0
    %4401 = vmatmul.mubr.f32.gmra.mrb[0].mxu0 %v3047
    %v4402 = vpop.f32.mrb[0].mxu0
    %v4403 = vadd.f32 %v4318, %v4402
    %v4404 = vpop.f32.mrb[0].mxu0
    %4405 = vdwg.mxu0
    %4406 = vrot.lane.b32.xlu0 %v4216, 120
    %v4407 = vpop.permute.xlu0 %4406
    %4408 = vrot.lane.b32.xlu0 %v4217, 120
    %v4409 = vpop.permute.xlu0 %4408
    %4410 = vrot.lane.b32.xlu0 %v4218, 120
    %v4411 = vpop.permute.xlu0 %4410
    %4412 = vrot.lane.b32.xlu0 %v4219, 120
    %v4413 = vpop.permute.xlu0 %4412
    %4418 = vmatprep.subr.mxu0 0.0
    %4419 = vmatpush1.msra.mxu0 %v4407
    %4420 = vmatprep.subr.mxu0 0.0
    %4421 = vmatpush1.msra.mxu0 %v4409
    %4422 = vmatprep.subr.mxu0 0.0
    %4423 = vmatpush1.msra.mxu0 %v4411
    %4424 = vmatprep.subr.mxu0 0.0
    %4425 = vmatpush1.msra.mxu0 %v4413
    %4426 = vmatprep.subr.mxu0 0.0
    %4427 = vmatpush1.msra.mxu0 0.0
    %4428 = vmatprep.subr.mxu0 0.0
    %4429 = vmatpush1.msra.mxu0 0.0
    %4430 = vmatprep.subr.mxu0 0.0
    %4431 = vmatpush1.msra.mxu0 0.0
    %4432 = vmatprep.subr.mxu0 0.0
    %4433 = vmatpush1.msra.mxu0 0.0
    %4434 = vmatprep.subr.mxu0 0.0
    %4435 = vmatpush1.msra.mxu0 0.0
    %4436 = vmatprep.subr.mxu0 0.0
    %4437 = vmatpush1.msra.mxu0 0.0
    %4438 = vmatprep.subr.mxu0 0.0
    %4439 = vmatpush1.msra.mxu0 0.0
    %4440 = vmatprep.subr.mxu0 0.0
    %4441 = vmatpush1.msra.mxu0 0.0
    %4442 = vmatprep.subr.mxu0 0.0
    %4443 = vmatpush1.msra.mxu0 0.0
    %4444 = vmatprep.subr.mxu0 0.0
    %4445 = vmatpush1.msra.mxu0 0.0
    %4446 = vmatprep.subr.mxu0 0.0
    %4447 = vmatpush1.msra.mxu0 0.0
    %4448 = vmatprep.subr.mxu0 0.0
    %4449 = vmatpush1.msra.mxu0 0.0
    %4450 = vmatprep.subr.mxu0 0.0
    %4451 = vmatpush1.msra.mxu0 0.0
    %4452 = vmatprep.subr.mxu0 0.0
    %4453 = vmatpush1.msra.mxu0 0.0
    %4454 = vmatprep.subr.mxu0 0.0
    %4455 = vmatpush1.msra.mxu0 0.0
    %4456 = vmatprep.subr.mxu0 0.0
    %4457 = vmatpush1.msra.mxu0 0.0
    %4458 = vmatprep.subr.mxu0 0.0
    %4459 = vmatpush1.msra.mxu0 0.0
    %4460 = vmatprep.subr.mxu0 0.0
    %4461 = vmatpush1.msra.mxu0 0.0
    %4462 = vmatprep.subr.mxu0 0.0
    %4463 = vmatpush1.msra.mxu0 0.0
    %4464 = vmatprep.subr.mxu0 0.0
    %4465 = vmatpush1.msra.mxu0 0.0
    %4466 = vmatprep.subr.mxu0 0.0
    %4467 = vmatpush1.msra.mxu0 0.0
    %4468 = vmatprep.subr.mxu0 0.0
    %4469 = vmatpush1.msra.mxu0 0.0
    %4470 = vmatprep.subr.mxu0 0.0
    %4471 = vmatpush1.msra.mxu0 0.0
    %4472 = vmatprep.subr.mxu0 0.0
    %4473 = vmatpush1.msra.mxu0 0.0
    %4474 = vmatprep.subr.mxu0 0.0
    %4475 = vmatpush1.msra.mxu0 0.0
    %4476 = vmatprep.subr.mxu0 0.0
    %4477 = vmatpush1.msra.mxu0 0.0
    %4478 = vmatprep.subr.mxu0 0.0
    %4479 = vmatpush1.msra.mxu0 0.0
    %4480 = vmatprep.subr.mxu0 0.0
    %4481 = vmatpush1.msra.mxu0 0.0
    %4482 = vmatprep.mubr.f32.mxu0 0.0
    %4483 = vmatmul.mubr.f32.gmra.mrb[0].mxu0 %v3152
    %v4484 = vpop.f32.mrb[0].mxu0
    %v4485 = vadd.f32 0.0, %v4484
    %v4486 = vpop.f32.mrb[0].mxu0
    %4487 = vmatprep.mubr.f32.mxu0 0.0
    %4488 = vmatmul.mubr.f32.gmra.mrb[0].mxu0 %v3155
    %v4489 = vpop.f32.mrb[0].mxu0
    %v4490 = vadd.f32 0.0, %v4489
    %v4491 = vpop.f32.mrb[0].mxu0
    %4492 = vmatprep.mubr.f32.mxu0 0.0
    %4493 = vmatmul.mubr.f32.gmra.mrb[0].mxu0 %v3158
    %v4494 = vpop.f32.mrb[0].mxu0
    %v4495 = vadd.f32 0.0, %v4494
    %v4496 = vpop.f32.mrb[0].mxu0
    %4497 = vmatprep.mubr.f32.mxu0 0.0
    %4498 = vmatmul.mubr.f32.gmra.mrb[0].mxu0 %v3161
    %v4499 = vpop.f32.mrb[0].mxu0
    %v4500 = vadd.f32 0.0, %v4499
    %v4501 = vpop.f32.mrb[0].mxu0
    %4502 = vdwg.mxu0
    %v4503 = vadd.f32 %v4388, %v4485
    %v4504 = vadd.f32 %v4393, %v4490
    %v4505 = vadd.f32 %v4398, %v4495
    %v4506 = vadd.f32 %v4403, %v4500
    %4507 = vrot.lane.b32.xlu0 %v4216, 116
    %v4508 = vpop.permute.xlu0 %4507
    %4509 = vrot.lane.b32.xlu0 %v4217, 116
    %v4510 = vpop.permute.xlu0 %4509
    %4511 = vrot.lane.b32.xlu0 %v4218, 116
    %v4512 = vpop.permute.xlu0 %4511
    %4513 = vrot.lane.b32.xlu0 %v4219, 116
    %v4514 = vpop.permute.xlu0 %4513
    %4519 = vmatprep.subr.mxu0 0.0
    %4520 = vmatpush1.msra.mxu0 %v4508
    %4521 = vmatprep.subr.mxu0 0.0
    %4522 = vmatpush1.msra.mxu0 %v4510
    %4523 = vmatprep.subr.mxu0 0.0
    %4524 = vmatpush1.msra.mxu0 %v4512
    %4525 = vmatprep.subr.mxu0 0.0
    %4526 = vmatpush1.msra.mxu0 %v4514
    %4527 = vmatprep.subr.mxu0 0.0
    %4528 = vmatpush1.msra.mxu0 0.0
    %4529 = vmatprep.subr.mxu0 0.0
    %4530 = vmatpush1.msra.mxu0 0.0
    %4531 = vmatprep.subr.mxu0 0.0
    %4532 = vmatpush1.msra.mxu0 0.0
    %4533 = vmatprep.subr.mxu0 0.0
    %4534 = vmatpush1.msra.mxu0 0.0
    %4535 = vmatprep.subr.mxu0 0.0
    %4536 = vmatpush1.msra.mxu0 0.0
    %4537 = vmatprep.subr.mxu0 0.0
    %4538 = vmatpush1.msra.mxu0 0.0
    %4539 = vmatprep.subr.mxu0 0.0
    %4540 = vmatpush1.msra.mxu0 0.0
    %4541 = vmatprep.subr.mxu0 0.0
    %4542 = vmatpush1.msra.mxu0 0.0
    %4543 = vmatprep.subr.mxu0 0.0
    %4544 = vmatpush1.msra.mxu0 0.0
    %4545 = vmatprep.subr.mxu0 0.0
    %4546 = vmatpush1.msra.mxu0 0.0
    %4547 = vmatprep.subr.mxu0 0.0
    %4548 = vmatpush1.msra.mxu0 0.0
    %4549 = vmatprep.subr.mxu0 0.0
    %4550 = vmatpush1.msra.mxu0 0.0
    %4551 = vmatprep.subr.mxu0 0.0
    %4552 = vmatpush1.msra.mxu0 0.0
    %4553 = vmatprep.subr.mxu0 0.0
    %4554 = vmatpush1.msra.mxu0 0.0
    %4555 = vmatprep.subr.mxu0 0.0
    %4556 = vmatpush1.msra.mxu0 0.0
    %4557 = vmatprep.subr.mxu0 0.0
    %4558 = vmatpush1.msra.mxu0 0.0
    %4559 = vmatprep.subr.mxu0 0.0
    %4560 = vmatpush1.msra.mxu0 0.0
    %4561 = vmatprep.subr.mxu0 0.0
    %4562 = vmatpush1.msra.mxu0 0.0
    %4563 = vmatprep.subr.mxu0 0.0
    %4564 = vmatpush1.msra.mxu0 0.0
    %4565 = vmatprep.subr.mxu0 0.0
    %4566 = vmatpush1.msra.mxu0 0.0
    %4567 = vmatprep.subr.mxu0 0.0
    %4568 = vmatpush1.msra.mxu0 0.0
    %4569 = vmatprep.subr.mxu0 0.0
    %4570 = vmatpush1.msra.mxu0 0.0
    %4571 = vmatprep.subr.mxu0 0.0
    %4572 = vmatpush1.msra.mxu0 0.0
    %4573 = vmatprep.subr.mxu0 0.0
    %4574 = vmatpush1.msra.mxu0 0.0
    %4575 = vmatprep.subr.mxu0 0.0
    %4576 = vmatpush1.msra.mxu0 0.0
    %4577 = vmatprep.subr.mxu0 0.0
    %4578 = vmatpush1.msra.mxu0 0.0
    %4579 = vmatprep.subr.mxu0 0.0
    %4580 = vmatpush1.msra.mxu0 0.0
    %4581 = vmatprep.subr.mxu0 0.0
    %4582 = vmatpush1.msra.mxu0 0.0
    %4583 = vmatprep.mubr.f32.mxu0 0.0
    %4584 = vmatmul.mubr.f32.gmra.mrb[0].mxu0 %v3270
    %v4585 = vpop.f32.mrb[0].mxu0
    %v4586 = vadd.f32 0.0, %v4585
    %v4587 = vpop.f32.mrb[0].mxu0
    %4588 = vmatprep.mubr.f32.mxu0 0.0
    %4589 = vmatmul.mubr.f32.gmra.mrb[0].mxu0 %v3273
    %v4590 = vpop.f32.mrb[0].mxu0
    %v4591 = vadd.f32 0.0, %v4590
    %v4592 = vpop.f32.mrb[0].mxu0
    %4593 = vmatprep.mubr.f32.mxu0 0.0
    %4594 = vmatmul.mubr.f32.gmra.mrb[0].mxu0 %v3276
    %v4595 = vpop.f32.mrb[0].mxu0
    %v4596 = vadd.f32 0.0, %v4595
    %v4597 = vpop.f32.mrb[0].mxu0
    %4598 = vmatprep.mubr.f32.mxu0 0.0
    %4599 = vmatmul.mubr.f32.gmra.mrb[0].mxu0 %v3279
    %v4600 = vpop.f32.mrb[0].mxu0
    %v4601 = vadd.f32 0.0, %v4600
    %v4602 = vpop.f32.mrb[0].mxu0
    %4603 = vdwg.mxu0
    %v4604 = vadd.f32 %v4503, %v4586
    %v4605 = vadd.f32 %v4504, %v4591
    %v4606 = vadd.f32 %v4505, %v4596
    %v4607 = vadd.f32 %v4506, %v4601
    %4608 = vrot.lane.b32.xlu0 %v4216, 112
    %v4609 = vpop.permute.xlu0 %4608
    %4610 = vrot.lane.b32.xlu0 %v4217, 112
    %v4611 = vpop.permute.xlu0 %4610
    %4612 = vrot.lane.b32.xlu0 %v4218, 112
    %v4613 = vpop.permute.xlu0 %4612
    %4614 = vrot.lane.b32.xlu0 %v4219, 112
    %v4615 = vpop.permute.xlu0 %4614
    %4620 = vmatprep.subr.mxu0 0.0
    %4621 = vmatpush1.msra.mxu0 %v4609
    %4622 = vmatprep.subr.mxu0 0.0
    %4623 = vmatpush1.msra.mxu0 %v4611
    %4624 = vmatprep.subr.mxu0 0.0
    %4625 = vmatpush1.msra.mxu0 %v4613
    %4626 = vmatprep.subr.mxu0 0.0
    %4627 = vmatpush1.msra.mxu0 %v4615
    %4628 = vmatprep.subr.mxu0 0.0
    %4629 = vmatpush1.msra.mxu0 0.0
    %4630 = vmatprep.subr.mxu0 0.0
    %4631 = vmatpush1.msra.mxu0 0.0
    %4632 = vmatprep.subr.mxu0 0.0
    %4633 = vmatpush1.msra.mxu0 0.0
    %4634 = vmatprep.subr.mxu0 0.0
    %4635 = vmatpush1.msra.mxu0 0.0
    %4636 = vmatprep.subr.mxu0 0.0
    %4637 = vmatpush1.msra.mxu0 0.0
    %4638 = vmatprep.subr.mxu0 0.0
    %4639 = vmatpush1.msra.mxu0 0.0
    %4640 = vmatprep.subr.mxu0 0.0
    %4641 = vmatpush1.msra.mxu0 0.0
    %4642 = vmatprep.subr.mxu0 0.0
    %4643 = vmatpush1.msra.mxu0 0.0
    %4644 = vmatprep.subr.mxu0 0.0
    %4645 = vmatpush1.msra.mxu0 0.0
    %4646 = vmatprep.subr.mxu0 0.0
    %4647 = vmatpush1.msra.mxu0 0.0
    %4648 = vmatprep.subr.mxu0 0.0
    %4649 = vmatpush1.msra.mxu0 0.0
    %4650 = vmatprep.subr.mxu0 0.0
    %4651 = vmatpush1.msra.mxu0 0.0
    %4652 = vmatprep.subr.mxu0 0.0
    %4653 = vmatpush1.msra.mxu0 0.0
    %4654 = vmatprep.subr.mxu0 0.0
    %4655 = vmatpush1.msra.mxu0 0.0
    %4656 = vmatprep.subr.mxu0 0.0
    %4657 = vmatpush1.msra.mxu0 0.0
    %4658 = vmatprep.subr.mxu0 0.0
    %4659 = vmatpush1.msra.mxu0 0.0
    %4660 = vmatprep.subr.mxu0 0.0
    %4661 = vmatpush1.msra.mxu0 0.0
    %4662 = vmatprep.subr.mxu0 0.0
    %4663 = vmatpush1.msra.mxu0 0.0
    %4664 = vmatprep.subr.mxu0 0.0
    %4665 = vmatpush1.msra.mxu0 0.0
    %4666 = vmatprep.subr.mxu0 0.0
    %4667 = vmatpush1.msra.mxu0 0.0
    %4668 = vmatprep.subr.mxu0 0.0
    %4669 = vmatpush1.msra.mxu0 0.0
    %4670 = vmatprep.subr.mxu0 0.0
    %4671 = vmatpush1.msra.mxu0 0.0
    %4672 = vmatprep.subr.mxu0 0.0
    %4673 = vmatpush1.msra.mxu0 0.0
    %4674 = vmatprep.subr.mxu0 0.0
    %4675 = vmatpush1.msra.mxu0 0.0
    %4676 = vmatprep.subr.mxu0 0.0
    %4677 = vmatpush1.msra.mxu0 0.0
    %4678 = vmatprep.subr.mxu0 0.0
    %4679 = vmatpush1.msra.mxu0 0.0
    %4680 = vmatprep.subr.mxu0 0.0
    %4681 = vmatpush1.msra.mxu0 0.0
    %4682 = vmatprep.subr.mxu0 0.0
    %4683 = vmatpush1.msra.mxu0 0.0
    %4684 = vmatprep.mubr.f32.mxu0 0.0
    %4685 = vmatmul.mubr.f32.gmra.mrb[0].mxu0 %v3388
    %v4686 = vpop.f32.mrb[0].mxu0
    %v4687 = vadd.f32 0.0, %v4686
    %v4688 = vpop.f32.mrb[0].mxu0
    %4689 = vmatprep.mubr.f32.mxu0 0.0
    %4690 = vmatmul.mubr.f32.gmra.mrb[0].mxu0 %v3391
    %v4691 = vpop.f32.mrb[0].mxu0
    %v4692 = vadd.f32 0.0, %v4691
    %v4693 = vpop.f32.mrb[0].mxu0
    %4694 = vmatprep.mubr.f32.mxu0 0.0
    %4695 = vmatmul.mubr.f32.gmra.mrb[0].mxu0 %v3394
    %v4696 = vpop.f32.mrb[0].mxu0
    %v4697 = vadd.f32 0.0, %v4696
    %v4698 = vpop.f32.mrb[0].mxu0
    %4699 = vmatprep.mubr.f32.mxu0 0.0
    %4700 = vmatmul.mubr.f32.gmra.mrb[0].mxu0 %v3397
    %v4701 = vpop.f32.mrb[0].mxu0
    %v4702 = vadd.f32 0.0, %v4701
    %v4703 = vpop.f32.mrb[0].mxu0
    %4704 = vdwg.mxu0
    %v4705 = vadd.f32 %v4604, %v4687
    %v4706 = vadd.f32 %v4605, %v4692
    %v4707 = vadd.f32 %v4606, %v4697
    %v4708 = vadd.f32 %v4607, %v4702
    %4709 = vrot.lane.b32.xlu0 %v4216, 108
    %v4710 = vpop.permute.xlu0 %4709
    %4711 = vrot.lane.b32.xlu0 %v4217, 108
    %v4712 = vpop.permute.xlu0 %4711
    %4713 = vrot.lane.b32.xlu0 %v4218, 108
    %v4714 = vpop.permute.xlu0 %4713
    %4715 = vrot.lane.b32.xlu0 %v4219, 108
    %v4716 = vpop.permute.xlu0 %4715
    %4721 = vmatprep.subr.mxu0 0.0
    %4722 = vmatpush1.msra.mxu0 %v4710
    %4723 = vmatprep.subr.mxu0 0.0
    %4724 = vmatpush1.msra.mxu0 %v4712
    %4725 = vmatprep.subr.mxu0 0.0
    %4726 = vmatpush1.msra.mxu0 %v4714
    %4727 = vmatprep.subr.mxu0 0.0
    %4728 = vmatpush1.msra.mxu0 %v4716
    %4729 = vmatprep.subr.mxu0 0.0
    %4730 = vmatpush1.msra.mxu0 0.0
    %4731 = vmatprep.subr.mxu0 0.0
    %4732 = vmatpush1.msra.mxu0 0.0
    %4733 = vmatprep.subr.mxu0 0.0
    %4734 = vmatpush1.msra.mxu0 0.0
    %4735 = vmatprep.subr.mxu0 0.0
    %4736 = vmatpush1.msra.mxu0 0.0
    %4737 = vmatprep.subr.mxu0 0.0
    %4738 = vmatpush1.msra.mxu0 0.0
    %4739 = vmatprep.subr.mxu0 0.0
    %4740 = vmatpush1.msra.mxu0 0.0
    %4741 = vmatprep.subr.mxu0 0.0
    %4742 = vmatpush1.msra.mxu0 0.0
    %4743 = vmatprep.subr.mxu0 0.0
    %4744 = vmatpush1.msra.mxu0 0.0
    %4745 = vmatprep.subr.mxu0 0.0
    %4746 = vmatpush1.msra.mxu0 0.0
    %4747 = vmatprep.subr.mxu0 0.0
    %4748 = vmatpush1.msra.mxu0 0.0
    %4749 = vmatprep.subr.mxu0 0.0
    %4750 = vmatpush1.msra.mxu0 0.0
    %4751 = vmatprep.subr.mxu0 0.0
    %4752 = vmatpush1.msra.mxu0 0.0
    %4753 = vmatprep.subr.mxu0 0.0
    %4754 = vmatpush1.msra.mxu0 0.0
    %4755 = vmatprep.subr.mxu0 0.0
    %4756 = vmatpush1.msra.mxu0 0.0
    %4757 = vmatprep.subr.mxu0 0.0
    %4758 = vmatpush1.msra.mxu0 0.0
    %4759 = vmatprep.subr.mxu0 0.0
    %4760 = vmatpush1.msra.mxu0 0.0
    %4761 = vmatprep.subr.mxu0 0.0
    %4762 = vmatpush1.msra.mxu0 0.0
    %4763 = vmatprep.subr.mxu0 0.0
    %4764 = vmatpush1.msra.mxu0 0.0
    %4765 = vmatprep.subr.mxu0 0.0
    %4766 = vmatpush1.msra.mxu0 0.0
    %4767 = vmatprep.subr.mxu0 0.0
    %4768 = vmatpush1.msra.mxu0 0.0
    %4769 = vmatprep.subr.mxu0 0.0
    %4770 = vmatpush1.msra.mxu0 0.0
    %4771 = vmatprep.subr.mxu0 0.0
    %4772 = vmatpush1.msra.mxu0 0.0
    %4773 = vmatprep.subr.mxu0 0.0
    %4774 = vmatpush1.msra.mxu0 0.0
    %4775 = vmatprep.subr.mxu0 0.0
    %4776 = vmatpush1.msra.mxu0 0.0
    %4777 = vmatprep.subr.mxu0 0.0
    %4778 = vmatpush1.msra.mxu0 0.0
    %4779 = vmatprep.subr.mxu0 0.0
    %4780 = vmatpush1.msra.mxu0 0.0
    %4781 = vmatprep.subr.mxu0 0.0
    %4782 = vmatpush1.msra.mxu0 0.0
    %4783 = vmatprep.subr.mxu0 0.0
    %4784 = vmatpush1.msra.mxu0 0.0
    %4785 = vmatprep.mubr.f32.mxu0 0.0
    %4786 = vmatmul.mubr.f32.gmra.mrb[0].mxu0 %v3506
    %v4787 = vpop.f32.mrb[0].mxu0
    %v4788 = vadd.f32 0.0, %v4787
    %v4789 = vpop.f32.mrb[0].mxu0
    %4790 = vmatprep.mubr.f32.mxu0 0.0
    %4791 = vmatmul.mubr.f32.gmra.mrb[0].mxu0 %v3509
    %v4792 = vpop.f32.mrb[0].mxu0
    %v4793 = vadd.f32 0.0, %v4792
    %v4794 = vpop.f32.mrb[0].mxu0
    %4795 = vmatprep.mubr.f32.mxu0 0.0
    %4796 = vmatmul.mubr.f32.gmra.mrb[0].mxu0 %v3512
    %v4797 = vpop.f32.mrb[0].mxu0
    %v4798 = vadd.f32 0.0, %v4797
    %v4799 = vpop.f32.mrb[0].mxu0
    %4800 = vmatprep.mubr.f32.mxu0 0.0
    %4801 = vmatmul.mubr.f32.gmra.mrb[0].mxu0 %v3515
    %v4802 = vpop.f32.mrb[0].mxu0
    %v4803 = vadd.f32 0.0, %v4802
    %v4804 = vpop.f32.mrb[0].mxu0
    %4805 = vdwg.mxu0
    %v4806 = vadd.f32 %v4705, %v4788
    %v4807 = vadd.f32 %v4706, %v4793
    %v4808 = vadd.f32 %v4707, %v4798
    %v4809 = vadd.f32 %v4708, %v4803
    %4810 = vrot.lane.b32.xlu0 %v4216, 104
    %v4811 = vpop.permute.xlu0 %4810
    %4812 = vrot.lane.b32.xlu0 %v4217, 104
    %v4813 = vpop.permute.xlu0 %4812
    %4814 = vrot.lane.b32.xlu0 %v4218, 104
    %v4815 = vpop.permute.xlu0 %4814
    %4816 = vrot.lane.b32.xlu0 %v4219, 104
    %v4817 = vpop.permute.xlu0 %4816
    %4822 = vmatprep.subr.mxu0 0.0
    %4823 = vmatpush1.msra.mxu0 %v4811
    %4824 = vmatprep.subr.mxu0 0.0
    %4825 = vmatpush1.msra.mxu0 %v4813
    %4826 = vmatprep.subr.mxu0 0.0
    %4827 = vmatpush1.msra.mxu0 %v4815
    %4828 = vmatprep.subr.mxu0 0.0
    %4829 = vmatpush1.msra.mxu0 %v4817
    %4830 = vmatprep.subr.mxu0 0.0
    %4831 = vmatpush1.msra.mxu0 0.0
    %4832 = vmatprep.subr.mxu0 0.0
    %4833 = vmatpush1.msra.mxu0 0.0
    %4834 = vmatprep.subr.mxu0 0.0
    %4835 = vmatpush1.msra.mxu0 0.0
    %4836 = vmatprep.subr.mxu0 0.0
    %4837 = vmatpush1.msra.mxu0 0.0
    %4838 = vmatprep.subr.mxu0 0.0
    %4839 = vmatpush1.msra.mxu0 0.0
    %4840 = vmatprep.subr.mxu0 0.0
    %4841 = vmatpush1.msra.mxu0 0.0
    %4842 = vmatprep.subr.mxu0 0.0
    %4843 = vmatpush1.msra.mxu0 0.0
    %4844 = vmatprep.subr.mxu0 0.0
    %4845 = vmatpush1.msra.mxu0 0.0
    %4846 = vmatprep.subr.mxu0 0.0
    %4847 = vmatpush1.msra.mxu0 0.0
    %4848 = vmatprep.subr.mxu0 0.0
    %4849 = vmatpush1.msra.mxu0 0.0
    %4850 = vmatprep.subr.mxu0 0.0
    %4851 = vmatpush1.msra.mxu0 0.0
    %4852 = vmatprep.subr.mxu0 0.0
    %4853 = vmatpush1.msra.mxu0 0.0
    %4854 = vmatprep.subr.mxu0 0.0
    %4855 = vmatpush1.msra.mxu0 0.0
    %4856 = vmatprep.subr.mxu0 0.0
    %4857 = vmatpush1.msra.mxu0 0.0
    %4858 = vmatprep.subr.mxu0 0.0
    %4859 = vmatpush1.msra.mxu0 0.0
    %4860 = vmatprep.subr.mxu0 0.0
    %4861 = vmatpush1.msra.mxu0 0.0
    %4862 = vmatprep.subr.mxu0 0.0
    %4863 = vmatpush1.msra.mxu0 0.0
    %4864 = vmatprep.subr.mxu0 0.0
    %4865 = vmatpush1.msra.mxu0 0.0
    %4866 = vmatprep.subr.mxu0 0.0
    %4867 = vmatpush1.msra.mxu0 0.0
    %4868 = vmatprep.subr.mxu0 0.0
    %4869 = vmatpush1.msra.mxu0 0.0
    %4870 = vmatprep.subr.mxu0 0.0
    %4871 = vmatpush1.msra.mxu0 0.0
    %4872 = vmatprep.subr.mxu0 0.0
    %4873 = vmatpush1.msra.mxu0 0.0
    %4874 = vmatprep.subr.mxu0 0.0
    %4875 = vmatpush1.msra.mxu0 0.0
    %4876 = vmatprep.subr.mxu0 0.0
    %4877 = vmatpush1.msra.mxu0 0.0
    %4878 = vmatprep.subr.mxu0 0.0
    %4879 = vmatpush1.msra.mxu0 0.0
    %4880 = vmatprep.subr.mxu0 0.0
    %4881 = vmatpush1.msra.mxu0 0.0
    %4882 = vmatprep.subr.mxu0 0.0
    %4883 = vmatpush1.msra.mxu0 0.0
    %4884 = vmatprep.subr.mxu0 0.0
    %4885 = vmatpush1.msra.mxu0 0.0
    %4886 = vmatprep.mubr.f32.mxu0 0.0
    %4887 = vmatmul.mubr.f32.gmra.mrb[0].mxu0 %v3624
    %v4888 = vpop.f32.mrb[0].mxu0
    %v4889 = vadd.f32 0.0, %v4888
    %v4890 = vpop.f32.mrb[0].mxu0
    %4891 = vmatprep.mubr.f32.mxu0 0.0
    %4892 = vmatmul.mubr.f32.gmra.mrb[0].mxu0 %v3627
    %v4893 = vpop.f32.mrb[0].mxu0
    %v4894 = vadd.f32 0.0, %v4893
    %v4895 = vpop.f32.mrb[0].mxu0
    %4896 = vmatprep.mubr.f32.mxu0 0.0
    %4897 = vmatmul.mubr.f32.gmra.mrb[0].mxu0 %v3630
    %v4898 = vpop.f32.mrb[0].mxu0
    %v4899 = vadd.f32 0.0, %v4898
    %v4900 = vpop.f32.mrb[0].mxu0
    %4901 = vmatprep.mubr.f32.mxu0 0.0
    %4902 = vmatmul.mubr.f32.gmra.mrb[0].mxu0 %v3633
    %v4903 = vpop.f32.mrb[0].mxu0
    %v4904 = vadd.f32 0.0, %v4903
    %v4905 = vpop.f32.mrb[0].mxu0
    %4906 = vdwg.mxu0
    %v4907 = vadd.f32 %v4806, %v4889
    %v4908 = vadd.f32 %v4807, %v4894
    %v4909 = vadd.f32 %v4808, %v4899
    %v4910 = vadd.f32 %v4809, %v4904
    %4911 = vrot.lane.b32.xlu0 %v4216, 100
    %v4912 = vpop.permute.xlu0 %4911
    %4913 = vrot.lane.b32.xlu0 %v4217, 100
    %v4914 = vpop.permute.xlu0 %4913
    %4915 = vrot.lane.b32.xlu0 %v4218, 100
    %v4916 = vpop.permute.xlu0 %4915
    %4917 = vrot.lane.b32.xlu0 %v4219, 100
    %v4918 = vpop.permute.xlu0 %4917
    %4923 = vmatprep.subr.mxu0 0.0
    %4924 = vmatpush1.msra.mxu0 %v4912
    %4925 = vmatprep.subr.mxu0 0.0
    %4926 = vmatpush1.msra.mxu0 %v4914
    %4927 = vmatprep.subr.mxu0 0.0
    %4928 = vmatpush1.msra.mxu0 %v4916
    %4929 = vmatprep.subr.mxu0 0.0
    %4930 = vmatpush1.msra.mxu0 %v4918
    %4931 = vmatprep.subr.mxu0 0.0
    %4932 = vmatpush1.msra.mxu0 0.0
    %4933 = vmatprep.subr.mxu0 0.0
    %4934 = vmatpush1.msra.mxu0 0.0
    %4935 = vmatprep.subr.mxu0 0.0
    %4936 = vmatpush1.msra.mxu0 0.0
    %4937 = vmatprep.subr.mxu0 0.0
    %4938 = vmatpush1.msra.mxu0 0.0
    %4939 = vmatprep.subr.mxu0 0.0
    %4940 = vmatpush1.msra.mxu0 0.0
    %4941 = vmatprep.subr.mxu0 0.0
    %4942 = vmatpush1.msra.mxu0 0.0
    %4943 = vmatprep.subr.mxu0 0.0
    %4944 = vmatpush1.msra.mxu0 0.0
    %4945 = vmatprep.subr.mxu0 0.0
    %4946 = vmatpush1.msra.mxu0 0.0
    %4947 = vmatprep.subr.mxu0 0.0
    %4948 = vmatpush1.msra.mxu0 0.0
    %4949 = vmatprep.subr.mxu0 0.0
    %4950 = vmatpush1.msra.mxu0 0.0
    %4951 = vmatprep.subr.mxu0 0.0
    %4952 = vmatpush1.msra.mxu0 0.0
    %4953 = vmatprep.subr.mxu0 0.0
    %4954 = vmatpush1.msra.mxu0 0.0
    %4955 = vmatprep.subr.mxu0 0.0
    %4956 = vmatpush1.msra.mxu0 0.0
    %4957 = vmatprep.subr.mxu0 0.0
    %4958 = vmatpush1.msra.mxu0 0.0
    %4959 = vmatprep.subr.mxu0 0.0
    %4960 = vmatpush1.msra.mxu0 0.0
    %4961 = vmatprep.subr.mxu0 0.0
    %4962 = vmatpush1.msra.mxu0 0.0
    %4963 = vmatprep.subr.mxu0 0.0
    %4964 = vmatpush1.msra.mxu0 0.0
    %4965 = vmatprep.subr.mxu0 0.0
    %4966 = vmatpush1.msra.mxu0 0.0
    %4967 = vmatprep.subr.mxu0 0.0
    %4968 = vmatpush1.msra.mxu0 0.0
    %4969 = vmatprep.subr.mxu0 0.0
    %4970 = vmatpush1.msra.mxu0 0.0
    %4971 = vmatprep.subr.mxu0 0.0
    %4972 = vmatpush1.msra.mxu0 0.0
    %4973 = vmatprep.subr.mxu0 0.0
    %4974 = vmatpush1.msra.mxu0 0.0
    %4975 = vmatprep.subr.mxu0 0.0
    %4976 = vmatpush1.msra.mxu0 0.0
    %4977 = vmatprep.subr.mxu0 0.0
    %4978 = vmatpush1.msra.mxu0 0.0
    %4979 = vmatprep.subr.mxu0 0.0
    %4980 = vmatpush1.msra.mxu0 0.0
    %4981 = vmatprep.subr.mxu0 0.0
    %4982 = vmatpush1.msra.mxu0 0.0
    %4983 = vmatprep.subr.mxu0 0.0
    %4984 = vmatpush1.msra.mxu0 0.0
    %4985 = vmatprep.subr.mxu0 0.0
    %4986 = vmatpush1.msra.mxu0 0.0
    %4987 = vmatprep.mubr.f32.mxu0 0.0
    %4988 = vmatmul.mubr.f32.gmra.mrb[0].mxu0 %v3742
    %v4989 = vpop.f32.mrb[0].mxu0
    %v4990 = vadd.f32 0.0, %v4989
    %v4991 = vpop.f32.mrb[0].mxu0
    %4992 = vmatprep.mubr.f32.mxu0 0.0
    %4993 = vmatmul.mubr.f32.gmra.mrb[0].mxu0 %v3745
    %v4994 = vpop.f32.mrb[0].mxu0
    %v4995 = vadd.f32 0.0, %v4994
    %v4996 = vpop.f32.mrb[0].mxu0
    %4997 = vmatprep.mubr.f32.mxu0 0.0
    %4998 = vmatmul.mubr.f32.gmra.mrb[0].mxu0 %v3748
    %v4999 = vpop.f32.mrb[0].mxu0
    %v5000 = vadd.f32 0.0, %v4999
    %v5001 = vpop.f32.mrb[0].mxu0
    %5002 = vmatprep.mubr.f32.mxu0 0.0
    %5003 = vmatmul.mubr.f32.gmra.mrb[0].mxu0 %v3751
    %v5004 = vpop.f32.mrb[0].mxu0
    %v5005 = vadd.f32 0.0, %v5004
    %v5006 = vpop.f32.mrb[0].mxu0
    %5007 = vdwg.mxu0
    %v5008 = vadd.f32 %v4907, %v4990
    %v5009 = vadd.f32 %v4908, %v4995
    %v5010 = vadd.f32 %v4909, %v5000
    %v5011 = vadd.f32 %v4910, %v5005
    %5012 = vrot.lane.b32.xlu0 %v4216, 96
    %v5013 = vpop.permute.xlu0 %5012
    %5014 = vrot.lane.b32.xlu0 %v4217, 96
    %v5015 = vpop.permute.xlu0 %5014
    %5016 = vrot.lane.b32.xlu0 %v4218, 96
    %v5017 = vpop.permute.xlu0 %5016
    %5018 = vrot.lane.b32.xlu0 %v4219, 96
    %v5019 = vpop.permute.xlu0 %5018
    %5024 = vmatprep.subr.mxu0 0.0
    %5025 = vmatpush1.msra.mxu0 %v5013
    %5026 = vmatprep.subr.mxu0 0.0
    %5027 = vmatpush1.msra.mxu0 %v5015
    %5028 = vmatprep.subr.mxu0 0.0
    %5029 = vmatpush1.msra.mxu0 %v5017
    %5030 = vmatprep.subr.mxu0 0.0
    %5031 = vmatpush1.msra.mxu0 %v5019
    %5032 = vmatprep.subr.mxu0 0.0
    %5033 = vmatpush1.msra.mxu0 0.0
    %5034 = vmatprep.subr.mxu0 0.0
    %5035 = vmatpush1.msra.mxu0 0.0
    %5036 = vmatprep.subr.mxu0 0.0
    %5037 = vmatpush1.msra.mxu0 0.0
    %5038 = vmatprep.subr.mxu0 0.0
    %5039 = vmatpush1.msra.mxu0 0.0
    %5040 = vmatprep.subr.mxu0 0.0
    %5041 = vmatpush1.msra.mxu0 0.0
    %5042 = vmatprep.subr.mxu0 0.0
    %5043 = vmatpush1.msra.mxu0 0.0
    %5044 = vmatprep.subr.mxu0 0.0
    %5045 = vmatpush1.msra.mxu0 0.0
    %5046 = vmatprep.subr.mxu0 0.0
    %5047 = vmatpush1.msra.mxu0 0.0
    %5048 = vmatprep.subr.mxu0 0.0
    %5049 = vmatpush1.msra.mxu0 0.0
    %5050 = vmatprep.subr.mxu0 0.0
    %5051 = vmatpush1.msra.mxu0 0.0
    %5052 = vmatprep.subr.mxu0 0.0
    %5053 = vmatpush1.msra.mxu0 0.0
    %5054 = vmatprep.subr.mxu0 0.0
    %5055 = vmatpush1.msra.mxu0 0.0
    %5056 = vmatprep.subr.mxu0 0.0
    %5057 = vmatpush1.msra.mxu0 0.0
    %5058 = vmatprep.subr.mxu0 0.0
    %5059 = vmatpush1.msra.mxu0 0.0
    %5060 = vmatprep.subr.mxu0 0.0
    %5061 = vmatpush1.msra.mxu0 0.0
    %5062 = vmatprep.subr.mxu0 0.0
    %5063 = vmatpush1.msra.mxu0 0.0
    %5064 = vmatprep.subr.mxu0 0.0
    %5065 = vmatpush1.msra.mxu0 0.0
    %5066 = vmatprep.subr.mxu0 0.0
    %5067 = vmatpush1.msra.mxu0 0.0
    %5068 = vmatprep.subr.mxu0 0.0
    %5069 = vmatpush1.msra.mxu0 0.0
    %5070 = vmatprep.subr.mxu0 0.0
    %5071 = vmatpush1.msra.mxu0 0.0
    %5072 = vmatprep.subr.mxu0 0.0
    %5073 = vmatpush1.msra.mxu0 0.0
    %5074 = vmatprep.subr.mxu0 0.0
    %5075 = vmatpush1.msra.mxu0 0.0
    %5076 = vmatprep.subr.mxu0 0.0
    %5077 = vmatpush1.msra.mxu0 0.0
    %5078 = vmatprep.subr.mxu0 0.0
    %5079 = vmatpush1.msra.mxu0 0.0
    %5080 = vmatprep.subr.mxu0 0.0
    %5081 = vmatpush1.msra.mxu0 0.0
    %5082 = vmatprep.subr.mxu0 0.0
    %5083 = vmatpush1.msra.mxu0 0.0
    %5084 = vmatprep.subr.mxu0 0.0
    %5085 = vmatpush1.msra.mxu0 0.0
    %5086 = vmatprep.subr.mxu0 0.0
    %5087 = vmatpush1.msra.mxu0 0.0
    %5088 = vmatprep.mubr.f32.mxu0 0.0
    %5089 = vmatmul.mubr.f32.gmra.mrb[0].mxu0 %v3860
    %v5090 = vpop.f32.mrb[0].mxu0
    %v5091 = vadd.f32 0.0, %v5090
    %v5092 = vpop.f32.mrb[0].mxu0
    %5093 = vmatprep.mubr.f32.mxu0 0.0
    %5094 = vmatmul.mubr.f32.gmra.mrb[0].mxu0 %v3863
    %v5095 = vpop.f32.mrb[0].mxu0
    %v5096 = vadd.f32 0.0, %v5095
    %v5097 = vpop.f32.mrb[0].mxu0
    %5098 = vmatprep.mubr.f32.mxu0 0.0
    %5099 = vmatmul.mubr.f32.gmra.mrb[0].mxu0 %v3866
    %v5100 = vpop.f32.mrb[0].mxu0
    %v5101 = vadd.f32 0.0, %v5100
    %v5102 = vpop.f32.mrb[0].mxu0
    %5103 = vmatprep.mubr.f32.mxu0 0.0
    %5104 = vmatmul.mubr.f32.gmra.mrb[0].mxu0 %v3869
    %v5105 = vpop.f32.mrb[0].mxu0
    %v5106 = vadd.f32 0.0, %v5105
    %v5107 = vpop.f32.mrb[0].mxu0
    %5108 = vdwg.mxu0
    %v5109 = vadd.f32 %v5008, %v5091
    %v5110 = vadd.f32 %v5009, %v5096
    %v5111 = vadd.f32 %v5010, %v5101
    %v5112 = vadd.f32 %v5011, %v5106
    %5113 = vrot.lane.b32.xlu0 %v4216, 92
    %v5114 = vpop.permute.xlu0 %5113
    %5115 = vrot.lane.b32.xlu0 %v4217, 92
    %v5116 = vpop.permute.xlu0 %5115
    %5117 = vrot.lane.b32.xlu0 %v4218, 92
    %v5118 = vpop.permute.xlu0 %5117
    %5119 = vrot.lane.b32.xlu0 %v4219, 92
    %v5120 = vpop.permute.xlu0 %5119
    %5125 = vmatprep.subr.mxu0 0.0
    %5126 = vmatpush1.msra.mxu0 %v5114
    %5127 = vmatprep.subr.mxu0 0.0
    %5128 = vmatpush1.msra.mxu0 %v5116
    %5129 = vmatprep.subr.mxu0 0.0
    %5130 = vmatpush1.msra.mxu0 %v5118
    %5131 = vmatprep.subr.mxu0 0.0
    %5132 = vmatpush1.msra.mxu0 %v5120
    %5133 = vmatprep.subr.mxu0 0.0
    %5134 = vmatpush1.msra.mxu0 0.0
    %5135 = vmatprep.subr.mxu0 0.0
    %5136 = vmatpush1.msra.mxu0 0.0
    %5137 = vmatprep.subr.mxu0 0.0
    %5138 = vmatpush1.msra.mxu0 0.0
    %5139 = vmatprep.subr.mxu0 0.0
    %5140 = vmatpush1.msra.mxu0 0.0
    %5141 = vmatprep.subr.mxu0 0.0
    %5142 = vmatpush1.msra.mxu0 0.0
    %5143 = vmatprep.subr.mxu0 0.0
    %5144 = vmatpush1.msra.mxu0 0.0
    %5145 = vmatprep.subr.mxu0 0.0
    %5146 = vmatpush1.msra.mxu0 0.0
    %5147 = vmatprep.subr.mxu0 0.0
    %5148 = vmatpush1.msra.mxu0 0.0
    %5149 = vmatprep.subr.mxu0 0.0
    %5150 = vmatpush1.msra.mxu0 0.0
    %5151 = vmatprep.subr.mxu0 0.0
    %5152 = vmatpush1.msra.mxu0 0.0
    %5153 = vmatprep.subr.mxu0 0.0
    %5154 = vmatpush1.msra.mxu0 0.0
    %5155 = vmatprep.subr.mxu0 0.0
    %5156 = vmatpush1.msra.mxu0 0.0
    %5157 = vmatprep.subr.mxu0 0.0
    %5158 = vmatpush1.msra.mxu0 0.0
    %5159 = vmatprep.subr.mxu0 0.0
    %5160 = vmatpush1.msra.mxu0 0.0
    %5161 = vmatprep.subr.mxu0 0.0
    %5162 = vmatpush1.msra.mxu0 0.0
    %5163 = vmatprep.subr.mxu0 0.0
    %5164 = vmatpush1.msra.mxu0 0.0
    %5165 = vmatprep.subr.mxu0 0.0
    %5166 = vmatpush1.msra.mxu0 0.0
    %5167 = vmatprep.subr.mxu0 0.0
    %5168 = vmatpush1.msra.mxu0 0.0
    %5169 = vmatprep.subr.mxu0 0.0
    %5170 = vmatpush1.msra.mxu0 0.0
    %5171 = vmatprep.subr.mxu0 0.0
    %5172 = vmatpush1.msra.mxu0 0.0
    %5173 = vmatprep.subr.mxu0 0.0
    %5174 = vmatpush1.msra.mxu0 0.0
    %5175 = vmatprep.subr.mxu0 0.0
    %5176 = vmatpush1.msra.mxu0 0.0
    %5177 = vmatprep.subr.mxu0 0.0
    %5178 = vmatpush1.msra.mxu0 0.0
    %5179 = vmatprep.subr.mxu0 0.0
    %5180 = vmatpush1.msra.mxu0 0.0
    %5181 = vmatprep.subr.mxu0 0.0
    %5182 = vmatpush1.msra.mxu0 0.0
    %5183 = vmatprep.subr.mxu0 0.0
    %5184 = vmatpush1.msra.mxu0 0.0
    %5185 = vmatprep.subr.mxu0 0.0
    %5186 = vmatpush1.msra.mxu0 0.0
    %5187 = vmatprep.subr.mxu0 0.0
    %5188 = vmatpush1.msra.mxu0 0.0
    %5189 = vmatprep.mubr.f32.mxu0 0.0
    %5190 = vmatmul.mubr.f32.gmra.mrb[0].mxu0 %v3978
    %v5191 = vpop.f32.mrb[0].mxu0
    %v5192 = vadd.f32 0.0, %v5191
    %v5193 = vpop.f32.mrb[0].mxu0
    %5194 = vmatprep.mubr.f32.mxu0 0.0
    %5195 = vmatmul.mubr.f32.gmra.mrb[0].mxu0 %v3981
    %v5196 = vpop.f32.mrb[0].mxu0
    %v5197 = vadd.f32 0.0, %v5196
    %v5198 = vpop.f32.mrb[0].mxu0
    %5199 = vmatprep.mubr.f32.mxu0 0.0
    %5200 = vmatmul.mubr.f32.gmra.mrb[0].mxu0 %v3984
    %v5201 = vpop.f32.mrb[0].mxu0
    %v5202 = vadd.f32 0.0, %v5201
    %v5203 = vpop.f32.mrb[0].mxu0
    %5204 = vmatprep.mubr.f32.mxu0 0.0
    %5205 = vmatmul.mubr.f32.gmra.mrb[0].mxu0 %v3987
    %v5206 = vpop.f32.mrb[0].mxu0
    %v5207 = vadd.f32 0.0, %v5206
    %v5208 = vpop.f32.mrb[0].mxu0
    %5209 = vdwg.mxu0
    %v5210 = vadd.f32 %v5109, %v5192
    %v5211 = vadd.f32 %v5110, %v5197
    %v5212 = vadd.f32 %v5111, %v5202
    %v5213 = vadd.f32 %v5112, %v5207
    %5214 = vrot.lane.b32.xlu0 %v4216, 88
    %v5215 = vpop.permute.xlu0 %5214
    %5216 = vrot.lane.b32.xlu0 %v4217, 88
    %v5217 = vpop.permute.xlu0 %5216
    %5218 = vrot.lane.b32.xlu0 %v4218, 88
    %v5219 = vpop.permute.xlu0 %5218
    %5220 = vrot.lane.b32.xlu0 %v4219, 88
    %v5221 = vpop.permute.xlu0 %5220
    %5226 = vmatprep.subr.mxu0 0.0
    %5227 = vmatpush1.msra.mxu0 %v5215
    %5228 = vmatprep.subr.mxu0 0.0
    %5229 = vmatpush1.msra.mxu0 %v5217
    %5230 = vmatprep.subr.mxu0 0.0
    %5231 = vmatpush1.msra.mxu0 %v5219
    %5232 = vmatprep.subr.mxu0 0.0
    %5233 = vmatpush1.msra.mxu0 %v5221
    %5234 = vmatprep.subr.mxu0 0.0
    %5235 = vmatpush1.msra.mxu0 0.0
    %5236 = vmatprep.subr.mxu0 0.0
    %5237 = vmatpush1.msra.mxu0 0.0
    %5238 = vmatprep.subr.mxu0 0.0
    %5239 = vmatpush1.msra.mxu0 0.0
    %5240 = vmatprep.subr.mxu0 0.0
    %5241 = vmatpush1.msra.mxu0 0.0
    %5242 = vmatprep.subr.mxu0 0.0
    %5243 = vmatpush1.msra.mxu0 0.0
    %5244 = vmatprep.subr.mxu0 0.0
    %5245 = vmatpush1.msra.mxu0 0.0
    %5246 = vmatprep.subr.mxu0 0.0
    %5247 = vmatpush1.msra.mxu0 0.0
    %5248 = vmatprep.subr.mxu0 0.0
    %5249 = vmatpush1.msra.mxu0 0.0
    %5250 = vmatprep.subr.mxu0 0.0
    %5251 = vmatpush1.msra.mxu0 0.0
    %5252 = vmatprep.subr.mxu0 0.0
    %5253 = vmatpush1.msra.mxu0 0.0
    %5254 = vmatprep.subr.mxu0 0.0
    %5255 = vmatpush1.msra.mxu0 0.0
    %5256 = vmatprep.subr.mxu0 0.0
    %5257 = vmatpush1.msra.mxu0 0.0
    %5258 = vmatprep.subr.mxu0 0.0
    %5259 = vmatpush1.msra.mxu0 0.0
    %5260 = vmatprep.subr.mxu0 0.0
    %5261 = vmatpush1.msra.mxu0 0.0
    %5262 = vmatprep.subr.mxu0 0.0
    %5263 = vmatpush1.msra.mxu0 0.0
    %5264 = vmatprep.subr.mxu0 0.0
    %5265 = vmatpush1.msra.mxu0 0.0
    %5266 = vmatprep.subr.mxu0 0.0
    %5267 = vmatpush1.msra.mxu0 0.0
    %5268 = vmatprep.subr.mxu0 0.0
    %5269 = vmatpush1.msra.mxu0 0.0
    %5270 = vmatprep.subr.mxu0 0.0
    %5271 = vmatpush1.msra.mxu0 0.0
    %5272 = vmatprep.subr.mxu0 0.0
    %5273 = vmatpush1.msra.mxu0 0.0
    %5274 = vmatprep.subr.mxu0 0.0
    %5275 = vmatpush1.msra.mxu0 0.0
    %5276 = vmatprep.subr.mxu0 0.0
    %5277 = vmatpush1.msra.mxu0 0.0
    %5278 = vmatprep.subr.mxu0 0.0
    %5279 = vmatpush1.msra.mxu0 0.0
    %5280 = vmatprep.subr.mxu0 0.0
    %5281 = vmatpush1.msra.mxu0 0.0
    %5282 = vmatprep.subr.mxu0 0.0
    %5283 = vmatpush1.msra.mxu0 0.0
    %5284 = vmatprep.subr.mxu0 0.0
    %5285 = vmatpush1.msra.mxu0 0.0
    %5286 = vmatprep.subr.mxu0 0.0
    %5287 = vmatpush1.msra.mxu0 0.0
    %5288 = vmatprep.subr.mxu0 0.0
    %5289 = vmatpush1.msra.mxu0 0.0
    %5290 = vmatprep.mubr.f32.mxu0 0.0
    %5291 = vmatmul.mubr.f32.gmra.mrb[0].mxu0 %v4096
    %v5292 = vpop.f32.mrb[0].mxu0
    %v5293 = vadd.f32 0.0, %v5292
    %v5294 = vpop.f32.mrb[0].mxu0
    %5295 = vmatprep.mubr.f32.mxu0 0.0
    %5296 = vmatmul.mubr.f32.gmra.mrb[0].mxu0 %v4099
    %v5297 = vpop.f32.mrb[0].mxu0
    %v5298 = vadd.f32 0.0, %v5297
    %v5299 = vpop.f32.mrb[0].mxu0
    %5300 = vmatprep.mubr.f32.mxu0 0.0
    %5301 = vmatmul.mubr.f32.gmra.mrb[0].mxu0 %v4102
    %v5302 = vpop.f32.mrb[0].mxu0
    %v5303 = vadd.f32 0.0, %v5302
    %v5304 = vpop.f32.mrb[0].mxu0
    %5305 = vmatprep.mubr.f32.mxu0 0.0
    %5306 = vmatmul.mubr.f32.gmra.mrb[0].mxu0 %v4105
    %v5307 = vpop.f32.mrb[0].mxu0
    %v5308 = vadd.f32 0.0, %v5307
    %v5309 = vpop.f32.mrb[0].mxu0
    %5310 = vdwg.mxu0
    %v5311 = vadd.f32 %v5210, %v5293
    %v5312 = vadd.f32 %v5211, %v5298
    %v5313 = vadd.f32 %v5212, %v5303
    %v5314 = vadd.f32 %v5213, %v5308
    %v5315 = vadd.f32 %v5311, %v4198
    %v5316 = vadd.f32 %v5312, %v4202
    %v5317 = vadd.f32 %v5313, %v4206
    %v5318 = vadd.f32 %v5314, %v4210
    %v5319 = vadd.f32 %v4212, %v38
    %v5320 = vadd.f32 %v4213, %v39
    %v5321 = vadd.f32 %v4214, %v40
    %v5322 = vadd.f32 %v4215, %v41
    %5323 = vst.msk [vmem:[#allocation3] sm:$0xff] %vm47, %v5319
    %5324 = vst.msk [vmem:[#allocation3 + $0x8] sm:$0xff] %vm47, %v5320
    %5325 = vst.msk [vmem:[#allocation3 + $0x10] sm:$0xff] %vm47, %v5321
    %5326 = vst.msk [vmem:[#allocation3 + $0x18] sm:$0xff] %vm47, %v5322
    %v5327 = vadd.f32 %v5315, %v43
    %v5328 = vadd.f32 %v5316, %v44
    %v5329 = vadd.f32 %v5317, %v45
    %v5330 = vadd.f32 %v5318, %v46
    %s5331 = scalar_lea.vmem [#allocation3], 32
    %5332 = vst.msk [vmem:[%s5331] sm:$0xff] %vm47, %v5327
    %5333 = vst.msk [vmem:[%s5331 + $0x8] sm:$0xff] %vm47, %v5328
    %5334 = vst.msk [vmem:[%s5331 + $0x10] sm:$0xff] %vm47, %v5329
    %5335 = vst.msk [vmem:[%s5331 + $0x18] sm:$0xff] %vm47, %v5330
    // Predicated region
    $region14: #{resblock_forward.1} parent=1 // pred_check
      _
    $region15: #{resblock_forward.1} parent=1 // pred_check_branch
      %5337 = sbr.rel (0) target = $region17
    $region16: #{resblock_forward.1} parent=1 // pred_region
      %s5339 = ssub.s32 1024, 1024
      %5340 = vsyncadd [#allocation4], %s5339
      %s5341 = sshll.u32 [#allocation3], 4
      %s5342 = int_to_ptr.vmem [resolvable:$true] %s5341
      %5347 = dma.vmem_to_hbm [thread:$0]  %s5342, 1024, %s3, [#allocation4], 128, 128, 8
    $region17: #{resblock_forward.1} parent=1 // pred_fallthru
      _
    // Predicated region
    $region18: #{resblock_forward.1} parent=1 // pred_check
      _
    $region19: #{resblock_forward.1} parent=1 // pred_check_branch
      %5349 = sbr.rel (0) target = $region21
    $region20: #{resblock_forward.1} parent=1 // pred_region
      %5350 = dma.done [#allocation4], 1024
    $region21: #{resblock_forward.1} parent=1 // pred_fallthru
      _
    %5351 = vsyncpa [#allocation4], 1

</llo_original>
